<compile_context>
chip_gen: v7x
topology: tpu7x:2x2x1
jax: 0.10.0
libtpu: 0.0.40
codegen_flags: <defaults>
</compile_context>

<pallas_src>
import functools

import numpy as np
import jax
import jax.numpy as jnp
from jax.experimental import pallas as pl
from jax.experimental.pallas import tpu as pltpu

EPS = 1e-5


# ----------------------------- helpers -------------------------------------

def _row_tile(m):
    """Largest row-tile that divides m (512 preferred per measured roofline data)."""
    for t in (512, 256, 128, 64, 32, 16, 8):
        if m % t == 0:
            return t
    return m


def _parallel_params(n_axes=1):
    return pltpu.CompilerParams(dimension_semantics=("parallel",) * n_axes)


# ----------------------------- Pallas kernels ------------------------------

def _linear_kernel(x_ref, w_ref, b_ref, o_ref):
    # y = x @ W + b   (MXU matmul, f32 accumulate); weights resident across grid.
    o_ref[...] = (
        jnp.dot(x_ref[...], w_ref[...], preferred_element_type=jnp.float32)
        + b_ref[...]
    )


def _linear_res_kernel(x_ref, w_ref, b_ref, r_ref, o_ref):
    # y = x @ W + b + residual   (residual add fused -> no extra HBM round-trip)
    o_ref[...] = (
        jnp.dot(x_ref[...], w_ref[...], preferred_element_type=jnp.float32)
        + b_ref[...]
        + r_ref[...]
    )


def _head_attention(q, k, v, scale):
    # softmax(q k^T * scale) v for one head; q.kT via dot_general (no transpose),
    # normalization applied after the PV matmul (Sq x dh divides, not Sq x Skv).
    s = jax.lax.dot_general(
        q, k, (((1,), (1,)), ((), ())), preferred_element_type=jnp.float32
    ) * scale
    m = jnp.max(s, axis=-1, keepdims=True)
    p = jnp.exp(s - m)
    denom = jnp.sum(p, axis=-1, keepdims=True)
    acc = jnp.dot(p, v, preferred_element_type=jnp.float32)
    return acc * pl.reciprocal(denom)


def _self_attn_kernel(qkv_ref, o_ref, *, nh, hidden, scale):
    # One batch per grid step, all heads processed here. qkv_ref: (1, Sq, 3H).
    dh = hidden // nh
    for h in range(nh):
        q = qkv_ref[0, :, h * dh:(h + 1) * dh]
        k = qkv_ref[0, :, hidden + h * dh: hidden + (h + 1) * dh]
        v = qkv_ref[0, :, 2 * hidden + h * dh: 2 * hidden + (h + 1) * dh]
        o_ref[0, :, h * dh:(h + 1) * dh] = _head_attention(q, k, v, scale)


def _cross_attn_kernel(q_ref, kv_ref, o_ref, *, nh, hidden, scale):
    # One batch per grid step. q_ref: (1, Sq, H), kv_ref: (1, Skv, 2H).
    dh = hidden // nh
    for h in range(nh):
        q = q_ref[0, :, h * dh:(h + 1) * dh]
        k = kv_ref[0, :, h * dh:(h + 1) * dh]
        v = kv_ref[0, :, hidden + h * dh: hidden + (h + 1) * dh]
        o_ref[0, :, h * dh:(h + 1) * dh] = _head_attention(q, k, v, scale)


def _ffn_kernel(x_ref, w1_ref, b1_ref, w2_ref, b2_ref, g_ref, beta_ref, o_ref):
    # fused: relu(x W1 + b1) W2 + b2 ; y = that ; LayerNorm(y + y)
    h = jnp.dot(x_ref[...], w1_ref[...], preferred_element_type=jnp.float32) + b1_ref[...]
    h = jnp.maximum(h, 0.0)
    y = jnp.dot(h, w2_ref[...], preferred_element_type=jnp.float32) + b2_ref[...]
    y = y + y  # the module computes layer_norm(x + x)
    mu = jnp.mean(y, axis=-1, keepdims=True)
    var = jnp.mean(jnp.square(y - mu), axis=-1, keepdims=True)
    o_ref[...] = (y - mu) * jax.lax.rsqrt(var + EPS) * g_ref[...] + beta_ref[...]


# ----------------------------- model pieces --------------------------------

def linear(x2d, w, b, residual=None):
    """Row-tiled y = x @ W + b (+ residual). x2d: (M,K), w: (K,N), b: (1,N)."""
    M, K = x2d.shape
    N = w.shape[1]
    tm = _row_tile(M)
    grid = (M // tm,)
    bytes_acc = 4 * (M * K + K * N + M * N + N + (M * N if residual is not None else 0))
    cost = pl.CostEstimate(flops=int(2 * M * K * N), transcendentals=0,
                           bytes_accessed=int(bytes_acc))
    common = dict(
        out_shape=jax.ShapeDtypeStruct((M, N), jnp.float32),
        grid=grid,
        out_specs=pl.BlockSpec((tm, N), lambda i: (i, 0)),
        compiler_params=_parallel_params(1),
        cost_estimate=cost,
    )
    weight_specs = [
        pl.BlockSpec((tm, K), lambda i: (i, 0)),   # activations stream over rows
        pl.BlockSpec((K, N), lambda i: (0, 0)),    # weights resident in VMEM
        pl.BlockSpec((1, N), lambda i: (0, 0)),    # bias resident
    ]
    if residual is None:
        return pl.pallas_call(_linear_kernel, in_specs=weight_specs, **common)(x2d, w, b)
    return pl.pallas_call(
        _linear_res_kernel,
        in_specs=weight_specs + [pl.BlockSpec((tm, N), lambda i: (i, 0))],
        **common,
    )(x2d, w, b, residual)


def self_attention(x, p):
    """x -> MultiHeadAttention(x, x, x) with fused QKV projection."""
    B, S, H = x.shape
    M = B * S
    nh = p["num_heads"]
    dh = H // nh
    scale = 1.0 / float(np.sqrt(dh))

    qkv = linear(x.reshape(M, H), p["w_qkv"], p["b_qkv"])          # (M, 3H)
    attn = pl.pallas_call(
        functools.partial(_self_attn_kernel, nh=nh, hidden=H, scale=scale),
        out_shape=jax.ShapeDtypeStruct((B, S, H), jnp.float32),
        grid=(B,),
        in_specs=[pl.BlockSpec((1, S, 3 * H), lambda b: (b, 0, 0))],
        out_specs=pl.BlockSpec((1, S, H), lambda b: (b, 0, 0)),
        compiler_params=_parallel_params(1),
        cost_estimate=pl.CostEstimate(
            flops=int(4 * B * S * S * H),
            transcendentals=int(B * nh * S * S),
            bytes_accessed=int(4 * (B * S * 3 * H + B * S * H)),
        ),
    )(qkv.reshape(B, S, 3 * H))

    out = linear(attn.reshape(M, H), p["wo"], p["bo"])             # output proj
    return out.reshape(B, S, H)


def cross_attention(x, enc, p):
    """Returns x + MultiHeadAttention(x, enc, enc); residual fused into out-proj."""
    B, Sq, H = x.shape
    Skv = enc.shape[1]
    nh = p["num_heads"]
    dh = H // nh
    scale = 1.0 / float(np.sqrt(dh))

    q = linear(x.reshape(B * Sq, H), p["wq"], p["bq"])             # (B*Sq, H)
    kv = linear(enc.reshape(B * Skv, H), p["w_kv"], p["b_kv"])     # (B*Skv, 2H)

    attn = pl.pallas_call(
        functools.partial(_cross_attn_kernel, nh=nh, hidden=H, scale=scale),
        out_shape=jax.ShapeDtypeStruct((B, Sq, H), jnp.float32),
        grid=(B,),
        in_specs=[
            pl.BlockSpec((1, Sq, H), lambda b: (b, 0, 0)),
            pl.BlockSpec((1, Skv, 2 * H), lambda b: (b, 0, 0)),
        ],
        out_specs=pl.BlockSpec((1, Sq, H), lambda b: (b, 0, 0)),
        compiler_params=_parallel_params(1),
        cost_estimate=pl.CostEstimate(
            flops=int(4 * B * Sq * Skv * H),
            transcendentals=int(B * nh * Sq * Skv),
            bytes_accessed=int(4 * (B * Sq * H + B * Skv * 2 * H + B * Sq * H)),
        ),
    )(q.reshape(B, Sq, H), kv.reshape(B, Skv, 2 * H))

    # output projection with the residual add fused in: x + attended_encoder
    out = linear(attn.reshape(B * Sq, H), p["wo"], p["bo"],
                 residual=x.reshape(B * Sq, H))
    return out.reshape(B, Sq, H)


def feed_forward(x, p):
    B, S, H = x.shape
    H4 = p["w1"].shape[1]
    M = B * S
    tm = _row_tile(M)
    out = pl.pallas_call(
        _ffn_kernel,
        out_shape=jax.ShapeDtypeStruct((M, H), jnp.float32),
        grid=(M // tm,),
        in_specs=[
            pl.BlockSpec((tm, H), lambda i: (i, 0)),   # activations stream
            pl.BlockSpec((H, H4), lambda i: (0, 0)),   # W1 resident
            pl.BlockSpec((1, H4), lambda i: (0, 0)),
            pl.BlockSpec((H4, H), lambda i: (0, 0)),   # W2 resident
            pl.BlockSpec((1, H), lambda i: (0, 0)),
            pl.BlockSpec((1, H), lambda i: (0, 0)),
            pl.BlockSpec((1, H), lambda i: (0, 0)),
        ],
        out_specs=pl.BlockSpec((tm, H), lambda i: (i, 0)),
        compiler_params=_parallel_params(1),
        cost_estimate=pl.CostEstimate(
            flops=int(4 * M * H * H4),
            transcendentals=int(M),
            bytes_accessed=int(4 * (2 * M * H + 2 * H * H4 + H4 + 3 * H)),
        ),
    )(x.reshape(M, H), p["w1"], p["b1"], p["w2"], p["b2"], p["gamma"], p["beta"])
    return out.reshape(B, S, H)


def decoder_layer(x, enc, p):
    x = self_attention(x, p["self_attn"])            # attended_self; x = attended_self
    x2 = cross_attention(x, enc, p["enc_attn"])      # x + attended_encoder (fused)
    return feed_forward(x2, p["ffn"])


def decoder(x, txt_embed, vis_feat, disc_feat, params):
    del vis_feat, disc_feat  # unused (see TODO above)
    for lp in params["layers"]:
        x = decoder_layer(x, txt_embed, lp)
    B, S, H = x.shape
    # final fc: weights zero-padded to a 128-lane-wide output (unmasked stores);
    # slice the real 4 columns back outside the kernel.
    out = linear(x.reshape(B * S, H), params["fc_w_pad"], params["fc_b_pad"])
    return out[:, : params["out_dim"]].reshape(B, S, params["out_dim"])


# ------------------------- pure-JAX reference ------------------------------

def _ref_linear(x, w, b):
    return x @ w + b[0]


def _ref_mha(xq, xkv, p):
    B, Sq, H = xq.shape
    Skv = xkv.shape[1]
    nh, dh = p["num_heads"], H // p["num_heads"]
    q = _ref_linear(xq.reshape(-1, H), p["wq"], p["bq"]).reshape(B, Sq, nh, dh).transpose(0, 2, 1, 3)
    k = _ref_linear(xkv.reshape(-1, H), p["wk"], p["bk"]).reshape(B, Skv, nh, dh).transpose(0, 2, 1, 3)
    v = _ref_linear(xkv.reshape(-1, H), p["wv"], p["bv"]).reshape(B, Skv, nh, dh).transpose(0, 2, 1, 3)
    s = jnp.einsum("bhqd,bhkd->bhqk", q, k) / np.sqrt(dh)
    a = jax.nn.softmax(s, axis=-1)
    o = jnp.einsum("bhqk,bhkd->bhqd", a, v).transpose(0, 2, 1, 3).reshape(B * Sq, H)
    return _ref_linear(o, p["wo"], p["bo"]).reshape(B, Sq, H)


def _ref_ffn(x, p):
    B, S, H = x.shape
    h = jnp.maximum(_ref_linear(x.reshape(-1, H), p["w1"], p["b1"]), 0.0)
    y = _ref_linear(h, p["w2"], p["b2"])
    y = y + y
    mu = jnp.mean(y, axis=-1, keepdims=True)
    var = jnp.mean(jnp.square(y - mu), axis=-1, keepdims=True)
    y = (y - mu) * jax.lax.rsqrt(var + EPS) * p["gamma"][0] + p["beta"][0]
    return y.reshape(B, S, H)


def ref_decoder(x, txt, params):
    for lp in params["layers"]:
        x = _ref_mha(x, x, lp["self_attn"])
        x2 = x + _ref_mha(x, txt, lp["enc_attn"])
        x = _ref_ffn(x2, lp["ffn"])
    B, S, H = x.shape
    return _ref_linear(x.reshape(-1, H), params["fc_w"], params["fc_b"]).reshape(B, S, -1)


# ----------------------------- param init ----------------------------------

def init_params(key, hidden, num_heads, num_layers, out_dim=4):
    def lin(k, fi, fo):
        kw, kb = jax.random.split(k)
        return (jax.random.normal(kw, (fi, fo), jnp.float32) * 0.05,
                jax.random.normal(kb, (1, fo), jnp.float32) * 0.05)

    def mha_p(k):
        ks = jax.random.split(k, 4)
        wq, bq = lin(ks[0], hidden, hidden)
        wk, bk = lin(ks[1], hidden, hidden)
        wv, bv = lin(ks[2], hidden, hidden)
        wo, bo = lin(ks[3], hidden, hidden)
        return dict(
            num_heads=num_heads,
            wq=wq, bq=bq, wk=wk, bk=bk, wv=wv, bv=bv, wo=wo, bo=bo,
            # fused projections used by the Pallas path (exactly the same numbers)
            w_qkv=jnp.concatenate([wq, wk, wv], axis=1),
            b_qkv=jnp.concatenate([bq, bk, bv], axis=1),
            w_kv=jnp.concatenate([wk, wv], axis=1),
            b_kv=jnp.concatenate([bk, bv], axis=1),
        )

    def ffn_p(k):
        k1, k2 = jax.random.split(k)
        w1, b1 = lin(k1, hidden, 4 * hidden)
        w2, b2 = lin(k2, 4 * hidden, hidden)
        return dict(w1=w1, b1=b1, w2=w2, b2=b2,
                    gamma=jnp.ones((1, hidden), jnp.float32),
                    beta=jnp.zeros((1, hidden), jnp.float32))

    layers = []
    keys = jax.random.split(key, num_layers + 1)
    for i in range(num_layers):
        ka, kb, kc = jax.random.split(keys[i], 3)
        layers.append(dict(self_attn=mha_p(ka), enc_attn=mha_p(kb), ffn=ffn_p(kc)))
    fc_w, fc_b = lin(keys[-1], hidden, out_dim)
    n_pad = (-out_dim) % 128
    return dict(layers=layers, fc_w=fc_w, fc_b=fc_b,
                fc_w_pad=jnp.pad(fc_w, ((0, 0), (0, n_pad))),
                fc_b_pad=jnp.pad(fc_b, ((0, 0), (0, n_pad))),
                out_dim=out_dim)


# --------------------------------- main -------------------------------------

if __name__ == "__main__":
    B, S, H = 2, 8, 32
    num_heads, num_layers = 4, 2

    key = jax.random.PRNGKey(0)
    kx, kt, kv, kd, kp = jax.random.split(key, 5)
    x = jax.random.normal(kx, (B, S, H), jnp.float32)
    txt_embed = jax.random.normal(kt, (B, S, H), jnp.float32)
    vis_feat = jax.random.normal(kv, (B, S, H), jnp.float32)   # unused (see TODO)
    disc_feat = jax.random.normal(kd, (B, S, H), jnp.float32)  # unused (see TODO)

    params = init_params(kp, H, num_heads, num_layers)

    # jit the wrapper so the small reshape/slice glue between pallas_calls fuses.
    run = jax.jit(functools.partial(decoder, params=params))
    out = run(x, txt_embed, vis_feat, disc_feat)
    out = jax.block_until_ready(out)

    ref = ref_decoder(x, txt_embed, params)
    np.testing.assert_allclose(np.asarray(out), np.asarray(ref), rtol=1e-3, atol=1e-3)
    assert out.shape == (B, S, 4)

    print("KERNEL_OK")
</pallas_src>

<mosaic_0001>
module attributes {stable_mosaic.version = 11 : i64} {
  func.func @_self_attn_kernel(%arg0: i32, %arg1: memref<1x8x96xf32, #tpu.memory_space<vmem>>, %arg2: memref<1x8x32xf32, #tpu.memory_space<vmem>>) attributes {dimension_semantics = [#tpu.dimension_semantics<parallel>], iteration_bounds = array<i64: 2>, scalar_prefetch = 0 : i64, scratch_operands = 0 : i64, tpu.core_type = #tpu.core_type<tc>, window_params = [{transform_indices = @transform_0, window_bounds = array<i64: 1, 8, 96>}, {transform_indices = @transform_1, window_bounds = array<i64: 1, 8, 32>}]} {
    %c0 = arith.constant 0 : index
    %c0_0 = arith.constant 0 : index
    %c0_1 = arith.constant 0 : index
    %0 = vector.load %arg1[%c0, %c0_0, %c0_1] : memref<1x8x96xf32, #tpu.memory_space<vmem>>, vector<1x8x8xf32>
    %1 = vector.shape_cast %0 : vector<1x8x8xf32> to vector<8x8xf32>
    %c0_2 = arith.constant 0 : index
    %c0_3 = arith.constant 0 : index
    %c32 = arith.constant 32 : index
    %2 = vector.load %arg1[%c0_2, %c0_3, %c32] : memref<1x8x96xf32, #tpu.memory_space<vmem>>, vector<1x8x8xf32>
    %3 = vector.shape_cast %2 : vector<1x8x8xf32> to vector<8x8xf32>
    %c0_4 = arith.constant 0 : index
    %c0_5 = arith.constant 0 : index
    %c64 = arith.constant 64 : index
    %4 = vector.load %arg1[%c0_4, %c0_5, %c64] : memref<1x8x96xf32, #tpu.memory_space<vmem>>, vector<1x8x8xf32>
    %5 = vector.shape_cast %4 : vector<1x8x8xf32> to vector<8x8xf32>
    %cst = arith.constant dense<0.000000e+00> : vector<8x8xf32>
    %6 = tpu.matmul %1, %3, %cst {dimension_numbers = #tpu.dot_dimension_numbers<[1], [1], [0], [0], [0, 0, 1, 0], [], []>} : vector<8x8xf32>, vector<8x8xf32>, vector<8x8xf32> -> vector<8x8xf32>
    %cst_6 = arith.constant 0.353553385 : f32
    %7 = vector.broadcast %cst_6 : f32 to vector<8x8xf32>
    %8 = arith.mulf %6, %7 : vector<8x8xf32>
    %cst_7 = arith.constant dense<0xFF800000> : vector<8xf32>
    %9 = vector.multi_reduction <maximumf>, %8, %cst_7 [1] : vector<8x8xf32> to vector<8xf32>
    %10 = vector.shape_cast %9 : vector<8xf32> to vector<8x1xf32>
    %11 = vector.broadcast %10 : vector<8x1xf32> to vector<8x8xf32>
    %12 = arith.subf %8, %11 : vector<8x8xf32>
    %13 = math.exp %12 : vector<8x8xf32>
    %cst_8 = arith.constant dense<0.000000e+00> : vector<8xf32>
    %14 = vector.multi_reduction <add>, %13, %cst_8 [1] : vector<8x8xf32> to vector<8xf32>
    %15 = vector.shape_cast %14 : vector<8xf32> to vector<8x1xf32>
    %cst_9 = arith.constant dense<0.000000e+00> : vector<8x8xf32>
    %16 = tpu.matmul %13, %5, %cst_9 {dimension_numbers = #tpu.dot_dimension_numbers<[1], [0], [0], [1], [0, 0, 1, 1], [], []>} : vector<8x8xf32>, vector<8x8xf32>, vector<8x8xf32> -> vector<8x8xf32>
    %17 = tpu.reciprocal %15 : vector<8x1xf32> -> vector<8x1xf32>
    %18 = vector.broadcast %17 : vector<8x1xf32> to vector<8x8xf32>
    %19 = arith.mulf %16, %18 : vector<8x8xf32>
    %c0_10 = arith.constant 0 : index
    %c0_11 = arith.constant 0 : index
    %c0_12 = arith.constant 0 : index
    %20 = vector.load %arg2[%c0_10, %c0_11, %c0_12] : memref<1x8x32xf32, #tpu.memory_space<vmem>>, vector<1x8x8xf32>
    %21 = vector.shape_cast %20 : vector<1x8x8xf32> to vector<8x8xf32>
    %22 = vector.shape_cast %19 : vector<8x8xf32> to vector<1x8x8xf32>
    tpu.vector_store %arg2[%c0_10, %c0_11, %c0_12], %22 {strides = array<i32>} : memref<1x8x32xf32, #tpu.memory_space<vmem>>, vector<1x8x8xf32>,
    %c0_13 = arith.constant 0 : index
    %c0_14 = arith.constant 0 : index
    %c8 = arith.constant 8 : index
    %23 = vector.load %arg1[%c0_13, %c0_14, %c8] : memref<1x8x96xf32, #tpu.memory_space<vmem>>, vector<1x8x8xf32>
    %24 = vector.shape_cast %23 : vector<1x8x8xf32> to vector<8x8xf32>
    %c0_15 = arith.constant 0 : index
    %c0_16 = arith.constant 0 : index
    %c40 = arith.constant 40 : index
    %25 = vector.load %arg1[%c0_15, %c0_16, %c40] : memref<1x8x96xf32, #tpu.memory_space<vmem>>, vector<1x8x8xf32>
    %26 = vector.shape_cast %25 : vector<1x8x8xf32> to vector<8x8xf32>
    %c0_17 = arith.constant 0 : index
    %c0_18 = arith.constant 0 : index
    %c72 = arith.constant 72 : index
    %27 = vector.load %arg1[%c0_17, %c0_18, %c72] : memref<1x8x96xf32, #tpu.memory_space<vmem>>, vector<1x8x8xf32>
    %28 = vector.shape_cast %27 : vector<1x8x8xf32> to vector<8x8xf32>
    %cst_19 = arith.constant dense<0.000000e+00> : vector<8x8xf32>
    %29 = tpu.matmul %24, %26, %cst_19 {dimension_numbers = #tpu.dot_dimension_numbers<[1], [1], [0], [0], [0, 0, 1, 0], [], []>} : vector<8x8xf32>, vector<8x8xf32>, vector<8x8xf32> -> vector<8x8xf32>
    %cst_20 = arith.constant 0.353553385 : f32
    %30 = vector.broadcast %cst_20 : f32 to vector<8x8xf32>
    %31 = arith.mulf %29, %30 : vector<8x8xf32>
    %cst_21 = arith.constant dense<0xFF800000> : vector<8xf32>
    %32 = vector.multi_reduction <maximumf>, %31, %cst_21 [1] : vector<8x8xf32> to vector<8xf32>
    %33 = vector.shape_cast %32 : vector<8xf32> to vector<8x1xf32>
    %34 = vector.broadcast %33 : vector<8x1xf32> to vector<8x8xf32>
    %35 = arith.subf %31, %34 : vector<8x8xf32>
    %36 = math.exp %35 : vector<8x8xf32>
    %cst_22 = arith.constant dense<0.000000e+00> : vector<8xf32>
    %37 = vector.multi_reduction <add>, %36, %cst_22 [1] : vector<8x8xf32> to vector<8xf32>
    %38 = vector.shape_cast %37 : vector<8xf32> to vector<8x1xf32>
    %cst_23 = arith.constant dense<0.000000e+00> : vector<8x8xf32>
    %39 = tpu.matmul %36, %28, %cst_23 {dimension_numbers = #tpu.dot_dimension_numbers<[1], [0], [0], [1], [0, 0, 1, 1], [], []>} : vector<8x8xf32>, vector<8x8xf32>, vector<8x8xf32> -> vector<8x8xf32>
    %40 = tpu.reciprocal %38 : vector<8x1xf32> -> vector<8x1xf32>
    %41 = vector.broadcast %40 : vector<8x1xf32> to vector<8x8xf32>
    %42 = arith.mulf %39, %41 : vector<8x8xf32>
    %c0_24 = arith.constant 0 : index
    %c0_25 = arith.constant 0 : index
    %c8_26 = arith.constant 8 : index
    %43 = vector.load %arg2[%c0_24, %c0_25, %c8_26] : memref<1x8x32xf32, #tpu.memory_space<vmem>>, vector<1x8x8xf32>
    %44 = vector.shape_cast %43 : vector<1x8x8xf32> to vector<8x8xf32>
    %45 = vector.shape_cast %42 : vector<8x8xf32> to vector<1x8x8xf32>
    tpu.vector_store %arg2[%c0_24, %c0_25, %c8_26], %45 {strides = array<i32>} : memref<1x8x32xf32, #tpu.memory_space<vmem>>, vector<1x8x8xf32>,
    %c0_27 = arith.constant 0 : index
    %c0_28 = arith.constant 0 : index
    %c16 = arith.constant 16 : index
    %46 = vector.load %arg1[%c0_27, %c0_28, %c16] : memref<1x8x96xf32, #tpu.memory_space<vmem>>, vector<1x8x8xf32>
    %47 = vector.shape_cast %46 : vector<1x8x8xf32> to vector<8x8xf32>
    %c0_29 = arith.constant 0 : index
    %c0_30 = arith.constant 0 : index
    %c48 = arith.constant 48 : index
    %48 = vector.load %arg1[%c0_29, %c0_30, %c48] : memref<1x8x96xf32, #tpu.memory_space<vmem>>, vector<1x8x8xf32>
    %49 = vector.shape_cast %48 : vector<1x8x8xf32> to vector<8x8xf32>
    %c0_31 = arith.constant 0 : index
    %c0_32 = arith.constant 0 : index
    %c80 = arith.constant 80 : index
    %50 = vector.load %arg1[%c0_31, %c0_32, %c80] : memref<1x8x96xf32, #tpu.memory_space<vmem>>, vector<1x8x8xf32>
    %51 = vector.shape_cast %50 : vector<1x8x8xf32> to vector<8x8xf32>
    %cst_33 = arith.constant dense<0.000000e+00> : vector<8x8xf32>
    %52 = tpu.matmul %47, %49, %cst_33 {dimension_numbers = #tpu.dot_dimension_numbers<[1], [1], [0], [0], [0, 0, 1, 0], [], []>} : vector<8x8xf32>, vector<8x8xf32>, vector<8x8xf32> -> vector<8x8xf32>
    %cst_34 = arith.constant 0.353553385 : f32
    %53 = vector.broadcast %cst_34 : f32 to vector<8x8xf32>
    %54 = arith.mulf %52, %53 : vector<8x8xf32>
    %cst_35 = arith.constant dense<0xFF800000> : vector<8xf32>
    %55 = vector.multi_reduction <maximumf>, %54, %cst_35 [1] : vector<8x8xf32> to vector<8xf32>
    %56 = vector.shape_cast %55 : vector<8xf32> to vector<8x1xf32>
    %57 = vector.broadcast %56 : vector<8x1xf32> to vector<8x8xf32>
    %58 = arith.subf %54, %57 : vector<8x8xf32>
    %59 = math.exp %58 : vector<8x8xf32>
    %cst_36 = arith.constant dense<0.000000e+00> : vector<8xf32>
    %60 = vector.multi_reduction <add>, %59, %cst_36 [1] : vector<8x8xf32> to vector<8xf32>
    %61 = vector.shape_cast %60 : vector<8xf32> to vector<8x1xf32>
    %cst_37 = arith.constant dense<0.000000e+00> : vector<8x8xf32>
    %62 = tpu.matmul %59, %51, %cst_37 {dimension_numbers = #tpu.dot_dimension_numbers<[1], [0], [0], [1], [0, 0, 1, 1], [], []>} : vector<8x8xf32>, vector<8x8xf32>, vector<8x8xf32> -> vector<8x8xf32>
    %63 = tpu.reciprocal %61 : vector<8x1xf32> -> vector<8x1xf32>
    %64 = vector.broadcast %63 : vector<8x1xf32> to vector<8x8xf32>
    %65 = arith.mulf %62, %64 : vector<8x8xf32>
    %c0_38 = arith.constant 0 : index
    %c0_39 = arith.constant 0 : index
    %c16_40 = arith.constant 16 : index
    %66 = vector.load %arg2[%c0_38, %c0_39, %c16_40] : memref<1x8x32xf32, #tpu.memory_space<vmem>>, vector<1x8x8xf32>
    %67 = vector.shape_cast %66 : vector<1x8x8xf32> to vector<8x8xf32>
    %68 = vector.shape_cast %65 : vector<8x8xf32> to vector<1x8x8xf32>
    tpu.vector_store %arg2[%c0_38, %c0_39, %c16_40], %68 {strides = array<i32>} : memref<1x8x32xf32, #tpu.memory_space<vmem>>, vector<1x8x8xf32>,
    %c0_41 = arith.constant 0 : index
    %c0_42 = arith.constant 0 : index
    %c24 = arith.constant 24 : index
    %69 = vector.load %arg1[%c0_41, %c0_42, %c24] : memref<1x8x96xf32, #tpu.memory_space<vmem>>, vector<1x8x8xf32>
    %70 = vector.shape_cast %69 : vector<1x8x8xf32> to vector<8x8xf32>
    %c0_43 = arith.constant 0 : index
    %c0_44 = arith.constant 0 : index
    %c56 = arith.constant 56 : index
    %71 = vector.load %arg1[%c0_43, %c0_44, %c56] : memref<1x8x96xf32, #tpu.memory_space<vmem>>, vector<1x8x8xf32>
    %72 = vector.shape_cast %71 : vector<1x8x8xf32> to vector<8x8xf32>
    %c0_45 = arith.constant 0 : index
    %c0_46 = arith.constant 0 : index
    %c88 = arith.constant 88 : index
    %73 = vector.load %arg1[%c0_45, %c0_46, %c88] : memref<1x8x96xf32, #tpu.memory_space<vmem>>, vector<1x8x8xf32>
    %74 = vector.shape_cast %73 : vector<1x8x8xf32> to vector<8x8xf32>
    %cst_47 = arith.constant dense<0.000000e+00> : vector<8x8xf32>
    %75 = tpu.matmul %70, %72, %cst_47 {dimension_numbers = #tpu.dot_dimension_numbers<[1], [1], [0], [0], [0, 0, 1, 0], [], []>} : vector<8x8xf32>, vector<8x8xf32>, vector<8x8xf32> -> vector<8x8xf32>
    %cst_48 = arith.constant 0.353553385 : f32
    %76 = vector.broadcast %cst_48 : f32 to vector<8x8xf32>
    %77 = arith.mulf %75, %76 : vector<8x8xf32>
    %cst_49 = arith.constant dense<0xFF800000> : vector<8xf32>
    %78 = vector.multi_reduction <maximumf>, %77, %cst_49 [1] : vector<8x8xf32> to vector<8xf32>
    %79 = vector.shape_cast %78 : vector<8xf32> to vector<8x1xf32>
    %80 = vector.broadcast %79 : vector<8x1xf32> to vector<8x8xf32>
    %81 = arith.subf %77, %80 : vector<8x8xf32>
    %82 = math.exp %81 : vector<8x8xf32>
    %cst_50 = arith.constant dense<0.000000e+00> : vector<8xf32>
    %83 = vector.multi_reduction <add>, %82, %cst_50 [1] : vector<8x8xf32> to vector<8xf32>
    %84 = vector.shape_cast %83 : vector<8xf32> to vector<8x1xf32>
    %cst_51 = arith.constant dense<0.000000e+00> : vector<8x8xf32>
    %85 = tpu.matmul %82, %74, %cst_51 {dimension_numbers = #tpu.dot_dimension_numbers<[1], [0], [0], [1], [0, 0, 1, 1], [], []>} : vector<8x8xf32>, vector<8x8xf32>, vector<8x8xf32> -> vector<8x8xf32>
    %86 = tpu.reciprocal %84 : vector<8x1xf32> -> vector<8x1xf32>
    %87 = vector.broadcast %86 : vector<8x1xf32> to vector<8x8xf32>
    %88 = arith.mulf %85, %87 : vector<8x8xf32>
    %c0_52 = arith.constant 0 : index
    %c0_53 = arith.constant 0 : index
    %c24_54 = arith.constant 24 : index
    %89 = vector.load %arg2[%c0_52, %c0_53, %c24_54] : memref<1x8x32xf32, #tpu.memory_space<vmem>>, vector<1x8x8xf32>
    %90 = vector.shape_cast %89 : vector<1x8x8xf32> to vector<8x8xf32>
    %91 = vector.shape_cast %88 : vector<8x8xf32> to vector<1x8x8xf32>
    tpu.vector_store %arg2[%c0_52, %c0_53, %c24_54], %91 {strides = array<i32>} : memref<1x8x32xf32, #tpu.memory_space<vmem>>, vector<1x8x8xf32>,
    return
  }
  func.func @transform_0(%arg0: i32) -> (i32, i32, i32) {
    %c0_i32 = arith.constant 0 : i32
    %c0_i32_0 = arith.constant 0 : i32
    %c0_i32_1 = arith.constant 0 : i32
    return %arg0, %c0_i32, %c0_i32_0 : i32, i32, i32
  }
  func.func @transform_1(%arg0: i32) -> (i32, i32, i32) {
    %c0_i32 = arith.constant 0 : i32
    %c0_i32_0 = arith.constant 0 : i32
    %c0_i32_1 = arith.constant 0 : i32
    return %arg0, %c0_i32, %c0_i32_0 : i32, i32, i32
  }
}

module attributes {stable_mosaic.version = 11 : i64} {
  func.func @_linear_kernel(%arg0: i32, %arg1: memref<16x32xf32, #tpu.memory_space<vmem>>, %arg2: memref<32x32xf32, #tpu.memory_space<vmem>>, %arg3: memref<1x32xf32, #tpu.memory_space<vmem>>, %arg4: memref<16x32xf32, #tpu.memory_space<vmem>>) attributes {dimension_semantics = [#tpu.dimension_semantics<parallel>], iteration_bounds = array<i64: 1>, scalar_prefetch = 0 : i64, scratch_operands = 0 : i64, tpu.core_type = #tpu.core_type<tc>, window_params = [{transform_indices = @transform_0, window_bounds = array<i64: 16, 32>}, {pipeline_mode = #tpu.pipeline_mode<synchronous>, transform_indices = @transform_1, window_bounds = array<i64: 32, 32>}, {pipeline_mode = #tpu.pipeline_mode<synchronous>, transform_indices = @transform_2, window_bounds = array<i64: 1, 32>}, {transform_indices = @transform_3, window_bounds = array<i64: 16, 32>}]} {
    %c0 = arith.constant 0 : index
    %c0_0 = arith.constant 0 : index
    %0 = vector.load %arg1[%c0, %c0_0] : memref<16x32xf32, #tpu.memory_space<vmem>>, vector<16x32xf32>
    %c0_1 = arith.constant 0 : index
    %c0_2 = arith.constant 0 : index
    %1 = vector.load %arg2[%c0_1, %c0_2] : memref<32x32xf32, #tpu.memory_space<vmem>>, vector<32x32xf32>
    %cst = arith.constant dense<0.000000e+00> : vector<16x32xf32>
    %2 = tpu.matmul %0, %1, %cst {dimension_numbers = #tpu.dot_dimension_numbers<[1], [0], [0], [1], [0, 0, 1, 1], [], []>} : vector<16x32xf32>, vector<32x32xf32>, vector<16x32xf32> -> vector<16x32xf32>
    %c0_3 = arith.constant 0 : index
    %c0_4 = arith.constant 0 : index
    %3 = vector.load %arg3[%c0_3, %c0_4] : memref<1x32xf32, #tpu.memory_space<vmem>>, vector<1x32xf32>
    %4 = vector.broadcast %3 : vector<1x32xf32> to vector<16x32xf32>
    %5 = arith.addf %2, %4 : vector<16x32xf32>
    %c0_5 = arith.constant 0 : index
    %c0_6 = arith.constant 0 : index
    %6 = vector.load %arg4[%c0_5, %c0_6] : memref<16x32xf32, #tpu.memory_space<vmem>>, vector<16x32xf32>
    tpu.vector_store %arg4[%c0_5, %c0_6], %5 {strides = array<i32>} : memref<16x32xf32, #tpu.memory_space<vmem>>, vector<16x32xf32>,
    return
  }
  func.func @transform_0(%arg0: i32) -> (i32, i32) {
    %c0_i32 = arith.constant 0 : i32
    %c0_i32_0 = arith.constant 0 : i32
    return %arg0, %c0_i32 : i32, i32
  }
  func.func @transform_1(%arg0: i32) -> (i32, i32) {
    %c0_i32 = arith.constant 0 : i32
    %c0_i32_0 = arith.constant 0 : i32
    %c0_i32_1 = arith.constant 0 : i32
    return %c0_i32, %c0_i32_0 : i32, i32
  }
  func.func @transform_2(%arg0: i32) -> (i32, i32) {
    %c0_i32 = arith.constant 0 : i32
    %c0_i32_0 = arith.constant 0 : i32
    %c0_i32_1 = arith.constant 0 : i32
    return %c0_i32, %c0_i32_0 : i32, i32
  }
  func.func @transform_3(%arg0: i32) -> (i32, i32) {
    %c0_i32 = arith.constant 0 : i32
    %c0_i32_0 = arith.constant 0 : i32
    return %arg0, %c0_i32 : i32, i32
  }
}

module attributes {stable_mosaic.version = 11 : i64} {
  func.func @_linear_kernel(%arg0: i32, %arg1: memref<16x32xf32, #tpu.memory_space<vmem>>, %arg2: memref<32x96xf32, #tpu.memory_space<vmem>>, %arg3: memref<1x96xf32, #tpu.memory_space<vmem>>, %arg4: memref<16x96xf32, #tpu.memory_space<vmem>>) attributes {dimension_semantics = [#tpu.dimension_semantics<parallel>], iteration_bounds = array<i64: 1>, scalar_prefetch = 0 : i64, scratch_operands = 0 : i64, tpu.core_type = #tpu.core_type<tc>, window_params = [{transform_indices = @transform_0, window_bounds = array<i64: 16, 32>}, {pipeline_mode = #tpu.pipeline_mode<synchronous>, transform_indices = @transform_1, window_bounds = array<i64: 32, 96>}, {pipeline_mode = #tpu.pipeline_mode<synchronous>, transform_indices = @transform_2, window_bounds = array<i64: 1, 96>}, {transform_indices = @transform_3, window_bounds = array<i64: 16, 96>}]} {
    %c0 = arith.constant 0 : index
    %c0_0 = arith.constant 0 : index
    %0 = vector.load %arg1[%c0, %c0_0] : memref<16x32xf32, #tpu.memory_space<vmem>>, vector<16x32xf32>
    %c0_1 = arith.constant 0 : index
    %c0_2 = arith.constant 0 : index
    %1 = vector.load %arg2[%c0_1, %c0_2] : memref<32x96xf32, #tpu.memory_space<vmem>>, vector<32x96xf32>
    %cst = arith.constant dense<0.000000e+00> : vector<16x96xf32>
    %2 = tpu.matmul %0, %1, %cst {dimension_numbers = #tpu.dot_dimension_numbers<[1], [0], [0], [1], [0, 0, 1, 1], [], []>} : vector<16x32xf32>, vector<32x96xf32>, vector<16x96xf32> -> vector<16x96xf32>
    %c0_3 = arith.constant 0 : index
    %c0_4 = arith.constant 0 : index
    %3 = vector.load %arg3[%c0_3, %c0_4] : memref<1x96xf32, #tpu.memory_space<vmem>>, vector<1x96xf32>
    %4 = vector.broadcast %3 : vector<1x96xf32> to vector<16x96xf32>
    %5 = arith.addf %2, %4 : vector<16x96xf32>
    %c0_5 = arith.constant 0 : index
    %c0_6 = arith.constant 0 : index
    %6 = vector.load %arg4[%c0_5, %c0_6] : memref<16x96xf32, #tpu.memory_space<vmem>>, vector<16x96xf32>
    tpu.vector_store %arg4[%c0_5, %c0_6], %5 {strides = array<i32>} : memref<16x96xf32, #tpu.memory_space<vmem>>, vector<16x96xf32>,
    return
  }
  func.func @transform_0(%arg0: i32) -> (i32, i32) {
    %c0_i32 = arith.constant 0 : i32
    %c0_i32_0 = arith.constant 0 : i32
    return %arg0, %c0_i32 : i32, i32
  }
  func.func @transform_1(%arg0: i32) -> (i32, i32) {
    %c0_i32 = arith.constant 0 : i32
    %c0_i32_0 = arith.constant 0 : i32
    %c0_i32_1 = arith.constant 0 : i32
    return %c0_i32, %c0_i32_0 : i32, i32
  }
  func.func @transform_2(%arg0: i32) -> (i32, i32) {
    %c0_i32 = arith.constant 0 : i32
    %c0_i32_0 = arith.constant 0 : i32
    %c0_i32_1 = arith.constant 0 : i32
    return %c0_i32, %c0_i32_0 : i32, i32
  }
  func.func @transform_3(%arg0: i32) -> (i32, i32) {
    %c0_i32 = arith.constant 0 : i32
    %c0_i32_0 = arith.constant 0 : i32
    return %arg0, %c0_i32 : i32, i32
  }
}

module attributes {stable_mosaic.version = 11 : i64} {
  func.func @_linear_kernel(%arg0: i32, %arg1: memref<16x32xf32, #tpu.memory_space<vmem>>, %arg2: memref<32x64xf32, #tpu.memory_space<vmem>>, %arg3: memref<1x64xf32, #tpu.memory_space<vmem>>, %arg4: memref<16x64xf32, #tpu.memory_space<vmem>>) attributes {dimension_semantics = [#tpu.dimension_semantics<parallel>], iteration_bounds = array<i64: 1>, scalar_prefetch = 0 : i64, scratch_operands = 0 : i64, tpu.core_type = #tpu.core_type<tc>, window_params = [{transform_indices = @transform_0, window_bounds = array<i64: 16, 32>}, {pipeline_mode = #tpu.pipeline_mode<synchronous>, transform_indices = @transform_1, window_bounds = array<i64: 32, 64>}, {pipeline_mode = #tpu.pipeline_mode<synchronous>, transform_indices = @transform_2, window_bounds = array<i64: 1, 64>}, {transform_indices = @transform_3, window_bounds = array<i64: 16, 64>}]} {
    %c0 = arith.constant 0 : index
    %c0_0 = arith.constant 0 : index
    %0 = vector.load %arg1[%c0, %c0_0] : memref<16x32xf32, #tpu.memory_space<vmem>>, vector<16x32xf32>
    %c0_1 = arith.constant 0 : index
    %c0_2 = arith.constant 0 : index
    %1 = vector.load %arg2[%c0_1, %c0_2] : memref<32x64xf32, #tpu.memory_space<vmem>>, vector<32x64xf32>
    %cst = arith.constant dense<0.000000e+00> : vector<16x64xf32>
    %2 = tpu.matmul %0, %1, %cst {dimension_numbers = #tpu.dot_dimension_numbers<[1], [0], [0], [1], [0, 0, 1, 1], [], []>} : vector<16x32xf32>, vector<32x64xf32>, vector<16x64xf32> -> vector<16x64xf32>
    %c0_3 = arith.constant 0 : index
    %c0_4 = arith.constant 0 : index
    %3 = vector.load %arg3[%c0_3, %c0_4] : memref<1x64xf32, #tpu.memory_space<vmem>>, vector<1x64xf32>
    %4 = vector.broadcast %3 : vector<1x64xf32> to vector<16x64xf32>
    %5 = arith.addf %2, %4 : vector<16x64xf32>
    %c0_5 = arith.constant 0 : index
    %c0_6 = arith.constant 0 : index
    %6 = vector.load %arg4[%c0_5, %c0_6] : memref<16x64xf32, #tpu.memory_space<vmem>>, vector<16x64xf32>
    tpu.vector_store %arg4[%c0_5, %c0_6], %5 {strides = array<i32>} : memref<16x64xf32, #tpu.memory_space<vmem>>, vector<16x64xf32>,
    return
  }
  func.func @transform_0(%arg0: i32) -> (i32, i32) {
    %c0_i32 = arith.constant 0 : i32
    %c0_i32_0 = arith.constant 0 : i32
    return %arg0, %c0_i32 : i32, i32
  }
  func.func @transform_1(%arg0: i32) -> (i32, i32) {
    %c0_i32 = arith.constant 0 : i32
    %c0_i32_0 = arith.constant 0 : i32
    %c0_i32_1 = arith.constant 0 : i32
    return %c0_i32, %c0_i32_0 : i32, i32
  }
  func.func @transform_2(%arg0: i32) -> (i32, i32) {
    %c0_i32 = arith.constant 0 : i32
    %c0_i32_0 = arith.constant 0 : i32
    %c0_i32_1 = arith.constant 0 : i32
    return %c0_i32, %c0_i32_0 : i32, i32
  }
  func.func @transform_3(%arg0: i32) -> (i32, i32) {
    %c0_i32 = arith.constant 0 : i32
    %c0_i32_0 = arith.constant 0 : i32
    return %arg0, %c0_i32 : i32, i32
  }
}

module attributes {stable_mosaic.version = 11 : i64} {
  func.func @_linear_res_kernel(%arg0: i32, %arg1: memref<16x32xf32, #tpu.memory_space<vmem>>, %arg2: memref<32x32xf32, #tpu.memory_space<vmem>>, %arg3: memref<1x32xf32, #tpu.memory_space<vmem>>, %arg4: memref<16x32xf32, #tpu.memory_space<vmem>>, %arg5: memref<16x32xf32, #tpu.memory_space<vmem>>) attributes {dimension_semantics = [#tpu.dimension_semantics<parallel>], iteration_bounds = array<i64: 1>, scalar_prefetch = 0 : i64, scratch_operands = 0 : i64, tpu.core_type = #tpu.core_type<tc>, window_params = [{transform_indices = @transform_0, window_bounds = array<i64: 16, 32>}, {pipeline_mode = #tpu.pipeline_mode<synchronous>, transform_indices = @transform_1, window_bounds = array<i64: 32, 32>}, {pipeline_mode = #tpu.pipeline_mode<synchronous>, transform_indices = @transform_2, window_bounds = array<i64: 1, 32>}, {transform_indices = @transform_3, window_bounds = array<i64: 16, 32>}, {transform_indices = @transform_4, window_bounds = array<i64: 16, 32>}]} {
    %c0 = arith.constant 0 : index
    %c0_0 = arith.constant 0 : index
    %0 = vector.load %arg1[%c0, %c0_0] : memref<16x32xf32, #tpu.memory_space<vmem>>, vector<16x32xf32>
    %c0_1 = arith.constant 0 : index
    %c0_2 = arith.constant 0 : index
    %1 = vector.load %arg2[%c0_1, %c0_2] : memref<32x32xf32, #tpu.memory_space<vmem>>, vector<32x32xf32>
    %cst = arith.constant dense<0.000000e+00> : vector<16x32xf32>
    %2 = tpu.matmul %0, %1, %cst {dimension_numbers = #tpu.dot_dimension_numbers<[1], [0], [0], [1], [0, 0, 1, 1], [], []>} : vector<16x32xf32>, vector<32x32xf32>, vector<16x32xf32> -> vector<16x32xf32>
    %c0_3 = arith.constant 0 : index
    %c0_4 = arith.constant 0 : index
    %3 = vector.load %arg3[%c0_3, %c0_4] : memref<1x32xf32, #tpu.memory_space<vmem>>, vector<1x32xf32>
    %4 = vector.broadcast %3 : vector<1x32xf32> to vector<16x32xf32>
    %5 = arith.addf %2, %4 : vector<16x32xf32>
    %c0_5 = arith.constant 0 : index
    %c0_6 = arith.constant 0 : index
    %6 = vector.load %arg4[%c0_5, %c0_6] : memref<16x32xf32, #tpu.memory_space<vmem>>, vector<16x32xf32>
    %7 = arith.addf %5, %6 : vector<16x32xf32>
    %c0_7 = arith.constant 0 : index
    %c0_8 = arith.constant 0 : index
    %8 = vector.load %arg5[%c0_7, %c0_8] : memref<16x32xf32, #tpu.memory_space<vmem>>, vector<16x32xf32>
    tpu.vector_store %arg5[%c0_7, %c0_8], %7 {strides = array<i32>} : memref<16x32xf32, #tpu.memory_space<vmem>>, vector<16x32xf32>,
    return
  }
  func.func @transform_0(%arg0: i32) -> (i32, i32) {
    %c0_i32 = arith.constant 0 : i32
    %c0_i32_0 = arith.constant 0 : i32
    return %arg0, %c0_i32 : i32, i32
  }
  func.func @transform_1(%arg0: i32) -> (i32, i32) {
    %c0_i32 = arith.constant 0 : i32
    %c0_i32_0 = arith.constant 0 : i32
    %c0_i32_1 = arith.constant 0 : i32
    return %c0_i32, %c0_i32_0 : i32, i32
  }
  func.func @transform_2(%arg0: i32) -> (i32, i32) {
    %c0_i32 = arith.constant 0 : i32
    %c0_i32_0 = arith.constant 0 : i32
    %c0_i32_1 = arith.constant 0 : i32
    return %c0_i32, %c0_i32_0 : i32, i32
  }
  func.func @transform_3(%arg0: i32) -> (i32, i32) {
    %c0_i32 = arith.constant 0 : i32
    %c0_i32_0 = arith.constant 0 : i32
    return %arg0, %c0_i32 : i32, i32
  }
  func.func @transform_4(%arg0: i32) -> (i32, i32) {
    %c0_i32 = arith.constant 0 : i32
    %c0_i32_0 = arith.constant 0 : i32
    return %arg0, %c0_i32 : i32, i32
  }
}

module attributes {stable_mosaic.version = 11 : i64} {
  func.func @_linear_kernel(%arg0: i32, %arg1: memref<16x32xf32, #tpu.memory_space<vmem>>, %arg2: memref<32x96xf32, #tpu.memory_space<vmem>>, %arg3: memref<1x96xf32, #tpu.memory_space<vmem>>, %arg4: memref<16x96xf32, #tpu.memory_space<vmem>>) attributes {dimension_semantics = [#tpu.dimension_semantics<parallel>], iteration_bounds = array<i64: 1>, scalar_prefetch = 0 : i64, scratch_operands = 0 : i64, tpu.core_type = #tpu.core_type<tc>, window_params = [{transform_indices = @transform_0, window_bounds = array<i64: 16, 32>}, {pipeline_mode = #tpu.pipeline_mode<synchronous>, transform_indices = @transform_1, window_bounds = array<i64: 32, 96>}, {pipeline_mode = #tpu.pipeline_mode<synchronous>, transform_indices = @transform_2, window_bounds = array<i64: 1, 96>}, {transform_indices = @transform_3, window_bounds = array<i64: 16, 96>}]} {
    %c0 = arith.constant 0 : index
    %c0_0 = arith.constant 0 : index
    %0 = vector.load %arg1[%c0, %c0_0] : memref<16x32xf32, #tpu.memory_space<vmem>>, vector<16x32xf32>
    %c0_1 = arith.constant 0 : index
    %c0_2 = arith.constant 0 : index
    %1 = vector.load %arg2[%c0_1, %c0_2] : memref<32x96xf32, #tpu.memory_space<vmem>>, vector<32x96xf32>
    %cst = arith.constant dense<0.000000e+00> : vector<16x96xf32>
    %2 = tpu.matmul %0, %1, %cst {dimension_numbers = #tpu.dot_dimension_numbers<[1], [0], [0], [1], [0, 0, 1, 1], [], []>} : vector<16x32xf32>, vector<32x96xf32>, vector<16x96xf32> -> vector<16x96xf32>
    %c0_3 = arith.constant 0 : index
    %c0_4 = arith.constant 0 : index
    %3 = vector.load %arg3[%c0_3, %c0_4] : memref<1x96xf32, #tpu.memory_space<vmem>>, vector<1x96xf32>
    %4 = vector.broadcast %3 : vector<1x96xf32> to vector<16x96xf32>
    %5 = arith.addf %2, %4 : vector<16x96xf32>
    %c0_5 = arith.constant 0 : index
    %c0_6 = arith.constant 0 : index
    %6 = vector.load %arg4[%c0_5, %c0_6] : memref<16x96xf32, #tpu.memory_space<vmem>>, vector<16x96xf32>
    tpu.vector_store %arg4[%c0_5, %c0_6], %5 {strides = array<i32>} : memref<16x96xf32, #tpu.memory_space<vmem>>, vector<16x96xf32>,
    return
  }
  func.func @transform_0(%arg0: i32) -> (i32, i32) {
    %c0_i32 = arith.constant 0 : i32
    %c0_i32_0 = arith.constant 0 : i32
    return %arg0, %c0_i32 : i32, i32
  }
  func.func @transform_1(%arg0: i32) -> (i32, i32) {
    %c0_i32 = arith.constant 0 : i32
    %c0_i32_0 = arith.constant 0 : i32
    %c0_i32_1 = arith.constant 0 : i32
    return %c0_i32, %c0_i32_0 : i32, i32
  }
  func.func @transform_2(%arg0: i32) -> (i32, i32) {
    %c0_i32 = arith.constant 0 : i32
    %c0_i32_0 = arith.constant 0 : i32
    %c0_i32_1 = arith.constant 0 : i32
    return %c0_i32, %c0_i32_0 : i32, i32
  }
  func.func @transform_3(%arg0: i32) -> (i32, i32) {
    %c0_i32 = arith.constant 0 : i32
    %c0_i32_0 = arith.constant 0 : i32
    return %arg0, %c0_i32 : i32, i32
  }
}

module attributes {stable_mosaic.version = 11 : i64} {
  func.func @_cross_attn_kernel(%arg0: i32, %arg1: memref<1x8x32xf32, #tpu.memory_space<vmem>>, %arg2: memref<1x8x64xf32, #tpu.memory_space<vmem>>, %arg3: memref<1x8x32xf32, #tpu.memory_space<vmem>>) attributes {dimension_semantics = [#tpu.dimension_semantics<parallel>], iteration_bounds = array<i64: 2>, scalar_prefetch = 0 : i64, scratch_operands = 0 : i64, tpu.core_type = #tpu.core_type<tc>, window_params = [{transform_indices = @transform_0, window_bounds = array<i64: 1, 8, 32>}, {transform_indices = @transform_1, window_bounds = array<i64: 1, 8, 64>}, {transform_indices = @transform_2, window_bounds = array<i64: 1, 8, 32>}]} {
    %c0 = arith.constant 0 : index
    %c0_0 = arith.constant 0 : index
    %c0_1 = arith.constant 0 : index
    %0 = vector.load %arg1[%c0, %c0_0, %c0_1] : memref<1x8x32xf32, #tpu.memory_space<vmem>>, vector<1x8x8xf32>
    %1 = vector.shape_cast %0 : vector<1x8x8xf32> to vector<8x8xf32>
    %c0_2 = arith.constant 0 : index
    %c0_3 = arith.constant 0 : index
    %c0_4 = arith.constant 0 : index
    %2 = vector.load %arg2[%c0_2, %c0_3, %c0_4] : memref<1x8x64xf32, #tpu.memory_space<vmem>>, vector<1x8x8xf32>
    %3 = vector.shape_cast %2 : vector<1x8x8xf32> to vector<8x8xf32>
    %c0_5 = arith.constant 0 : index
    %c0_6 = arith.constant 0 : index
    %c32 = arith.constant 32 : index
    %4 = vector.load %arg2[%c0_5, %c0_6, %c32] : memref<1x8x64xf32, #tpu.memory_space<vmem>>, vector<1x8x8xf32>
    %5 = vector.shape_cast %4 : vector<1x8x8xf32> to vector<8x8xf32>
    %cst = arith.constant dense<0.000000e+00> : vector<8x8xf32>
    %6 = tpu.matmul %1, %3, %cst {dimension_numbers = #tpu.dot_dimension_numbers<[1], [1], [0], [0], [0, 0, 1, 0], [], []>} : vector<8x8xf32>, vector<8x8xf32>, vector<8x8xf32> -> vector<8x8xf32>
    %cst_7 = arith.constant 0.353553385 : f32
    %7 = vector.broadcast %cst_7 : f32 to vector<8x8xf32>
    %8 = arith.mulf %6, %7 : vector<8x8xf32>
    %cst_8 = arith.constant dense<0xFF800000> : vector<8xf32>
    %9 = vector.multi_reduction <maximumf>, %8, %cst_8 [1] : vector<8x8xf32> to vector<8xf32>
    %10 = vector.shape_cast %9 : vector<8xf32> to vector<8x1xf32>
    %11 = vector.broadcast %10 : vector<8x1xf32> to vector<8x8xf32>
    %12 = arith.subf %8, %11 : vector<8x8xf32>
    %13 = math.exp %12 : vector<8x8xf32>
    %cst_9 = arith.constant dense<0.000000e+00> : vector<8xf32>
    %14 = vector.multi_reduction <add>, %13, %cst_9 [1] : vector<8x8xf32> to vector<8xf32>
    %15 = vector.shape_cast %14 : vector<8xf32> to vector<8x1xf32>
    %cst_10 = arith.constant dense<0.000000e+00> : vector<8x8xf32>
    %16 = tpu.matmul %13, %5, %cst_10 {dimension_numbers = #tpu.dot_dimension_numbers<[1], [0], [0], [1], [0, 0, 1, 1], [], []>} : vector<8x8xf32>, vector<8x8xf32>, vector<8x8xf32> -> vector<8x8xf32>
    %17 = tpu.reciprocal %15 : vector<8x1xf32> -> vector<8x1xf32>
    %18 = vector.broadcast %17 : vector<8x1xf32> to vector<8x8xf32>
    %19 = arith.mulf %16, %18 : vector<8x8xf32>
    %c0_11 = arith.constant 0 : index
    %c0_12 = arith.constant 0 : index
    %c0_13 = arith.constant 0 : index
    %20 = vector.load %arg3[%c0_11, %c0_12, %c0_13] : memref<1x8x32xf32, #tpu.memory_space<vmem>>, vector<1x8x8xf32>
    %21 = vector.shape_cast %20 : vector<1x8x8xf32> to vector<8x8xf32>
    %22 = vector.shape_cast %19 : vector<8x8xf32> to vector<1x8x8xf32>
    tpu.vector_store %arg3[%c0_11, %c0_12, %c0_13], %22 {strides = array<i32>} : memref<1x8x32xf32, #tpu.memory_space<vmem>>, vector<1x8x8xf32>,
    %c0_14 = arith.constant 0 : index
    %c0_15 = arith.constant 0 : index
    %c8 = arith.constant 8 : index
    %23 = vector.load %arg1[%c0_14, %c0_15, %c8] : memref<1x8x32xf32, #tpu.memory_space<vmem>>, vector<1x8x8xf32>
    %24 = vector.shape_cast %23 : vector<1x8x8xf32> to vector<8x8xf32>
    %c0_16 = arith.constant 0 : index
    %c0_17 = arith.constant 0 : index
    %c8_18 = arith.constant 8 : index
    %25 = vector.load %arg2[%c0_16, %c0_17, %c8_18] : memref<1x8x64xf32, #tpu.memory_space<vmem>>, vector<1x8x8xf32>
    %26 = vector.shape_cast %25 : vector<1x8x8xf32> to vector<8x8xf32>
    %c0_19 = arith.constant 0 : index
    %c0_20 = arith.constant 0 : index
    %c40 = arith.constant 40 : index
    %27 = vector.load %arg2[%c0_19, %c0_20, %c40] : memref<1x8x64xf32, #tpu.memory_space<vmem>>, vector<1x8x8xf32>
    %28 = vector.shape_cast %27 : vector<1x8x8xf32> to vector<8x8xf32>
    %cst_21 = arith.constant dense<0.000000e+00> : vector<8x8xf32>
    %29 = tpu.matmul %24, %26, %cst_21 {dimension_numbers = #tpu.dot_dimension_numbers<[1], [1], [0], [0], [0, 0, 1, 0], [], []>} : vector<8x8xf32>, vector<8x8xf32>, vector<8x8xf32> -> vector<8x8xf32>
    %cst_22 = arith.constant 0.353553385 : f32
    %30 = vector.broadcast %cst_22 : f32 to vector<8x8xf32>
    %31 = arith.mulf %29, %30 : vector<8x8xf32>
    %cst_23 = arith.constant dense<0xFF800000> : vector<8xf32>
    %32 = vector.multi_reduction <maximumf>, %31, %cst_23 [1] : vector<8x8xf32> to vector<8xf32>
    %33 = vector.shape_cast %32 : vector<8xf32> to vector<8x1xf32>
    %34 = vector.broadcast %33 : vector<8x1xf32> to vector<8x8xf32>
    %35 = arith.subf %31, %34 : vector<8x8xf32>
    %36 = math.exp %35 : vector<8x8xf32>
    %cst_24 = arith.constant dense<0.000000e+00> : vector<8xf32>
    %37 = vector.multi_reduction <add>, %36, %cst_24 [1] : vector<8x8xf32> to vector<8xf32>
    %38 = vector.shape_cast %37 : vector<8xf32> to vector<8x1xf32>
    %cst_25 = arith.constant dense<0.000000e+00> : vector<8x8xf32>
    %39 = tpu.matmul %36, %28, %cst_25 {dimension_numbers = #tpu.dot_dimension_numbers<[1], [0], [0], [1], [0, 0, 1, 1], [], []>} : vector<8x8xf32>, vector<8x8xf32>, vector<8x8xf32> -> vector<8x8xf32>
    %40 = tpu.reciprocal %38 : vector<8x1xf32> -> vector<8x1xf32>
    %41 = vector.broadcast %40 : vector<8x1xf32> to vector<8x8xf32>
    %42 = arith.mulf %39, %41 : vector<8x8xf32>
    %c0_26 = arith.constant 0 : index
    %c0_27 = arith.constant 0 : index
    %c8_28 = arith.constant 8 : index
    %43 = vector.load %arg3[%c0_26, %c0_27, %c8_28] : memref<1x8x32xf32, #tpu.memory_space<vmem>>, vector<1x8x8xf32>
    %44 = vector.shape_cast %43 : vector<1x8x8xf32> to vector<8x8xf32>
    %45 = vector.shape_cast %42 : vector<8x8xf32> to vector<1x8x8xf32>
    tpu.vector_store %arg3[%c0_26, %c0_27, %c8_28], %45 {strides = array<i32>} : memref<1x8x32xf32, #tpu.memory_space<vmem>>, vector<1x8x8xf32>,
    %c0_29 = arith.constant 0 : index
    %c0_30 = arith.constant 0 : index
    %c16 = arith.constant 16 : index
    %46 = vector.load %arg1[%c0_29, %c0_30, %c16] : memref<1x8x32xf32, #tpu.memory_space<vmem>>, vector<1x8x8xf32>
    %47 = vector.shape_cast %46 : vector<1x8x8xf32> to vector<8x8xf32>
    %c0_31 = arith.constant 0 : index
    %c0_32 = arith.constant 0 : index
    %c16_33 = arith.constant 16 : index
    %48 = vector.load %arg2[%c0_31, %c0_32, %c16_33] : memref<1x8x64xf32, #tpu.memory_space<vmem>>, vector<1x8x8xf32>
    %49 = vector.shape_cast %48 : vector<1x8x8xf32> to vector<8x8xf32>
    %c0_34 = arith.constant 0 : index
    %c0_35 = arith.constant 0 : index
    %c48 = arith.constant 48 : index
    %50 = vector.load %arg2[%c0_34, %c0_35, %c48] : memref<1x8x64xf32, #tpu.memory_space<vmem>>, vector<1x8x8xf32>
    %51 = vector.shape_cast %50 : vector<1x8x8xf32> to vector<8x8xf32>
    %cst_36 = arith.constant dense<0.000000e+00> : vector<8x8xf32>
    %52 = tpu.matmul %47, %49, %cst_36 {dimension_numbers = #tpu.dot_dimension_numbers<[1], [1], [0], [0], [0, 0, 1, 0], [], []>} : vector<8x8xf32>, vector<8x8xf32>, vector<8x8xf32> -> vector<8x8xf32>
    %cst_37 = arith.constant 0.353553385 : f32
    %53 = vector.broadcast %cst_37 : f32 to vector<8x8xf32>
    %54 = arith.mulf %52, %53 : vector<8x8xf32>
    %cst_38 = arith.constant dense<0xFF800000> : vector<8xf32>
    %55 = vector.multi_reduction <maximumf>, %54, %cst_38 [1] : vector<8x8xf32> to vector<8xf32>
    %56 = vector.shape_cast %55 : vector<8xf32> to vector<8x1xf32>
    %57 = vector.broadcast %56 : vector<8x1xf32> to vector<8x8xf32>
    %58 = arith.subf %54, %57 : vector<8x8xf32>
    %59 = math.exp %58 : vector<8x8xf32>
    %cst_39 = arith.constant dense<0.000000e+00> : vector<8xf32>
    %60 = vector.multi_reduction <add>, %59, %cst_39 [1] : vector<8x8xf32> to vector<8xf32>
    %61 = vector.shape_cast %60 : vector<8xf32> to vector<8x1xf32>
    %cst_40 = arith.constant dense<0.000000e+00> : vector<8x8xf32>
    %62 = tpu.matmul %59, %51, %cst_40 {dimension_numbers = #tpu.dot_dimension_numbers<[1], [0], [0], [1], [0, 0, 1, 1], [], []>} : vector<8x8xf32>, vector<8x8xf32>, vector<8x8xf32> -> vector<8x8xf32>
    %63 = tpu.reciprocal %61 : vector<8x1xf32> -> vector<8x1xf32>
    %64 = vector.broadcast %63 : vector<8x1xf32> to vector<8x8xf32>
    %65 = arith.mulf %62, %64 : vector<8x8xf32>
    %c0_41 = arith.constant 0 : index
    %c0_42 = arith.constant 0 : index
    %c16_43 = arith.constant 16 : index
    %66 = vector.load %arg3[%c0_41, %c0_42, %c16_43] : memref<1x8x32xf32, #tpu.memory_space<vmem>>, vector<1x8x8xf32>
    %67 = vector.shape_cast %66 : vector<1x8x8xf32> to vector<8x8xf32>
    %68 = vector.shape_cast %65 : vector<8x8xf32> to vector<1x8x8xf32>
    tpu.vector_store %arg3[%c0_41, %c0_42, %c16_43], %68 {strides = array<i32>} : memref<1x8x32xf32, #tpu.memory_space<vmem>>, vector<1x8x8xf32>,
    %c0_44 = arith.constant 0 : index
    %c0_45 = arith.constant 0 : index
    %c24 = arith.constant 24 : index
    %69 = vector.load %arg1[%c0_44, %c0_45, %c24] : memref<1x8x32xf32, #tpu.memory_space<vmem>>, vector<1x8x8xf32>
    %70 = vector.shape_cast %69 : vector<1x8x8xf32> to vector<8x8xf32>
    %c0_46 = arith.constant 0 : index
    %c0_47 = arith.constant 0 : index
    %c24_48 = arith.constant 24 : index
    %71 = vector.load %arg2[%c0_46, %c0_47, %c24_48] : memref<1x8x64xf32, #tpu.memory_space<vmem>>, vector<1x8x8xf32>
    %72 = vector.shape_cast %71 : vector<1x8x8xf32> to vector<8x8xf32>
    %c0_49 = arith.constant 0 : index
    %c0_50 = arith.constant 0 : index
    %c56 = arith.constant 56 : index
    %73 = vector.load %arg2[%c0_49, %c0_50, %c56] : memref<1x8x64xf32, #tpu.memory_space<vmem>>, vector<1x8x8xf32>
    %74 = vector.shape_cast %73 : vector<1x8x8xf32> to vector<8x8xf32>
    %cst_51 = arith.constant dense<0.000000e+00> : vector<8x8xf32>
    %75 = tpu.matmul %70, %72, %cst_51 {dimension_numbers = #tpu.dot_dimension_numbers<[1], [1], [0], [0], [0, 0, 1, 0], [], []>} : vector<8x8xf32>, vector<8x8xf32>, vector<8x8xf32> -> vector<8x8xf32>
    %cst_52 = arith.constant 0.353553385 : f32
    %76 = vector.broadcast %cst_52 : f32 to vector<8x8xf32>
    %77 = arith.mulf %75, %76 : vector<8x8xf32>
    %cst_53 = arith.constant dense<0xFF800000> : vector<8xf32>
    %78 = vector.multi_reduction <maximumf>, %77, %cst_53 [1] : vector<8x8xf32> to vector<8xf32>
    %79 = vector.shape_cast %78 : vector<8xf32> to vector<8x1xf32>
    %80 = vector.broadcast %79 : vector<8x1xf32> to vector<8x8xf32>
    %81 = arith.subf %77, %80 : vector<8x8xf32>
    %82 = math.exp %81 : vector<8x8xf32>
    %cst_54 = arith.constant dense<0.000000e+00> : vector<8xf32>
    %83 = vector.multi_reduction <add>, %82, %cst_54 [1] : vector<8x8xf32> to vector<8xf32>
    %84 = vector.shape_cast %83 : vector<8xf32> to vector<8x1xf32>
    %cst_55 = arith.constant dense<0.000000e+00> : vector<8x8xf32>
    %85 = tpu.matmul %82, %74, %cst_55 {dimension_numbers = #tpu.dot_dimension_numbers<[1], [0], [0], [1], [0, 0, 1, 1], [], []>} : vector<8x8xf32>, vector<8x8xf32>, vector<8x8xf32> -> vector<8x8xf32>
    %86 = tpu.reciprocal %84 : vector<8x1xf32> -> vector<8x1xf32>
    %87 = vector.broadcast %86 : vector<8x1xf32> to vector<8x8xf32>
    %88 = arith.mulf %85, %87 : vector<8x8xf32>
    %c0_56 = arith.constant 0 : index
    %c0_57 = arith.constant 0 : index
    %c24_58 = arith.constant 24 : index
    %89 = vector.load %arg3[%c0_56, %c0_57, %c24_58] : memref<1x8x32xf32, #tpu.memory_space<vmem>>, vector<1x8x8xf32>
    %90 = vector.shape_cast %89 : vector<1x8x8xf32> to vector<8x8xf32>
    %91 = vector.shape_cast %88 : vector<8x8xf32> to vector<1x8x8xf32>
    tpu.vector_store %arg3[%c0_56, %c0_57, %c24_58], %91 {strides = array<i32>} : memref<1x8x32xf32, #tpu.memory_space<vmem>>, vector<1x8x8xf32>,
    return
  }
  func.func @transform_0(%arg0: i32) -> (i32, i32, i32) {
    %c0_i32 = arith.constant 0 : i32
    %c0_i32_0 = arith.constant 0 : i32
    %c0_i32_1 = arith.constant 0 : i32
    return %arg0, %c0_i32, %c0_i32_0 : i32, i32, i32
  }
  func.func @transform_1(%arg0: i32) -> (i32, i32, i32) {
    %c0_i32 = arith.constant 0 : i32
    %c0_i32_0 = arith.constant 0 : i32
    %c0_i32_1 = arith.constant 0 : i32
    return %arg0, %c0_i32, %c0_i32_0 : i32, i32, i32
  }
  func.func @transform_2(%arg0: i32) -> (i32, i32, i32) {
    %c0_i32 = arith.constant 0 : i32
    %c0_i32_0 = arith.constant 0 : i32
    %c0_i32_1 = arith.constant 0 : i32
    return %arg0, %c0_i32, %c0_i32_0 : i32, i32, i32
  }
}

module attributes {stable_mosaic.version = 11 : i64} {
  func.func @_ffn_kernel(%arg0: i32, %arg1: memref<16x32xf32, #tpu.memory_space<vmem>>, %arg2: memref<32x128xf32, #tpu.memory_space<vmem>>, %arg3: memref<1x128xf32, #tpu.memory_space<vmem>>, %arg4: memref<128x32xf32, #tpu.memory_space<vmem>>, %arg5: memref<1x32xf32, #tpu.memory_space<vmem>>, %arg6: memref<1x32xf32, #tpu.memory_space<vmem>>, %arg7: memref<1x32xf32, #tpu.memory_space<vmem>>, %arg8: memref<16x32xf32, #tpu.memory_space<vmem>>) attributes {dimension_semantics = [#tpu.dimension_semantics<parallel>], iteration_bounds = array<i64: 1>, scalar_prefetch = 0 : i64, scratch_operands = 0 : i64, tpu.core_type = #tpu.core_type<tc>, window_params = [{transform_indices = @transform_0, window_bounds = array<i64: 16, 32>}, {pipeline_mode = #tpu.pipeline_mode<synchronous>, transform_indices = @transform_1, window_bounds = array<i64: 32, 128>}, {pipeline_mode = #tpu.pipeline_mode<synchronous>, transform_indices = @transform_2, window_bounds = array<i64: 1, 128>}, {pipeline_mode = #tpu.pipeline_mode<synchronous>, transform_indices = @transform_3, window_bounds = array<i64: 128, 32>}, {pipeline_mode = #tpu.pipeline_mode<synchronous>, transform_indices = @transform_4, window_bounds = array<i64: 1, 32>}, {pipeline_mode = #tpu.pipeline_mode<synchronous>, transform_indices = @transform_5, window_bounds = array<i64: 1, 32>}, {pipeline_mode = #tpu.pipeline_mode<synchronous>, transform_indices = @transform_6, window_bounds = array<i64: 1, 32>}, {transform_indices = @transform_7, window_bounds = array<i64: 16, 32>}]} {
    %c0 = arith.constant 0 : index
    %c0_0 = arith.constant 0 : index
    %0 = vector.load %arg1[%c0, %c0_0] : memref<16x32xf32, #tpu.memory_space<vmem>>, vector<16x32xf32>
    %c0_1 = arith.constant 0 : index
    %c0_2 = arith.constant 0 : index
    %1 = vector.load %arg2[%c0_1, %c0_2] : memref<32x128xf32, #tpu.memory_space<vmem>>, vector<32x128xf32>
    %cst = arith.constant dense<0.000000e+00> : vector<16x128xf32>
    %2 = tpu.matmul %0, %1, %cst {dimension_numbers = #tpu.dot_dimension_numbers<[1], [0], [0], [1], [0, 0, 1, 1], [], []>} : vector<16x32xf32>, vector<32x128xf32>, vector<16x128xf32> -> vector<16x128xf32>
    %c0_3 = arith.constant 0 : index
    %c0_4 = arith.constant 0 : index
    %3 = vector.load %arg3[%c0_3, %c0_4] : memref<1x128xf32, #tpu.memory_space<vmem>>, vector<1x128xf32>
    %4 = vector.broadcast %3 : vector<1x128xf32> to vector<16x128xf32>
    %5 = arith.addf %2, %4 : vector<16x128xf32>
    %cst_5 = arith.constant 0.000000e+00 : f32
    %6 = vector.broadcast %cst_5 : f32 to vector<16x128xf32>
    %7 = arith.maximumf %5, %6 : vector<16x128xf32>
    %c0_6 = arith.constant 0 : index
    %c0_7 = arith.constant 0 : index
    %8 = vector.load %arg4[%c0_6, %c0_7] : memref<128x32xf32, #tpu.memory_space<vmem>>, vector<128x32xf32>
    %cst_8 = arith.constant dense<0.000000e+00> : vector<16x32xf32>
    %9 = tpu.matmul %7, %8, %cst_8 {dimension_numbers = #tpu.dot_dimension_numbers<[1], [0], [0], [1], [0, 0, 1, 1], [], []>} : vector<16x128xf32>, vector<128x32xf32>, vector<16x32xf32> -> vector<16x32xf32>
    %c0_9 = arith.constant 0 : index
    %c0_10 = arith.constant 0 : index
    %10 = vector.load %arg5[%c0_9, %c0_10] : memref<1x32xf32, #tpu.memory_space<vmem>>, vector<1x32xf32>
    %11 = vector.broadcast %10 : vector<1x32xf32> to vector<16x32xf32>
    %12 = arith.addf %9, %11 : vector<16x32xf32>
    %13 = arith.addf %12, %12 : vector<16x32xf32>
    %cst_11 = arith.constant dense<0.000000e+00> : vector<16xf32>
    %14 = vector.multi_reduction <add>, %13, %cst_11 [1] : vector<16x32xf32> to vector<16xf32>
    %15 = vector.shape_cast %14 : vector<16xf32> to vector<16x1xf32>
    %cst_12 = arith.constant 3.200000e+01 : f32
    %16 = vector.broadcast %cst_12 : f32 to vector<16x1xf32>
    %17 = arith.divf %15, %16 : vector<16x1xf32>
    %18 = vector.broadcast %17 : vector<16x1xf32> to vector<16x32xf32>
    %19 = arith.subf %13, %18 : vector<16x32xf32>
    %20 = arith.mulf %19, %19 : vector<16x32xf32>
    %cst_13 = arith.constant dense<0.000000e+00> : vector<16xf32>
    %21 = vector.multi_reduction <add>, %20, %cst_13 [1] : vector<16x32xf32> to vector<16xf32>
    %22 = vector.shape_cast %21 : vector<16xf32> to vector<16x1xf32>
    %cst_14 = arith.constant 3.200000e+01 : f32
    %23 = vector.broadcast %cst_14 : f32 to vector<16x1xf32>
    %24 = arith.divf %22, %23 : vector<16x1xf32>
    %25 = vector.broadcast %17 : vector<16x1xf32> to vector<16x32xf32>
    %26 = arith.subf %13, %25 : vector<16x32xf32>
    %cst_15 = arith.constant 9.99999974E-6 : f32
    %27 = vector.broadcast %cst_15 : f32 to vector<16x1xf32>
    %28 = arith.addf %24, %27 : vector<16x1xf32>
    %29 = math.rsqrt %28 : vector<16x1xf32>
    %30 = vector.broadcast %29 : vector<16x1xf32> to vector<16x32xf32>
    %31 = arith.mulf %26, %30 : vector<16x32xf32>
    %c0_16 = arith.constant 0 : index
    %c0_17 = arith.constant 0 : index
    %32 = vector.load %arg6[%c0_16, %c0_17] : memref<1x32xf32, #tpu.memory_space<vmem>>, vector<1x32xf32>
    %33 = vector.broadcast %32 : vector<1x32xf32> to vector<16x32xf32>
    %34 = arith.mulf %31, %33 : vector<16x32xf32>
    %c0_18 = arith.constant 0 : index
    %c0_19 = arith.constant 0 : index
    %35 = vector.load %arg7[%c0_18, %c0_19] : memref<1x32xf32, #tpu.memory_space<vmem>>, vector<1x32xf32>
    %36 = vector.broadcast %35 : vector<1x32xf32> to vector<16x32xf32>
    %37 = arith.addf %34, %36 : vector<16x32xf32>
    %c0_20 = arith.constant 0 : index
    %c0_21 = arith.constant 0 : index
    %38 = vector.load %arg8[%c0_20, %c0_21] : memref<16x32xf32, #tpu.memory_space<vmem>>, vector<16x32xf32>
    tpu.vector_store %arg8[%c0_20, %c0_21], %37 {strides = array<i32>} : memref<16x32xf32, #tpu.memory_space<vmem>>, vector<16x32xf32>,
    return
  }
  func.func @transform_0(%arg0: i32) -> (i32, i32) {
    %c0_i32 = arith.constant 0 : i32
    %c0_i32_0 = arith.constant 0 : i32
    return %arg0, %c0_i32 : i32, i32
  }
  func.func @transform_1(%arg0: i32) -> (i32, i32) {
    %c0_i32 = arith.constant 0 : i32
    %c0_i32_0 = arith.constant 0 : i32
    %c0_i32_1 = arith.constant 0 : i32
    return %c0_i32, %c0_i32_0 : i32, i32
  }
  func.func @transform_2(%arg0: i32) -> (i32, i32) {
    %c0_i32 = arith.constant 0 : i32
    %c0_i32_0 = arith.constant 0 : i32
    %c0_i32_1 = arith.constant 0 : i32
    return %c0_i32, %c0_i32_0 : i32, i32
  }
  func.func @transform_3(%arg0: i32) -> (i32, i32) {
    %c0_i32 = arith.constant 0 : i32
    %c0_i32_0 = arith.constant 0 : i32
    %c0_i32_1 = arith.constant 0 : i32
    return %c0_i32, %c0_i32_0 : i32, i32
  }
  func.func @transform_4(%arg0: i32) -> (i32, i32) {
    %c0_i32 = arith.constant 0 : i32
    %c0_i32_0 = arith.constant 0 : i32
    %c0_i32_1 = arith.constant 0 : i32
    return %c0_i32, %c0_i32_0 : i32, i32
  }
  func.func @transform_5(%arg0: i32) -> (i32, i32) {
    %c0_i32 = arith.constant 0 : i32
    %c0_i32_0 = arith.constant 0 : i32
    %c0_i32_1 = arith.constant 0 : i32
    return %c0_i32, %c0_i32_0 : i32, i32
  }
  func.func @transform_6(%arg0: i32) -> (i32, i32) {
    %c0_i32 = arith.constant 0 : i32
    %c0_i32_0 = arith.constant 0 : i32
    %c0_i32_1 = arith.constant 0 : i32
    return %c0_i32, %c0_i32_0 : i32, i32
  }
  func.func @transform_7(%arg0: i32) -> (i32, i32) {
    %c0_i32 = arith.constant 0 : i32
    %c0_i32_0 = arith.constant 0 : i32
    return %arg0, %c0_i32 : i32, i32
  }
}

module attributes {stable_mosaic.version = 11 : i64} {
  func.func @_linear_kernel(%arg0: i32, %arg1: memref<16x32xf32, #tpu.memory_space<vmem>>, %arg2: memref<32x128xf32, #tpu.memory_space<vmem>>, %arg3: memref<1x128xf32, #tpu.memory_space<vmem>>, %arg4: memref<16x128xf32, #tpu.memory_space<vmem>>) attributes {dimension_semantics = [#tpu.dimension_semantics<parallel>], iteration_bounds = array<i64: 1>, scalar_prefetch = 0 : i64, scratch_operands = 0 : i64, tpu.core_type = #tpu.core_type<tc>, window_params = [{transform_indices = @transform_0, window_bounds = array<i64: 16, 32>}, {pipeline_mode = #tpu.pipeline_mode<synchronous>, transform_indices = @transform_1, window_bounds = array<i64: 32, 128>}, {pipeline_mode = #tpu.pipeline_mode<synchronous>, transform_indices = @transform_2, window_bounds = array<i64: 1, 128>}, {transform_indices = @transform_3, window_bounds = array<i64: 16, 128>}]} {
    %c0 = arith.constant 0 : index
    %c0_0 = arith.constant 0 : index
    %0 = vector.load %arg1[%c0, %c0_0] : memref<16x32xf32, #tpu.memory_space<vmem>>, vector<16x32xf32>
    %c0_1 = arith.constant 0 : index
    %c0_2 = arith.constant 0 : index
    %1 = vector.load %arg2[%c0_1, %c0_2] : memref<32x128xf32, #tpu.memory_space<vmem>>, vector<32x128xf32>
    %cst = arith.constant dense<0.000000e+00> : vector<16x128xf32>
    %2 = tpu.matmul %0, %1, %cst {dimension_numbers = #tpu.dot_dimension_numbers<[1], [0], [0], [1], [0, 0, 1, 1], [], []>} : vector<16x32xf32>, vector<32x128xf32>, vector<16x128xf32> -> vector<16x128xf32>
    %c0_3 = arith.constant 0 : index
    %c0_4 = arith.constant 0 : index
    %3 = vector.load %arg3[%c0_3, %c0_4] : memref<1x128xf32, #tpu.memory_space<vmem>>, vector<1x128xf32>
    %4 = vector.broadcast %3 : vector<1x128xf32> to vector<16x128xf32>
    %5 = arith.addf %2, %4 : vector<16x128xf32>
    %c0_5 = arith.constant 0 : index
    %c0_6 = arith.constant 0 : index
    %6 = vector.load %arg4[%c0_5, %c0_6] : memref<16x128xf32, #tpu.memory_space<vmem>>, vector<16x128xf32>
    tpu.vector_store %arg4[%c0_5, %c0_6], %5 {strides = array<i32>} : memref<16x128xf32, #tpu.memory_space<vmem>>, vector<16x128xf32>,
    return
  }
  func.func @transform_0(%arg0: i32) -> (i32, i32) {
    %c0_i32 = arith.constant 0 : i32
    %c0_i32_0 = arith.constant 0 : i32
    return %arg0, %c0_i32 : i32, i32
  }
  func.func @transform_1(%arg0: i32) -> (i32, i32) {
    %c0_i32 = arith.constant 0 : i32
    %c0_i32_0 = arith.constant 0 : i32
    %c0_i32_1 = arith.constant 0 : i32
    return %c0_i32, %c0_i32_0 : i32, i32
  }
  func.func @transform_2(%arg0: i32) -> (i32, i32) {
    %c0_i32 = arith.constant 0 : i32
    %c0_i32_0 = arith.constant 0 : i32
    %c0_i32_1 = arith.constant 0 : i32
    return %c0_i32, %c0_i32_0 : i32, i32
  }
  func.func @transform_3(%arg0: i32) -> (i32, i32) {
    %c0_i32 = arith.constant 0 : i32
    %c0_i32_0 = arith.constant 0 : i32
    return %arg0, %c0_i32 : i32, i32
  }
}

</mosaic_0001>

<llo_original>
// kernel: decoder.17
$region0: #{decoder.17}
  #allocation0 [shape = 'u32[]', space=smem, size = 0x4, offset = 0x4, fixed_abs, tag = 'smem constant byte address 0x4 - core index']
  #allocation1 [shape = 'u32[144,128]{1,0:T(1,128)}', space=vmem, size = 0x12000, scoped, tag = 'internal scratch']
  %s0 = inlined_call_operand.hbm [shape: f32[16,32], index: 0, kind: input, shape index: {}]
  %s1 = inlined_call_operand.vmem [shape: f32[32,96], index: 1, kind: input, shape index: {}]
  %s2 = inlined_call_operand.vmem [shape: f32[1,96], index: 2, kind: input, shape index: {}]
  %s3 = inlined_call_operand.vmem [shape: f32[16,96], index: 3, kind: output, shape index: {}]
  %s4 = sld [smem:[#allocation0]]
  $region26: #{decoder.17} parent=0
    _
  %s6 = ssub.s32 1, %s4
  %s7 = scalar_select 0, %s6, %s4
  $region1: #{decoder.17} parent=0
    #allocation2 [shape = 'u8[8192]{0}', space=vmem, size = 0x2000, scoped, tag = 'input window, operand 0, single buffered']
    #allocation3 [shape = 's32[1]{0}', space=sflag, size = 0x4, scoped, tag = 'scoped memory for decoder.17']
    %8 = vsyncpa [#allocation3], 0
    // Predicated region
    $region2: #{decoder.17} parent=1 // pred_check
      _
    $region3: #{decoder.17} parent=1 // pred_check_branch
      %10 = sbr.rel (0) target = $region5
    $region4: #{decoder.17} parent=1 // pred_region
      %s12 = ssub.s32 256, 256
      %13 = vsyncadd [#allocation3], %s12
      %s14 = sshll.u32 [#allocation2], 4
      %s15 = int_to_ptr.vmem [resolvable:$true] %s14
      %20 = dma.hbm_to_vmem [thread:$0]  %s0, 256, %s15, [#allocation3], 128, 128, 8
    $region5: #{decoder.17} parent=1 // pred_fallthru
      _
    // Predicated region
    $region6: #{decoder.17} parent=1 // pred_check
      _
    $region7: #{decoder.17} parent=1 // pred_check_branch
      %22 = sbr.rel (0) target = $region9
    $region8: #{decoder.17} parent=1 // pred_region
      _
    $region9: #{decoder.17} parent=1 // pred_fallthru
      _
    // Predicated region
    $region10: #{decoder.17} parent=1 // pred_check
      _
    $region11: #{decoder.17} parent=1 // pred_check_branch
      %24 = sbr.rel (0) target = $region13
    $region12: #{decoder.17} parent=1 // pred_region
      _
    $region13: #{decoder.17} parent=1 // pred_fallthru
      _
    // Predicated region
    $region14: #{decoder.17} parent=1 // pred_check
      _
    $region15: #{decoder.17} parent=1 // pred_check_branch
      %26 = sbr.rel (0) target = $region17
    $region16: #{decoder.17} parent=1 // pred_region
      %27 = dma.done [#allocation3], 256
    $region17: #{decoder.17} parent=1 // pred_fallthru
      _
    %v28 = vld [vmem:[#allocation2] sm:$0xff]
    %v29 = vld [vmem:[#allocation2 + $0x8] sm:$0xff]
    %v30 = vld [vmem:[%s1] sm:$0xff]
    %v31 = vld [vmem:[%s1 + $0x8] sm:$0xff]
    %v32 = vld [vmem:[%s1 + $0x10] sm:$0xff]
    %v33 = vld [vmem:[%s1 + $0x18] sm:$0xff]
    %v34 = vld [vmem:[%s2] sm:$0x1]
    %v36 = vlaneseq
    %v37 = vshrl.u32 %v36, 7
    %v38 = vsub.s32 0, %v37
    %v39 = vrot.slane %v34, %v38
    %vm41 = vcmask 261120
    %v43 = vsel %vm41, %v28, 0
    %v46 = vsel %vm41, %v29, 0
    %48 = vmatprep.subr.mxu0 0.0
    %49 = vmatpush1.msra.mxu0 %v30
    %50 = vmatprep.subr.mxu0 0.0
    %51 = vmatpush1.msra.mxu0 %v31
    %52 = vmatprep.subr.mxu0 0.0
    %53 = vmatpush1.msra.mxu0 %v32
    %54 = vmatprep.subr.mxu0 0.0
    %55 = vmatpush1.msra.mxu0 %v33
    %56 = vmatprep.subr.mxu0 0.0
    %57 = vmatpush1.msra.mxu0 0.0
    %58 = vmatprep.subr.mxu0 0.0
    %59 = vmatpush1.msra.mxu0 0.0
    %60 = vmatprep.subr.mxu0 0.0
    %61 = vmatpush1.msra.mxu0 0.0
    %62 = vmatprep.subr.mxu0 0.0
    %63 = vmatpush1.msra.mxu0 0.0
    %64 = vmatprep.subr.mxu0 0.0
    %65 = vmatpush1.msra.mxu0 0.0
    %66 = vmatprep.subr.mxu0 0.0
    %67 = vmatpush1.msra.mxu0 0.0
    %68 = vmatprep.subr.mxu0 0.0
    %69 = vmatpush1.msra.mxu0 0.0
    %70 = vmatprep.subr.mxu0 0.0
    %71 = vmatpush1.msra.mxu0 0.0
    %72 = vmatprep.subr.mxu0 0.0
    %73 = vmatpush1.msra.mxu0 0.0
    %74 = vmatprep.subr.mxu0 0.0
    %75 = vmatpush1.msra.mxu0 0.0
    %76 = vmatprep.subr.mxu0 0.0
    %77 = vmatpush1.msra.mxu0 0.0
    %78 = vmatprep.subr.mxu0 0.0
    %79 = vmatpush1.msra.mxu0 0.0
    %80 = vmatprep.subr.mxu0 0.0
    %81 = vmatpush1.msra.mxu0 0.0
    %82 = vmatprep.subr.mxu0 0.0
    %83 = vmatpush1.msra.mxu0 0.0
    %84 = vmatprep.subr.mxu0 0.0
    %85 = vmatpush1.msra.mxu0 0.0
    %86 = vmatprep.subr.mxu0 0.0
    %87 = vmatpush1.msra.mxu0 0.0
    %88 = vmatprep.subr.mxu0 0.0
    %89 = vmatpush1.msra.mxu0 0.0
    %90 = vmatprep.subr.mxu0 0.0
    %91 = vmatpush1.msra.mxu0 0.0
    %92 = vmatprep.subr.mxu0 0.0
    %93 = vmatpush1.msra.mxu0 0.0
    %94 = vmatprep.subr.mxu0 0.0
    %95 = vmatpush1.msra.mxu0 0.0
    %96 = vmatprep.subr.mxu0 0.0
    %97 = vmatpush1.msra.mxu0 0.0
    %98 = vmatprep.subr.mxu0 0.0
    %99 = vmatpush1.msra.mxu0 0.0
    %100 = vmatprep.subr.mxu0 0.0
    %101 = vmatpush1.msra.mxu0 0.0
    %102 = vmatprep.subr.mxu0 0.0
    %103 = vmatpush1.msra.mxu0 0.0
    %104 = vmatprep.subr.mxu0 0.0
    %105 = vmatpush1.msra.mxu0 0.0
    %106 = vmatprep.subr.mxu0 0.0
    %107 = vmatpush1.msra.mxu0 0.0
    %108 = vmatprep.subr.mxu0 0.0
    %109 = vmatpush1.msra.mxu0 0.0
    %110 = vmatprep.subr.mxu0 0.0
    %111 = vmatpush1.msra.mxu0 0.0
    %112 = vmatprep.mubr.f32.mxu0 0.0
    %113 = vmatmul.mubr.f32.gmra.mrb[0].mxu0 %v43
    %v114 = vpop.f32.mrb[0].mxu0
    %v115 = vadd.f32 %v39, %v114
    %v116 = vpop.f32.mrb[0].mxu0
    %117 = vmatprep.mubr.f32.mxu0 0.0
    %118 = vmatmul.mubr.f32.gmra.mrb[0].mxu0 %v46
    %v119 = vpop.f32.mrb[0].mxu0
    %v120 = vadd.f32 %v39, %v119
    %v121 = vpop.f32.mrb[0].mxu0
    %122 = vdwg.mxu0
    %vm123 = vcmask 785408
    %124 = vst.msk [vmem:[%s3] sm:$0xff] %vm123, %v115
    %125 = vst.msk [vmem:[%s3 + $0x8] sm:$0xff] %vm123, %v120
    // Predicated region
    $region18: #{decoder.17} parent=1 // pred_check
      _
    $region19: #{decoder.17} parent=1 // pred_check_branch
      %127 = sbr.rel (0) target = $region21
    $region20: #{decoder.17} parent=1 // pred_region
      _
    $region21: #{decoder.17} parent=1 // pred_fallthru
      _
    // Predicated region
    $region22: #{decoder.17} parent=1 // pred_check
      _
    $region23: #{decoder.17} parent=1 // pred_check_branch
      %129 = sbr.rel (0) target = $region25
    $region24: #{decoder.17} parent=1 // pred_region
      _
    $region25: #{decoder.17} parent=1 // pred_fallthru
      _
    %130 = vsyncpa [#allocation3], 1

// kernel: decoder.21
$region0: #{decoder.21}
  #allocation0 [shape = 'u32[]', space=smem, size = 0x4, offset = 0x4, fixed_abs, tag = 'smem constant byte address 0x4 - core index']
  #allocation1 [shape = 'u32[144,128]{1,0:T(1,128)}', space=vmem, size = 0x12000, scoped, tag = 'internal scratch']
  %s0 = inlined_call_operand.vmem [shape: f32[16,32], index: 0, kind: input, shape index: {}]
  %s1 = inlined_call_operand.vmem [shape: f32[32,64], index: 1, kind: input, shape index: {}]
  %s2 = inlined_call_operand.vmem [shape: f32[1,64], index: 2, kind: input, shape index: {}]
  %s3 = inlined_call_operand.vmem [shape: f32[16,64], index: 3, kind: output, shape index: {}]
  %s4 = sld [smem:[#allocation0]]
  $region22: #{decoder.21} parent=0
    _
  %s6 = ssub.s32 1, %s4
  %s7 = scalar_select 0, %s6, %s4
  // Predicated region
  $region2: #{decoder.21} parent=0 // pred_check
    _
  $region3: #{decoder.21} parent=0 // pred_check_branch
    %9 = sbr.rel (0) target = $region5
  $region4: #{decoder.21} parent=0 // pred_region
    _
  $region5: #{decoder.21} parent=0 // pred_fallthru
    _
  // Predicated region
  $region6: #{decoder.21} parent=0 // pred_check
    _
  $region7: #{decoder.21} parent=0 // pred_check_branch
    %11 = sbr.rel (0) target = $region9
  $region8: #{decoder.21} parent=0 // pred_region
    _
  $region9: #{decoder.21} parent=0 // pred_fallthru
    _
  // Predicated region
  $region10: #{decoder.21} parent=0 // pred_check
    _
  $region11: #{decoder.21} parent=0 // pred_check_branch
    %13 = sbr.rel (0) target = $region13
  $region12: #{decoder.21} parent=0 // pred_region
    _
  $region13: #{decoder.21} parent=0 // pred_fallthru
    _
  %v14 = vld [vmem:[%s0] sm:$0xff]
  %v15 = vld [vmem:[%s0 + $0x8] sm:$0xff]
  %v16 = vld [vmem:[%s1] sm:$0xff]
  %v17 = vld [vmem:[%s1 + $0x8] sm:$0xff]
  %v18 = vld [vmem:[%s1 + $0x10] sm:$0xff]
  %v19 = vld [vmem:[%s1 + $0x18] sm:$0xff]
  %v20 = vld [vmem:[%s2] sm:$0x1]
  %v22 = vlaneseq
  %v23 = vshrl.u32 %v22, 7
  %v24 = vsub.s32 0, %v23
  %v25 = vrot.slane %v20, %v24
  %vm27 = vcmask 261120
  %v29 = vsel %vm27, %v14, 0
  %v32 = vsel %vm27, %v15, 0
  %34 = vmatprep.subr.mxu0 0.0
  %35 = vmatpush1.msra.mxu0 %v16
  %36 = vmatprep.subr.mxu0 0.0
  %37 = vmatpush1.msra.mxu0 %v17
  %38 = vmatprep.subr.mxu0 0.0
  %39 = vmatpush1.msra.mxu0 %v18
  %40 = vmatprep.subr.mxu0 0.0
  %41 = vmatpush1.msra.mxu0 %v19
  %42 = vmatprep.subr.mxu0 0.0
  %43 = vmatpush1.msra.mxu0 0.0
  %44 = vmatprep.subr.mxu0 0.0
  %45 = vmatpush1.msra.mxu0 0.0
  %46 = vmatprep.subr.mxu0 0.0
  %47 = vmatpush1.msra.mxu0 0.0
  %48 = vmatprep.subr.mxu0 0.0
  %49 = vmatpush1.msra.mxu0 0.0
  %50 = vmatprep.subr.mxu0 0.0
  %51 = vmatpush1.msra.mxu0 0.0
  %52 = vmatprep.subr.mxu0 0.0
  %53 = vmatpush1.msra.mxu0 0.0
  %54 = vmatprep.subr.mxu0 0.0
  %55 = vmatpush1.msra.mxu0 0.0
  %56 = vmatprep.subr.mxu0 0.0
  %57 = vmatpush1.msra.mxu0 0.0
  %58 = vmatprep.subr.mxu0 0.0
  %59 = vmatpush1.msra.mxu0 0.0
  %60 = vmatprep.subr.mxu0 0.0
  %61 = vmatpush1.msra.mxu0 0.0
  %62 = vmatprep.subr.mxu0 0.0
  %63 = vmatpush1.msra.mxu0 0.0
  %64 = vmatprep.subr.mxu0 0.0
  %65 = vmatpush1.msra.mxu0 0.0
  %66 = vmatprep.subr.mxu0 0.0
  %67 = vmatpush1.msra.mxu0 0.0
  %68 = vmatprep.subr.mxu0 0.0
  %69 = vmatpush1.msra.mxu0 0.0
  %70 = vmatprep.subr.mxu0 0.0
  %71 = vmatpush1.msra.mxu0 0.0
  %72 = vmatprep.subr.mxu0 0.0
  %73 = vmatpush1.msra.mxu0 0.0
  %74 = vmatprep.subr.mxu0 0.0
  %75 = vmatpush1.msra.mxu0 0.0
  %76 = vmatprep.subr.mxu0 0.0
  %77 = vmatpush1.msra.mxu0 0.0
  %78 = vmatprep.subr.mxu0 0.0
  %79 = vmatpush1.msra.mxu0 0.0
  %80 = vmatprep.subr.mxu0 0.0
  %81 = vmatpush1.msra.mxu0 0.0
  %82 = vmatprep.subr.mxu0 0.0
  %83 = vmatpush1.msra.mxu0 0.0
  %84 = vmatprep.subr.mxu0 0.0
  %85 = vmatpush1.msra.mxu0 0.0
  %86 = vmatprep.subr.mxu0 0.0
  %87 = vmatpush1.msra.mxu0 0.0
  %88 = vmatprep.subr.mxu0 0.0
  %89 = vmatpush1.msra.mxu0 0.0
  %90 = vmatprep.subr.mxu0 0.0
  %91 = vmatpush1.msra.mxu0 0.0
  %92 = vmatprep.subr.mxu0 0.0
  %93 = vmatpush1.msra.mxu0 0.0
  %94 = vmatprep.subr.mxu0 0.0
  %95 = vmatpush1.msra.mxu0 0.0
  %96 = vmatprep.subr.mxu0 0.0
  %97 = vmatpush1.msra.mxu0 0.0
  %98 = vmatprep.mubr.f32.mxu0 0.0
  %99 = vmatmul.mubr.f32.gmra.mrb[0].mxu0 %v29
  %v100 = vpop.f32.mrb[0].mxu0
  %v101 = vadd.f32 %v25, %v100
  %v102 = vpop.f32.mrb[0].mxu0
  %103 = vmatprep.mubr.f32.mxu0 0.0
  %104 = vmatmul.mubr.f32.gmra.mrb[0].mxu0 %v32
  %v105 = vpop.f32.mrb[0].mxu0
  %v106 = vadd.f32 %v25, %v105
  %v107 = vpop.f32.mrb[0].mxu0
  %108 = vdwg.mxu0
  %vm109 = vcmask 523264
  %110 = vst.msk [vmem:[%s3] sm:$0xff] %vm109, %v101
  %111 = vst.msk [vmem:[%s3 + $0x8] sm:$0xff] %vm109, %v106
  // Predicated region
  $region14: #{decoder.21} parent=0 // pred_check
    _
  $region15: #{decoder.21} parent=0 // pred_check_branch
    %113 = sbr.rel (0) target = $region17
  $region16: #{decoder.21} parent=0 // pred_region
    _
  $region17: #{decoder.21} parent=0 // pred_fallthru
    _
  // Predicated region
  $region18: #{decoder.21} parent=0 // pred_check
    _
  $region19: #{decoder.21} parent=0 // pred_check_branch
    %115 = sbr.rel (0) target = $region21
  $region20: #{decoder.21} parent=0 // pred_region
    _
  $region21: #{decoder.21} parent=0 // pred_fallthru
    _

// kernel: decoder.19
$region0: #{decoder.19}
  #allocation0 [shape = 'u32[]', space=smem, size = 0x4, offset = 0x4, fixed_abs, tag = 'smem constant byte address 0x4 - core index']
  #allocation1 [shape = 'u32[144,128]{1,0:T(1,128)}', space=vmem, size = 0x12000, scoped, tag = 'internal scratch']
  %s0 = inlined_call_operand.vmem [shape: f32[16,32], index: 0, kind: input, shape index: {}]
  %s1 = inlined_call_operand.vmem [shape: f32[32,32], index: 1, kind: input, shape index: {}]
  %s2 = inlined_call_operand.vmem [shape: f32[1,32], index: 2, kind: input, shape index: {}]
  %s3 = inlined_call_operand.vmem [shape: f32[16,32], index: 3, kind: output, shape index: {}]
  %s4 = sld [smem:[#allocation0]]
  $region22: #{decoder.19} parent=0
    _
  %s6 = ssub.s32 1, %s4
  %s7 = scalar_select 0, %s6, %s4
  // Predicated region
  $region2: #{decoder.19} parent=0 // pred_check
    _
  $region3: #{decoder.19} parent=0 // pred_check_branch
    %9 = sbr.rel (0) target = $region5
  $region4: #{decoder.19} parent=0 // pred_region
    _
  $region5: #{decoder.19} parent=0 // pred_fallthru
    _
  // Predicated region
  $region6: #{decoder.19} parent=0 // pred_check
    _
  $region7: #{decoder.19} parent=0 // pred_check_branch
    %11 = sbr.rel (0) target = $region9
  $region8: #{decoder.19} parent=0 // pred_region
    _
  $region9: #{decoder.19} parent=0 // pred_fallthru
    _
  // Predicated region
  $region10: #{decoder.19} parent=0 // pred_check
    _
  $region11: #{decoder.19} parent=0 // pred_check_branch
    %13 = sbr.rel (0) target = $region13
  $region12: #{decoder.19} parent=0 // pred_region
    _
  $region13: #{decoder.19} parent=0 // pred_fallthru
    _
  %v14 = vld [vmem:[%s0] sm:$0xff]
  %v15 = vld [vmem:[%s0 + $0x8] sm:$0xff]
  %v16 = vld [vmem:[%s1] sm:$0xff]
  %v17 = vld [vmem:[%s1 + $0x8] sm:$0xff]
  %v18 = vld [vmem:[%s1 + $0x10] sm:$0xff]
  %v19 = vld [vmem:[%s1 + $0x18] sm:$0xff]
  %v20 = vld [vmem:[%s2] sm:$0x1]
  %v22 = vlaneseq
  %v23 = vshrl.u32 %v22, 7
  %v24 = vsub.s32 0, %v23
  %v25 = vrot.slane %v20, %v24
  %vm27 = vcmask 261120
  %v29 = vsel %vm27, %v14, 0
  %v32 = vsel %vm27, %v15, 0
  %34 = vmatprep.subr.mxu0 0.0
  %35 = vmatpush1.msra.mxu0 %v16
  %36 = vmatprep.subr.mxu0 0.0
  %37 = vmatpush1.msra.mxu0 %v17
  %38 = vmatprep.subr.mxu0 0.0
  %39 = vmatpush1.msra.mxu0 %v18
  %40 = vmatprep.subr.mxu0 0.0
  %41 = vmatpush1.msra.mxu0 %v19
  %42 = vmatprep.subr.mxu0 0.0
  %43 = vmatpush1.msra.mxu0 0.0
  %44 = vmatprep.subr.mxu0 0.0
  %45 = vmatpush1.msra.mxu0 0.0
  %46 = vmatprep.subr.mxu0 0.0
  %47 = vmatpush1.msra.mxu0 0.0
  %48 = vmatprep.subr.mxu0 0.0
  %49 = vmatpush1.msra.mxu0 0.0
  %50 = vmatprep.subr.mxu0 0.0
  %51 = vmatpush1.msra.mxu0 0.0
  %52 = vmatprep.subr.mxu0 0.0
  %53 = vmatpush1.msra.mxu0 0.0
  %54 = vmatprep.subr.mxu0 0.0
  %55 = vmatpush1.msra.mxu0 0.0
  %56 = vmatprep.subr.mxu0 0.0
  %57 = vmatpush1.msra.mxu0 0.0
  %58 = vmatprep.subr.mxu0 0.0
  %59 = vmatpush1.msra.mxu0 0.0
  %60 = vmatprep.subr.mxu0 0.0
  %61 = vmatpush1.msra.mxu0 0.0
  %62 = vmatprep.subr.mxu0 0.0
  %63 = vmatpush1.msra.mxu0 0.0
  %64 = vmatprep.subr.mxu0 0.0
  %65 = vmatpush1.msra.mxu0 0.0
  %66 = vmatprep.subr.mxu0 0.0
  %67 = vmatpush1.msra.mxu0 0.0
  %68 = vmatprep.subr.mxu0 0.0
  %69 = vmatpush1.msra.mxu0 0.0
  %70 = vmatprep.subr.mxu0 0.0
  %71 = vmatpush1.msra.mxu0 0.0
  %72 = vmatprep.subr.mxu0 0.0
  %73 = vmatpush1.msra.mxu0 0.0
  %74 = vmatprep.subr.mxu0 0.0
  %75 = vmatpush1.msra.mxu0 0.0
  %76 = vmatprep.subr.mxu0 0.0
  %77 = vmatpush1.msra.mxu0 0.0
  %78 = vmatprep.subr.mxu0 0.0
  %79 = vmatpush1.msra.mxu0 0.0
  %80 = vmatprep.subr.mxu0 0.0
  %81 = vmatpush1.msra.mxu0 0.0
  %82 = vmatprep.subr.mxu0 0.0
  %83 = vmatpush1.msra.mxu0 0.0
  %84 = vmatprep.subr.mxu0 0.0
  %85 = vmatpush1.msra.mxu0 0.0
  %86 = vmatprep.subr.mxu0 0.0
  %87 = vmatpush1.msra.mxu0 0.0
  %88 = vmatprep.subr.mxu0 0.0
  %89 = vmatpush1.msra.mxu0 0.0
  %90 = vmatprep.subr.mxu0 0.0
  %91 = vmatpush1.msra.mxu0 0.0
  %92 = vmatprep.subr.mxu0 0.0
  %93 = vmatpush1.msra.mxu0 0.0
  %94 = vmatprep.subr.mxu0 0.0
  %95 = vmatpush1.msra.mxu0 0.0
  %96 = vmatprep.subr.mxu0 0.0
  %97 = vmatpush1.msra.mxu0 0.0
  %98 = vmatprep.mubr.f32.mxu0 0.0
  %99 = vmatmul.mubr.f32.gmra.mrb[0].mxu0 %v29
  %v100 = vpop.f32.mrb[0].mxu0
  %v101 = vadd.f32 %v25, %v100
  %v102 = vpop.f32.mrb[0].mxu0
  %103 = vmatprep.mubr.f32.mxu0 0.0
  %104 = vmatmul.mubr.f32.gmra.mrb[0].mxu0 %v32
  %v105 = vpop.f32.mrb[0].mxu0
  %v106 = vadd.f32 %v25, %v105
  %v107 = vpop.f32.mrb[0].mxu0
  %108 = vdwg.mxu0
  %109 = vst.msk [vmem:[%s3] sm:$0xff] %vm27, %v101
  %110 = vst.msk [vmem:[%s3 + $0x8] sm:$0xff] %vm27, %v106
  // Predicated region
  $region14: #{decoder.19} parent=0 // pred_check
    _
  $region15: #{decoder.19} parent=0 // pred_check_branch
    %112 = sbr.rel (0) target = $region17
  $region16: #{decoder.19} parent=0 // pred_region
    _
  $region17: #{decoder.19} parent=0 // pred_fallthru
    _
  // Predicated region
  $region18: #{decoder.19} parent=0 // pred_check
    _
  $region19: #{decoder.19} parent=0 // pred_check_branch
    %114 = sbr.rel (0) target = $region21
  $region20: #{decoder.19} parent=0 // pred_region
    _
  $region21: #{decoder.19} parent=0 // pred_fallthru
    _

// kernel: decoder.18
$region0: #{decoder.18}
  #allocation0 [shape = 'u32[]', space=smem, size = 0x4, offset = 0x4, fixed_abs, tag = 'smem constant byte address 0x4 - core index']
  #allocation1 [shape = 'u32[144,128]{1,0:T(1,128)}', space=vmem, size = 0x12000, scoped, tag = 'internal scratch']
  %s0 = inlined_call_operand.vmem [shape: f32[2,8,96], index: 0, kind: input, shape index: {}]
  %s1 = inlined_call_operand.vmem [shape: f32[2,8,32], index: 1, kind: output, shape index: {}]
  %s2 = sld [smem:[#allocation0]]
  $region37: #{decoder.18} parent=0
    _
  %s4 = ssub.s32 1, %s2
  %s5 = scalar_select 0, %s4, %s2
  loop: start=0, step=1, limit=4
  $region2: #{decoder.18} parent=0 // loop_pre_header
    _
  $region3: #{decoder.18} parent=0 // loop_header
    %s7 = sphi 0, %s11
    %p8 = scmp.ge.s32.totalorder %s7, 4
    %s17 = sphi 0, %s19
    %s20 = sphi 0, %s17
    %s21 = sphi 0, %s20
    %s37 = sphi 0, %s21
    %s43 = sphi 0, %s45
    %s46 = sphi 0, %s43
    %s47 = sphi 0, %s46
    %s63 = sphi 0, %s47
  $region4: #{decoder.18} parent=0 // loop_header_branch
    %10 = sbr.rel (%p8) target = $region8
  $region5: #{decoder.18} parent=0 // loop_body
    %s12 = ssub.s32 %s7, 1
    %s13 = ssub.s32 %s7, 2
    %s14 = sadd.s32 %s7, 1
    %s15 = ssub.s32 %s7, %s14
    %p16 = scmp.eq.s32.totalorder %s15, 0
    %s18 = sadd.s32 %s17, 1
    %s19 = scalar_select %p16, %s17, %s18
    %p22 = pneg %p16
    %p23 = scmp.eq.s32.totalorder %s7, 1
    %p24 = por %p22, %p23
    %p25 = scmp.ne.s32.totalorder %s17, %s20
    %p26 = scmp.eq.s32.totalorder %s7, 0
    %p27 = por %p25, %p26
    %p28 = scmp.ne.s32.totalorder %s17, %s20
    %p29 = scmp.eq.s32.totalorder %s12, 1
    %p30 = por %p28, %p29
    %p31 = scmp.ne.s32.totalorder %s20, %s21
    %p32 = scmp.eq.s32.totalorder %s12, 0
    %p33 = por %p31, %p32
    %p34 = scmp.ne.s32.totalorder %s20, %s21
    %p35 = scmp.eq.s32.totalorder %s13, 1
    %p36 = por %p34, %p35
    %p38 = scmp.ne.s32.totalorder %s21, %s37
    %p39 = scmp.eq.s32.totalorder %s13, 0
    %p40 = por %p38, %p39
    %s41 = ssub.s32 %s7, %s14
    %p42 = scmp.eq.s32.totalorder %s41, 0
    %s44 = sadd.s32 %s43, 1
    %s45 = scalar_select %p42, %s43, %s44
    %p48 = pneg %p42
    %p49 = scmp.eq.s32.totalorder %s7, 1
    %p50 = por %p48, %p49
    %p51 = scmp.ne.s32.totalorder %s43, %s46
    %p52 = scmp.eq.s32.totalorder %s7, 0
    %p53 = por %p51, %p52
    %p54 = scmp.ne.s32.totalorder %s43, %s46
    %p55 = scmp.eq.s32.totalorder %s12, 1
    %p56 = por %p54, %p55
    %p57 = scmp.ne.s32.totalorder %s46, %s47
    %p58 = scmp.eq.s32.totalorder %s12, 0
    %p59 = por %p57, %p58
    %p60 = scmp.ne.s32.totalorder %s46, %s47
    %p61 = scmp.eq.s32.totalorder %s13, 1
    %p62 = por %p60, %p61
    %p64 = scmp.ne.s32.totalorder %s47, %s63
    %p65 = scmp.eq.s32.totalorder %s13, 0
    %p66 = por %p64, %p65
    %p67 = scmp.le.s32.totalorder 1, %s7
    %p68 = scmp.lt.s32.totalorder %s7, 3
    %p69 = pnand %p67, %p68
    %p70 = pneg %p69
    // Predicated region
    $region9: #{decoder.18} parent=5 // pred_check
      _
    $region10: #{decoder.18} parent=5 // pred_check_branch
      %72 = sbr.rel (%p69) target = $region12
    $region11: #{decoder.18} parent=5 // pred_region
      %s73 = ssub.s32 %s7, 1
    $region12: #{decoder.18} parent=5 // pred_fallthru
      _
    %p74 = scmp.lt.s32.totalorder %s7, 2
    // Predicated region
    $region13: #{decoder.18} parent=5 // pred_check
      %p75 = pneg %p74
    $region14: #{decoder.18} parent=5 // pred_check_branch
      %77 = sbr.rel (%p75) target = $region16
    $region15: #{decoder.18} parent=5 // pred_region
      // Predicated region
      $region17: #{decoder.18} parent=15 // pred_check
        %p78 = pneg %p27
      $region18: #{decoder.18} parent=15 // pred_check_branch
        %80 = sbr.rel (%p78) target = $region20
      $region19: #{decoder.18} parent=15 // pred_region
        %p81 = scmp.lt.s32.totalorder %s7, 1
        %s82 = scalar_select %p81, %s7, 1
        %s83 = smul.addr %s82, 8
        %s84 = scalar_lea.vmem %s0, %s83
      $region20: #{decoder.18} parent=15 // pred_fallthru
        _
    $region16: #{decoder.18} parent=5 // pred_fallthru
      _
    %p85 = scmp.le.s32.totalorder 1, %s7
    %p86 = scmp.lt.s32.totalorder %s7, 3
    %p87 = pnand %p85, %p86
    %p88 = pneg %p87
    // Predicated region
    $region21: #{decoder.18} parent=5 // pred_check
      _
    $region22: #{decoder.18} parent=5 // pred_check_branch
      %90 = sbr.rel (%p87) target = $region24
    $region23: #{decoder.18} parent=5 // pred_region
      %s91 = ssub.s32 %s7, 1
      %p92 = scmp.lt.s32.totalorder %s12, 1
      %s93 = scalar_select %p92, %s12, 1
      %s94 = smul.addr %s93, 8
      %s95 = scalar_lea.vmem %s0, %s94
      %p96 = pneg %p33
      %p97 = pneg %p30
      %p98 = pneg %p59
      %p99 = pneg %p56
      %p100 = scmp.lt.s32.totalorder %s12, 1
      %s101 = scalar_select %p100, %s12, 1
      %s102 = smul.addr %s101, 8
      %s103 = scalar_lea.vmem %s1, %s102
      %p104 = scmp.lt.s32.totalorder %s12, 1
      %s105 = scalar_select %p104, %s12, 1
      %s106 = smul.addr %s105, 8
      %s107 = scalar_lea.vmem %s0, %s106
      %p108 = scmp.lt.s32.totalorder %s12, 1
      %s109 = scalar_select %p108, %s12, 1
      %s110 = smul.addr %s109, 8
      %s111 = scalar_lea.vmem %s1, %s110
      %v112 = vld [vmem:[%s107] sm:$0xff]
      %114 = vrot.lane.b32.xlu0 %v112, 96
      %v115 = vpop.permute.xlu0 %114
      %vm116 = vcmask 64512
      %v117 = vsel %vm116, %v112, 0
      %v119 = vsel %vm116, %v115, 0
      %121 = vmatprep.subr.mxu0 0.0
      %122 = vmatpush1.xpose.msra.mxu0 %v119
      %123 = vmatprep.subr.mxu0 0.0
      %124 = vmatpush1.xpose.msra.mxu0 0.0
      %125 = vmatprep.subr.mxu0 0.0
      %126 = vmatpush1.xpose.msra.mxu0 0.0
      %127 = vmatprep.subr.mxu0 0.0
      %128 = vmatpush1.xpose.msra.mxu0 0.0
      %129 = vmatprep.subr.mxu0 0.0
      %130 = vmatpush1.xpose.msra.mxu0 0.0
      %131 = vmatprep.subr.mxu0 0.0
      %132 = vmatpush1.xpose.msra.mxu0 0.0
      %133 = vmatprep.subr.mxu0 0.0
      %134 = vmatpush1.xpose.msra.mxu0 0.0
      %135 = vmatprep.subr.mxu0 0.0
      %136 = vmatpush1.xpose.msra.mxu0 0.0
      %137 = vmatprep.subr.mxu0 0.0
      %138 = vmatpush1.xpose.msra.mxu0 0.0
      %139 = vmatprep.subr.mxu0 0.0
      %140 = vmatpush1.xpose.msra.mxu0 0.0
      %141 = vmatprep.subr.mxu0 0.0
      %142 = vmatpush1.xpose.msra.mxu0 0.0
      %143 = vmatprep.subr.mxu0 0.0
      %144 = vmatpush1.xpose.msra.mxu0 0.0
      %145 = vmatprep.subr.mxu0 0.0
      %146 = vmatpush1.xpose.msra.mxu0 0.0
      %147 = vmatprep.subr.mxu0 0.0
      %148 = vmatpush1.xpose.msra.mxu0 0.0
      %149 = vmatprep.subr.mxu0 0.0
      %150 = vmatpush1.xpose.msra.mxu0 0.0
      %151 = vmatprep.subr.mxu0 0.0
      %152 = vmatpush1.xpose.msra.mxu0 0.0
      %153 = vmatprep.subr.mxu0 0.0
      %154 = vmatpush1.xpose.msra.mxu0 0.0
      %155 = vmatprep.subr.mxu0 0.0
      %156 = vmatpush1.xpose.msra.mxu0 0.0
      %157 = vmatprep.subr.mxu0 0.0
      %158 = vmatpush1.xpose.msra.mxu0 0.0
      %159 = vmatprep.subr.mxu0 0.0
      %160 = vmatpush1.xpose.msra.mxu0 0.0
      %161 = vmatprep.subr.mxu0 0.0
      %162 = vmatpush1.xpose.msra.mxu0 0.0
      %163 = vmatprep.subr.mxu0 0.0
      %164 = vmatpush1.xpose.msra.mxu0 0.0
      %165 = vmatprep.subr.mxu0 0.0
      %166 = vmatpush1.xpose.msra.mxu0 0.0
      %167 = vmatprep.subr.mxu0 0.0
      %168 = vmatpush1.xpose.msra.mxu0 0.0
      %169 = vmatprep.subr.mxu0 0.0
      %170 = vmatpush1.xpose.msra.mxu0 0.0
      %171 = vmatprep.subr.mxu0 0.0
      %172 = vmatpush1.xpose.msra.mxu0 0.0
      %173 = vmatprep.subr.mxu0 0.0
      %174 = vmatpush1.xpose.msra.mxu0 0.0
      %175 = vmatprep.subr.mxu0 0.0
      %176 = vmatpush1.xpose.msra.mxu0 0.0
      %177 = vmatprep.subr.mxu0 0.0
      %178 = vmatpush1.xpose.msra.mxu0 0.0
      %179 = vmatprep.subr.mxu0 0.0
      %180 = vmatpush1.xpose.msra.mxu0 0.0
      %181 = vmatprep.subr.mxu0 0.0
      %182 = vmatpush1.xpose.msra.mxu0 0.0
      %183 = vmatprep.subr.mxu0 0.0
      %184 = vmatpush1.xpose.msra.mxu0 0.0
      %185 = vmatprep.mubr.f32.mxu0 0.0
      %186 = vmatmul.mubr.f32.gmra.mrb[0].mxu0 %v117
      %v187 = vpop.f32.mrb[0].mxu0
      %v188 = vadd.f32 0.0, %v187
      %v189 = vpop.f32.mrb[0].mxu0
      %190 = vdwg.mxu0
      %v191 = vmul.f32 %v188, 0.35355338
      %v192 = vsel %vm116, %v191, -inf
      %193 = vmax.xlane.f32.xlu0 %v192
      %v194 = vpop.xlane.xlu0 %193
      %v195 = vsub.f32 %v191, %v194
      %v196 = vmul.f32 %v195, 1.442695
      %v197 = vpow.pop %v196
      %v198 = vsel %vm116, %v197, 0.0
      %199 = vadd.xlane.f32.xlu0 %v198
      %v200 = vpop.xlane.xlu0 %199
      %201 = vrot.lane.b32.xlu0 %v112, 64
      %v202 = vpop.permute.xlu0 %201
      %v205 = vsel %vm116, %v197, 0
      %207 = vmatprep.subr.mxu0 0.0
      %208 = vmatpush1.msra.mxu0 %v202
      %209 = vmatprep.subr.mxu0 0.0
      %210 = vmatpush1.msra.mxu0 0.0
      %211 = vmatprep.subr.mxu0 0.0
      %212 = vmatpush1.msra.mxu0 0.0
      %213 = vmatprep.subr.mxu0 0.0
      %214 = vmatpush1.msra.mxu0 0.0
      %215 = vmatprep.subr.mxu0 0.0
      %216 = vmatpush1.msra.mxu0 0.0
      %217 = vmatprep.subr.mxu0 0.0
      %218 = vmatpush1.msra.mxu0 0.0
      %219 = vmatprep.subr.mxu0 0.0
      %220 = vmatpush1.msra.mxu0 0.0
      %221 = vmatprep.subr.mxu0 0.0
      %222 = vmatpush1.msra.mxu0 0.0
      %223 = vmatprep.subr.mxu0 0.0
      %224 = vmatpush1.msra.mxu0 0.0
      %225 = vmatprep.subr.mxu0 0.0
      %226 = vmatpush1.msra.mxu0 0.0
      %227 = vmatprep.subr.mxu0 0.0
      %228 = vmatpush1.msra.mxu0 0.0
      %229 = vmatprep.subr.mxu0 0.0
      %230 = vmatpush1.msra.mxu0 0.0
      %231 = vmatprep.subr.mxu0 0.0
      %232 = vmatpush1.msra.mxu0 0.0
      %233 = vmatprep.subr.mxu0 0.0
      %234 = vmatpush1.msra.mxu0 0.0
      %235 = vmatprep.subr.mxu0 0.0
      %236 = vmatpush1.msra.mxu0 0.0
      %237 = vmatprep.subr.mxu0 0.0
      %238 = vmatpush1.msra.mxu0 0.0
      %239 = vmatprep.subr.mxu0 0.0
      %240 = vmatpush1.msra.mxu0 0.0
      %241 = vmatprep.subr.mxu0 0.0
      %242 = vmatpush1.msra.mxu0 0.0
      %243 = vmatprep.subr.mxu0 0.0
      %244 = vmatpush1.msra.mxu0 0.0
      %245 = vmatprep.subr.mxu0 0.0
      %246 = vmatpush1.msra.mxu0 0.0
      %247 = vmatprep.subr.mxu0 0.0
      %248 = vmatpush1.msra.mxu0 0.0
      %249 = vmatprep.subr.mxu0 0.0
      %250 = vmatpush1.msra.mxu0 0.0
      %251 = vmatprep.subr.mxu0 0.0
      %252 = vmatpush1.msra.mxu0 0.0
      %253 = vmatprep.subr.mxu0 0.0
      %254 = vmatpush1.msra.mxu0 0.0
      %255 = vmatprep.subr.mxu0 0.0
      %256 = vmatpush1.msra.mxu0 0.0
      %257 = vmatprep.subr.mxu0 0.0
      %258 = vmatpush1.msra.mxu0 0.0
      %259 = vmatprep.subr.mxu0 0.0
      %260 = vmatpush1.msra.mxu0 0.0
      %261 = vmatprep.subr.mxu0 0.0
      %262 = vmatpush1.msra.mxu0 0.0
      %263 = vmatprep.subr.mxu0 0.0
      %264 = vmatpush1.msra.mxu0 0.0
      %265 = vmatprep.subr.mxu0 0.0
      %266 = vmatpush1.msra.mxu0 0.0
      %267 = vmatprep.subr.mxu0 0.0
      %268 = vmatpush1.msra.mxu0 0.0
      %269 = vmatprep.subr.mxu0 0.0
      %270 = vmatpush1.msra.mxu0 0.0
      %271 = vmatprep.mubr.f32.mxu0 0.0
      %272 = vmatmul.mubr.f32.gmra.mrb[0].mxu0 %v205
      %v273 = vpop.f32.mrb[0].mxu0
      %v274 = vadd.f32 0.0, %v273
      %v275 = vpop.f32.mrb[0].mxu0
      %276 = vdwg.mxu0
      %v277 = vrcp.pop %v200
      %v278 = vmul.f32 %v274, %v277
      %279 = vst.msk [vmem:[%s111] sm:$0xff] %vm116, %v278
      %v280 = vld [vmem:[%s107] sm:$0xff]
      %282 = vrot.lane.b32.xlu0 %v280, 120
      %v283 = vpop.permute.xlu0 %282
      %284 = vrot.lane.b32.xlu0 %v280, 88
      %v285 = vpop.permute.xlu0 %284
      %v286 = vsel %vm116, %v283, 0
      %v288 = vsel %vm116, %v285, 0
      %290 = vmatprep.subr.mxu0 0.0
      %291 = vmatpush1.xpose.msra.mxu0 %v288
      %292 = vmatprep.subr.mxu0 0.0
      %293 = vmatpush1.xpose.msra.mxu0 0.0
      %294 = vmatprep.subr.mxu0 0.0
      %295 = vmatpush1.xpose.msra.mxu0 0.0
      %296 = vmatprep.subr.mxu0 0.0
      %297 = vmatpush1.xpose.msra.mxu0 0.0
      %298 = vmatprep.subr.mxu0 0.0
      %299 = vmatpush1.xpose.msra.mxu0 0.0
      %300 = vmatprep.subr.mxu0 0.0
      %301 = vmatpush1.xpose.msra.mxu0 0.0
      %302 = vmatprep.subr.mxu0 0.0
      %303 = vmatpush1.xpose.msra.mxu0 0.0
      %304 = vmatprep.subr.mxu0 0.0
      %305 = vmatpush1.xpose.msra.mxu0 0.0
      %306 = vmatprep.subr.mxu0 0.0
      %307 = vmatpush1.xpose.msra.mxu0 0.0
      %308 = vmatprep.subr.mxu0 0.0
      %309 = vmatpush1.xpose.msra.mxu0 0.0
      %310 = vmatprep.subr.mxu0 0.0
      %311 = vmatpush1.xpose.msra.mxu0 0.0
      %312 = vmatprep.subr.mxu0 0.0
      %313 = vmatpush1.xpose.msra.mxu0 0.0
      %314 = vmatprep.subr.mxu0 0.0
      %315 = vmatpush1.xpose.msra.mxu0 0.0
      %316 = vmatprep.subr.mxu0 0.0
      %317 = vmatpush1.xpose.msra.mxu0 0.0
      %318 = vmatprep.subr.mxu0 0.0
      %319 = vmatpush1.xpose.msra.mxu0 0.0
      %320 = vmatprep.subr.mxu0 0.0
      %321 = vmatpush1.xpose.msra.mxu0 0.0
      %322 = vmatprep.subr.mxu0 0.0
      %323 = vmatpush1.xpose.msra.mxu0 0.0
      %324 = vmatprep.subr.mxu0 0.0
      %325 = vmatpush1.xpose.msra.mxu0 0.0
      %326 = vmatprep.subr.mxu0 0.0
      %327 = vmatpush1.xpose.msra.mxu0 0.0
      %328 = vmatprep.subr.mxu0 0.0
      %329 = vmatpush1.xpose.msra.mxu0 0.0
      %330 = vmatprep.subr.mxu0 0.0
      %331 = vmatpush1.xpose.msra.mxu0 0.0
      %332 = vmatprep.subr.mxu0 0.0
      %333 = vmatpush1.xpose.msra.mxu0 0.0
      %334 = vmatprep.subr.mxu0 0.0
      %335 = vmatpush1.xpose.msra.mxu0 0.0
      %336 = vmatprep.subr.mxu0 0.0
      %337 = vmatpush1.xpose.msra.mxu0 0.0
      %338 = vmatprep.subr.mxu0 0.0
      %339 = vmatpush1.xpose.msra.mxu0 0.0
      %340 = vmatprep.subr.mxu0 0.0
      %341 = vmatpush1.xpose.msra.mxu0 0.0
      %342 = vmatprep.subr.mxu0 0.0
      %343 = vmatpush1.xpose.msra.mxu0 0.0
      %344 = vmatprep.subr.mxu0 0.0
      %345 = vmatpush1.xpose.msra.mxu0 0.0
      %346 = vmatprep.subr.mxu0 0.0
      %347 = vmatpush1.xpose.msra.mxu0 0.0
      %348 = vmatprep.subr.mxu0 0.0
      %349 = vmatpush1.xpose.msra.mxu0 0.0
      %350 = vmatprep.subr.mxu0 0.0
      %351 = vmatpush1.xpose.msra.mxu0 0.0
      %352 = vmatprep.subr.mxu0 0.0
      %353 = vmatpush1.xpose.msra.mxu0 0.0
      %354 = vmatprep.mubr.f32.mxu0 0.0
      %355 = vmatmul.mubr.f32.gmra.mrb[0].mxu0 %v286
      %v356 = vpop.f32.mrb[0].mxu0
      %v357 = vadd.f32 0.0, %v356
      %v358 = vpop.f32.mrb[0].mxu0
      %359 = vdwg.mxu0
      %v360 = vmul.f32 %v357, 0.35355338
      %v361 = vsel %vm116, %v360, -inf
      %362 = vmax.xlane.f32.xlu0 %v361
      %v363 = vpop.xlane.xlu0 %362
      %v364 = vsub.f32 %v360, %v363
      %v365 = vmul.f32 %v364, 1.442695
      %v366 = vpow.pop %v365
      %v367 = vsel %vm116, %v366, 0.0
      %368 = vadd.xlane.f32.xlu0 %v367
      %v369 = vpop.xlane.xlu0 %368
      %370 = vrot.lane.b32.xlu0 %v280, 56
      %v371 = vpop.permute.xlu0 %370
      %v374 = vsel %vm116, %v366, 0
      %376 = vmatprep.subr.mxu0 0.0
      %377 = vmatpush1.msra.mxu0 %v371
      %378 = vmatprep.subr.mxu0 0.0
      %379 = vmatpush1.msra.mxu0 0.0
      %380 = vmatprep.subr.mxu0 0.0
      %381 = vmatpush1.msra.mxu0 0.0
      %382 = vmatprep.subr.mxu0 0.0
      %383 = vmatpush1.msra.mxu0 0.0
      %384 = vmatprep.subr.mxu0 0.0
      %385 = vmatpush1.msra.mxu0 0.0
      %386 = vmatprep.subr.mxu0 0.0
      %387 = vmatpush1.msra.mxu0 0.0
      %388 = vmatprep.subr.mxu0 0.0
      %389 = vmatpush1.msra.mxu0 0.0
      %390 = vmatprep.subr.mxu0 0.0
      %391 = vmatpush1.msra.mxu0 0.0
      %392 = vmatprep.subr.mxu0 0.0
      %393 = vmatpush1.msra.mxu0 0.0
      %394 = vmatprep.subr.mxu0 0.0
      %395 = vmatpush1.msra.mxu0 0.0
      %396 = vmatprep.subr.mxu0 0.0
      %397 = vmatpush1.msra.mxu0 0.0
      %398 = vmatprep.subr.mxu0 0.0
      %399 = vmatpush1.msra.mxu0 0.0
      %400 = vmatprep.subr.mxu0 0.0
      %401 = vmatpush1.msra.mxu0 0.0
      %402 = vmatprep.subr.mxu0 0.0
      %403 = vmatpush1.msra.mxu0 0.0
      %404 = vmatprep.subr.mxu0 0.0
      %405 = vmatpush1.msra.mxu0 0.0
      %406 = vmatprep.subr.mxu0 0.0
      %407 = vmatpush1.msra.mxu0 0.0
      %408 = vmatprep.subr.mxu0 0.0
      %409 = vmatpush1.msra.mxu0 0.0
      %410 = vmatprep.subr.mxu0 0.0
      %411 = vmatpush1.msra.mxu0 0.0
      %412 = vmatprep.subr.mxu0 0.0
      %413 = vmatpush1.msra.mxu0 0.0
      %414 = vmatprep.subr.mxu0 0.0
      %415 = vmatpush1.msra.mxu0 0.0
      %416 = vmatprep.subr.mxu0 0.0
      %417 = vmatpush1.msra.mxu0 0.0
      %418 = vmatprep.subr.mxu0 0.0
      %419 = vmatpush1.msra.mxu0 0.0
      %420 = vmatprep.subr.mxu0 0.0
      %421 = vmatpush1.msra.mxu0 0.0
      %422 = vmatprep.subr.mxu0 0.0
      %423 = vmatpush1.msra.mxu0 0.0
      %424 = vmatprep.subr.mxu0 0.0
      %425 = vmatpush1.msra.mxu0 0.0
      %426 = vmatprep.subr.mxu0 0.0
      %427 = vmatpush1.msra.mxu0 0.0
      %428 = vmatprep.subr.mxu0 0.0
      %429 = vmatpush1.msra.mxu0 0.0
      %430 = vmatprep.subr.mxu0 0.0
      %431 = vmatpush1.msra.mxu0 0.0
      %432 = vmatprep.subr.mxu0 0.0
      %433 = vmatpush1.msra.mxu0 0.0
      %434 = vmatprep.subr.mxu0 0.0
      %435 = vmatpush1.msra.mxu0 0.0
      %436 = vmatprep.subr.mxu0 0.0
      %437 = vmatpush1.msra.mxu0 0.0
      %438 = vmatprep.subr.mxu0 0.0
      %439 = vmatpush1.msra.mxu0 0.0
      %440 = vmatprep.mubr.f32.mxu0 0.0
      %441 = vmatmul.mubr.f32.gmra.mrb[0].mxu0 %v374
      %v442 = vpop.f32.mrb[0].mxu0
      %v443 = vadd.f32 0.0, %v442
      %v444 = vpop.f32.mrb[0].mxu0
      %445 = vdwg.mxu0
      %v446 = vrcp.pop %v369
      %v447 = vmul.f32 %v443, %v446
      %449 = vrot.lane.b32.xlu0 %v447, 8
      %v450 = vpop.permute.xlu0 %449
      %vm452 = vcmask 130112
      %453 = vst.msk [vmem:[%s111] sm:$0xff] %vm452, %v450
      %v454 = vld [vmem:[%s107] sm:$0xff]
      %456 = vrot.lane.b32.xlu0 %v454, 112
      %v457 = vpop.permute.xlu0 %456
      %458 = vrot.lane.b32.xlu0 %v454, 80
      %v459 = vpop.permute.xlu0 %458
      %v460 = vsel %vm116, %v457, 0
      %v462 = vsel %vm116, %v459, 0
      %464 = vmatprep.subr.mxu0 0.0
      %465 = vmatpush1.xpose.msra.mxu0 %v462
      %466 = vmatprep.subr.mxu0 0.0
      %467 = vmatpush1.xpose.msra.mxu0 0.0
      %468 = vmatprep.subr.mxu0 0.0
      %469 = vmatpush1.xpose.msra.mxu0 0.0
      %470 = vmatprep.subr.mxu0 0.0
      %471 = vmatpush1.xpose.msra.mxu0 0.0
      %472 = vmatprep.subr.mxu0 0.0
      %473 = vmatpush1.xpose.msra.mxu0 0.0
      %474 = vmatprep.subr.mxu0 0.0
      %475 = vmatpush1.xpose.msra.mxu0 0.0
      %476 = vmatprep.subr.mxu0 0.0
      %477 = vmatpush1.xpose.msra.mxu0 0.0
      %478 = vmatprep.subr.mxu0 0.0
      %479 = vmatpush1.xpose.msra.mxu0 0.0
      %480 = vmatprep.subr.mxu0 0.0
      %481 = vmatpush1.xpose.msra.mxu0 0.0
      %482 = vmatprep.subr.mxu0 0.0
      %483 = vmatpush1.xpose.msra.mxu0 0.0
      %484 = vmatprep.subr.mxu0 0.0
      %485 = vmatpush1.xpose.msra.mxu0 0.0
      %486 = vmatprep.subr.mxu0 0.0
      %487 = vmatpush1.xpose.msra.mxu0 0.0
      %488 = vmatprep.subr.mxu0 0.0
      %489 = vmatpush1.xpose.msra.mxu0 0.0
      %490 = vmatprep.subr.mxu0 0.0
      %491 = vmatpush1.xpose.msra.mxu0 0.0
      %492 = vmatprep.subr.mxu0 0.0
      %493 = vmatpush1.xpose.msra.mxu0 0.0
      %494 = vmatprep.subr.mxu0 0.0
      %495 = vmatpush1.xpose.msra.mxu0 0.0
      %496 = vmatprep.subr.mxu0 0.0
      %497 = vmatpush1.xpose.msra.mxu0 0.0
      %498 = vmatprep.subr.mxu0 0.0
      %499 = vmatpush1.xpose.msra.mxu0 0.0
      %500 = vmatprep.subr.mxu0 0.0
      %501 = vmatpush1.xpose.msra.mxu0 0.0
      %502 = vmatprep.subr.mxu0 0.0
      %503 = vmatpush1.xpose.msra.mxu0 0.0
      %504 = vmatprep.subr.mxu0 0.0
      %505 = vmatpush1.xpose.msra.mxu0 0.0
      %506 = vmatprep.subr.mxu0 0.0
      %507 = vmatpush1.xpose.msra.mxu0 0.0
      %508 = vmatprep.subr.mxu0 0.0
      %509 = vmatpush1.xpose.msra.mxu0 0.0
      %510 = vmatprep.subr.mxu0 0.0
      %511 = vmatpush1.xpose.msra.mxu0 0.0
      %512 = vmatprep.subr.mxu0 0.0
      %513 = vmatpush1.xpose.msra.mxu0 0.0
      %514 = vmatprep.subr.mxu0 0.0
      %515 = vmatpush1.xpose.msra.mxu0 0.0
      %516 = vmatprep.subr.mxu0 0.0
      %517 = vmatpush1.xpose.msra.mxu0 0.0
      %518 = vmatprep.subr.mxu0 0.0
      %519 = vmatpush1.xpose.msra.mxu0 0.0
      %520 = vmatprep.subr.mxu0 0.0
      %521 = vmatpush1.xpose.msra.mxu0 0.0
      %522 = vmatprep.subr.mxu0 0.0
      %523 = vmatpush1.xpose.msra.mxu0 0.0
      %524 = vmatprep.subr.mxu0 0.0
      %525 = vmatpush1.xpose.msra.mxu0 0.0
      %526 = vmatprep.subr.mxu0 0.0
      %527 = vmatpush1.xpose.msra.mxu0 0.0
      %528 = vmatprep.mubr.f32.mxu0 0.0
      %529 = vmatmul.mubr.f32.gmra.mrb[0].mxu0 %v460
      %v530 = vpop.f32.mrb[0].mxu0
      %v531 = vadd.f32 0.0, %v530
      %v532 = vpop.f32.mrb[0].mxu0
      %533 = vdwg.mxu0
      %v534 = vmul.f32 %v531, 0.35355338
      %v535 = vsel %vm116, %v534, -inf
      %536 = vmax.xlane.f32.xlu0 %v535
      %v537 = vpop.xlane.xlu0 %536
      %v538 = vsub.f32 %v534, %v537
      %v539 = vmul.f32 %v538, 1.442695
      %v540 = vpow.pop %v539
      %v541 = vsel %vm116, %v540, 0.0
      %542 = vadd.xlane.f32.xlu0 %v541
      %v543 = vpop.xlane.xlu0 %542
      %544 = vrot.lane.b32.xlu0 %v454, 48
      %v545 = vpop.permute.xlu0 %544
      %v548 = vsel %vm116, %v540, 0
      %550 = vmatprep.subr.mxu0 0.0
      %551 = vmatpush1.msra.mxu0 %v545
      %552 = vmatprep.subr.mxu0 0.0
      %553 = vmatpush1.msra.mxu0 0.0
      %554 = vmatprep.subr.mxu0 0.0
      %555 = vmatpush1.msra.mxu0 0.0
      %556 = vmatprep.subr.mxu0 0.0
      %557 = vmatpush1.msra.mxu0 0.0
      %558 = vmatprep.subr.mxu0 0.0
      %559 = vmatpush1.msra.mxu0 0.0
      %560 = vmatprep.subr.mxu0 0.0
      %561 = vmatpush1.msra.mxu0 0.0
      %562 = vmatprep.subr.mxu0 0.0
      %563 = vmatpush1.msra.mxu0 0.0
      %564 = vmatprep.subr.mxu0 0.0
      %565 = vmatpush1.msra.mxu0 0.0
      %566 = vmatprep.subr.mxu0 0.0
      %567 = vmatpush1.msra.mxu0 0.0
      %568 = vmatprep.subr.mxu0 0.0
      %569 = vmatpush1.msra.mxu0 0.0
      %570 = vmatprep.subr.mxu0 0.0
      %571 = vmatpush1.msra.mxu0 0.0
      %572 = vmatprep.subr.mxu0 0.0
      %573 = vmatpush1.msra.mxu0 0.0
      %574 = vmatprep.subr.mxu0 0.0
      %575 = vmatpush1.msra.mxu0 0.0
      %576 = vmatprep.subr.mxu0 0.0
      %577 = vmatpush1.msra.mxu0 0.0
      %578 = vmatprep.subr.mxu0 0.0
      %579 = vmatpush1.msra.mxu0 0.0
      %580 = vmatprep.subr.mxu0 0.0
      %581 = vmatpush1.msra.mxu0 0.0
      %582 = vmatprep.subr.mxu0 0.0
      %583 = vmatpush1.msra.mxu0 0.0
      %584 = vmatprep.subr.mxu0 0.0
      %585 = vmatpush1.msra.mxu0 0.0
      %586 = vmatprep.subr.mxu0 0.0
      %587 = vmatpush1.msra.mxu0 0.0
      %588 = vmatprep.subr.mxu0 0.0
      %589 = vmatpush1.msra.mxu0 0.0
      %590 = vmatprep.subr.mxu0 0.0
      %591 = vmatpush1.msra.mxu0 0.0
      %592 = vmatprep.subr.mxu0 0.0
      %593 = vmatpush1.msra.mxu0 0.0
      %594 = vmatprep.subr.mxu0 0.0
      %595 = vmatpush1.msra.mxu0 0.0
      %596 = vmatprep.subr.mxu0 0.0
      %597 = vmatpush1.msra.mxu0 0.0
      %598 = vmatprep.subr.mxu0 0.0
      %599 = vmatpush1.msra.mxu0 0.0
      %600 = vmatprep.subr.mxu0 0.0
      %601 = vmatpush1.msra.mxu0 0.0
      %602 = vmatprep.subr.mxu0 0.0
      %603 = vmatpush1.msra.mxu0 0.0
      %604 = vmatprep.subr.mxu0 0.0
      %605 = vmatpush1.msra.mxu0 0.0
      %606 = vmatprep.subr.mxu0 0.0
      %607 = vmatpush1.msra.mxu0 0.0
      %608 = vmatprep.subr.mxu0 0.0
      %609 = vmatpush1.msra.mxu0 0.0
      %610 = vmatprep.subr.mxu0 0.0
      %611 = vmatpush1.msra.mxu0 0.0
      %612 = vmatprep.subr.mxu0 0.0
      %613 = vmatpush1.msra.mxu0 0.0
      %614 = vmatprep.mubr.f32.mxu0 0.0
      %615 = vmatmul.mubr.f32.gmra.mrb[0].mxu0 %v548
      %v616 = vpop.f32.mrb[0].mxu0
      %v617 = vadd.f32 0.0, %v616
      %v618 = vpop.f32.mrb[0].mxu0
      %619 = vdwg.mxu0
      %v620 = vrcp.pop %v543
      %v621 = vmul.f32 %v617, %v620
      %623 = vrot.lane.b32.xlu0 %v621, 16
      %v624 = vpop.permute.xlu0 %623
      %vm626 = vcmask 195712
      %627 = vst.msk [vmem:[%s111] sm:$0xff] %vm626, %v624
      %v628 = vld [vmem:[%s107] sm:$0xff]
      %630 = vrot.lane.b32.xlu0 %v628, 104
      %v631 = vpop.permute.xlu0 %630
      %632 = vrot.lane.b32.xlu0 %v628, 72
      %v633 = vpop.permute.xlu0 %632
      %v634 = vsel %vm116, %v631, 0
      %v636 = vsel %vm116, %v633, 0
      %638 = vmatprep.subr.mxu0 0.0
      %639 = vmatpush1.xpose.msra.mxu0 %v636
      %640 = vmatprep.subr.mxu0 0.0
      %641 = vmatpush1.xpose.msra.mxu0 0.0
      %642 = vmatprep.subr.mxu0 0.0
      %643 = vmatpush1.xpose.msra.mxu0 0.0
      %644 = vmatprep.subr.mxu0 0.0
      %645 = vmatpush1.xpose.msra.mxu0 0.0
      %646 = vmatprep.subr.mxu0 0.0
      %647 = vmatpush1.xpose.msra.mxu0 0.0
      %648 = vmatprep.subr.mxu0 0.0
      %649 = vmatpush1.xpose.msra.mxu0 0.0
      %650 = vmatprep.subr.mxu0 0.0
      %651 = vmatpush1.xpose.msra.mxu0 0.0
      %652 = vmatprep.subr.mxu0 0.0
      %653 = vmatpush1.xpose.msra.mxu0 0.0
      %654 = vmatprep.subr.mxu0 0.0
      %655 = vmatpush1.xpose.msra.mxu0 0.0
      %656 = vmatprep.subr.mxu0 0.0
      %657 = vmatpush1.xpose.msra.mxu0 0.0
      %658 = vmatprep.subr.mxu0 0.0
      %659 = vmatpush1.xpose.msra.mxu0 0.0
      %660 = vmatprep.subr.mxu0 0.0
      %661 = vmatpush1.xpose.msra.mxu0 0.0
      %662 = vmatprep.subr.mxu0 0.0
      %663 = vmatpush1.xpose.msra.mxu0 0.0
      %664 = vmatprep.subr.mxu0 0.0
      %665 = vmatpush1.xpose.msra.mxu0 0.0
      %666 = vmatprep.subr.mxu0 0.0
      %667 = vmatpush1.xpose.msra.mxu0 0.0
      %668 = vmatprep.subr.mxu0 0.0
      %669 = vmatpush1.xpose.msra.mxu0 0.0
      %670 = vmatprep.subr.mxu0 0.0
      %671 = vmatpush1.xpose.msra.mxu0 0.0
      %672 = vmatprep.subr.mxu0 0.0
      %673 = vmatpush1.xpose.msra.mxu0 0.0
      %674 = vmatprep.subr.mxu0 0.0
      %675 = vmatpush1.xpose.msra.mxu0 0.0
      %676 = vmatprep.subr.mxu0 0.0
      %677 = vmatpush1.xpose.msra.mxu0 0.0
      %678 = vmatprep.subr.mxu0 0.0
      %679 = vmatpush1.xpose.msra.mxu0 0.0
      %680 = vmatprep.subr.mxu0 0.0
      %681 = vmatpush1.xpose.msra.mxu0 0.0
      %682 = vmatprep.subr.mxu0 0.0
      %683 = vmatpush1.xpose.msra.mxu0 0.0
      %684 = vmatprep.subr.mxu0 0.0
      %685 = vmatpush1.xpose.msra.mxu0 0.0
      %686 = vmatprep.subr.mxu0 0.0
      %687 = vmatpush1.xpose.msra.mxu0 0.0
      %688 = vmatprep.subr.mxu0 0.0
      %689 = vmatpush1.xpose.msra.mxu0 0.0
      %690 = vmatprep.subr.mxu0 0.0
      %691 = vmatpush1.xpose.msra.mxu0 0.0
      %692 = vmatprep.subr.mxu0 0.0
      %693 = vmatpush1.xpose.msra.mxu0 0.0
      %694 = vmatprep.subr.mxu0 0.0
      %695 = vmatpush1.xpose.msra.mxu0 0.0
      %696 = vmatprep.subr.mxu0 0.0
      %697 = vmatpush1.xpose.msra.mxu0 0.0
      %698 = vmatprep.subr.mxu0 0.0
      %699 = vmatpush1.xpose.msra.mxu0 0.0
      %700 = vmatprep.subr.mxu0 0.0
      %701 = vmatpush1.xpose.msra.mxu0 0.0
      %702 = vmatprep.mubr.f32.mxu0 0.0
      %703 = vmatmul.mubr.f32.gmra.mrb[0].mxu0 %v634
      %v704 = vpop.f32.mrb[0].mxu0
      %v705 = vadd.f32 0.0, %v704
      %v706 = vpop.f32.mrb[0].mxu0
      %707 = vdwg.mxu0
      %v708 = vmul.f32 %v705, 0.35355338
      %v709 = vsel %vm116, %v708, -inf
      %710 = vmax.xlane.f32.xlu0 %v709
      %v711 = vpop.xlane.xlu0 %710
      %v712 = vsub.f32 %v708, %v711
      %v713 = vmul.f32 %v712, 1.442695
      %v714 = vpow.pop %v713
      %v715 = vsel %vm116, %v714, 0.0
      %716 = vadd.xlane.f32.xlu0 %v715
      %v717 = vpop.xlane.xlu0 %716
      %718 = vrot.lane.b32.xlu0 %v628, 40
      %v719 = vpop.permute.xlu0 %718
      %v722 = vsel %vm116, %v714, 0
      %724 = vmatprep.subr.mxu0 0.0
      %725 = vmatpush1.msra.mxu0 %v719
      %726 = vmatprep.subr.mxu0 0.0
      %727 = vmatpush1.msra.mxu0 0.0
      %728 = vmatprep.subr.mxu0 0.0
      %729 = vmatpush1.msra.mxu0 0.0
      %730 = vmatprep.subr.mxu0 0.0
      %731 = vmatpush1.msra.mxu0 0.0
      %732 = vmatprep.subr.mxu0 0.0
      %733 = vmatpush1.msra.mxu0 0.0
      %734 = vmatprep.subr.mxu0 0.0
      %735 = vmatpush1.msra.mxu0 0.0
      %736 = vmatprep.subr.mxu0 0.0
      %737 = vmatpush1.msra.mxu0 0.0
      %738 = vmatprep.subr.mxu0 0.0
      %739 = vmatpush1.msra.mxu0 0.0
      %740 = vmatprep.subr.mxu0 0.0
      %741 = vmatpush1.msra.mxu0 0.0
      %742 = vmatprep.subr.mxu0 0.0
      %743 = vmatpush1.msra.mxu0 0.0
      %744 = vmatprep.subr.mxu0 0.0
      %745 = vmatpush1.msra.mxu0 0.0
      %746 = vmatprep.subr.mxu0 0.0
      %747 = vmatpush1.msra.mxu0 0.0
      %748 = vmatprep.subr.mxu0 0.0
      %749 = vmatpush1.msra.mxu0 0.0
      %750 = vmatprep.subr.mxu0 0.0
      %751 = vmatpush1.msra.mxu0 0.0
      %752 = vmatprep.subr.mxu0 0.0
      %753 = vmatpush1.msra.mxu0 0.0
      %754 = vmatprep.subr.mxu0 0.0
      %755 = vmatpush1.msra.mxu0 0.0
      %756 = vmatprep.subr.mxu0 0.0
      %757 = vmatpush1.msra.mxu0 0.0
      %758 = vmatprep.subr.mxu0 0.0
      %759 = vmatpush1.msra.mxu0 0.0
      %760 = vmatprep.subr.mxu0 0.0
      %761 = vmatpush1.msra.mxu0 0.0
      %762 = vmatprep.subr.mxu0 0.0
      %763 = vmatpush1.msra.mxu0 0.0
      %764 = vmatprep.subr.mxu0 0.0
      %765 = vmatpush1.msra.mxu0 0.0
      %766 = vmatprep.subr.mxu0 0.0
      %767 = vmatpush1.msra.mxu0 0.0
      %768 = vmatprep.subr.mxu0 0.0
      %769 = vmatpush1.msra.mxu0 0.0
      %770 = vmatprep.subr.mxu0 0.0
      %771 = vmatpush1.msra.mxu0 0.0
      %772 = vmatprep.subr.mxu0 0.0
      %773 = vmatpush1.msra.mxu0 0.0
      %774 = vmatprep.subr.mxu0 0.0
      %775 = vmatpush1.msra.mxu0 0.0
      %776 = vmatprep.subr.mxu0 0.0
      %777 = vmatpush1.msra.mxu0 0.0
      %778 = vmatprep.subr.mxu0 0.0
      %779 = vmatpush1.msra.mxu0 0.0
      %780 = vmatprep.subr.mxu0 0.0
      %781 = vmatpush1.msra.mxu0 0.0
      %782 = vmatprep.subr.mxu0 0.0
      %783 = vmatpush1.msra.mxu0 0.0
      %784 = vmatprep.subr.mxu0 0.0
      %785 = vmatpush1.msra.mxu0 0.0
      %786 = vmatprep.subr.mxu0 0.0
      %787 = vmatpush1.msra.mxu0 0.0
      %788 = vmatprep.mubr.f32.mxu0 0.0
      %789 = vmatmul.mubr.f32.gmra.mrb[0].mxu0 %v722
      %v790 = vpop.f32.mrb[0].mxu0
      %v791 = vadd.f32 0.0, %v790
      %v792 = vpop.f32.mrb[0].mxu0
      %793 = vdwg.mxu0
      %v794 = vrcp.pop %v717
      %v795 = vmul.f32 %v791, %v794
      %797 = vrot.lane.b32.xlu0 %v795, 24
      %v798 = vpop.permute.xlu0 %797
      %vm800 = vcmask 261312
      %801 = vst.msk [vmem:[%s111] sm:$0xff] %vm800, %v798
      %p802 = scmp.lt.s32.totalorder %s12, 1
      %s803 = scalar_select %p802, %s12, 1
      %s804 = smul.addr %s803, 8
      %s805 = scalar_lea.vmem %s1, %s804
      // Predicated region
      $region25: #{decoder.18} parent=23 // pred_check
        %p806 = pneg %p56
      $region26: #{decoder.18} parent=23 // pred_check_branch
        %808 = sbr.rel (%p806) target = $region28
      $region27: #{decoder.18} parent=23 // pred_region
        _
      $region28: #{decoder.18} parent=23 // pred_fallthru
        _
    $region24: #{decoder.18} parent=5 // pred_fallthru
      _
    %p809 = scmp.le.s32.totalorder 2, %s7
    // Predicated region
    $region29: #{decoder.18} parent=5 // pred_check
      %p810 = pneg %p809
    $region30: #{decoder.18} parent=5 // pred_check_branch
      %812 = sbr.rel (%p810) target = $region32
    $region31: #{decoder.18} parent=5 // pred_region
      %s813 = ssub.s32 %s7, 2
      // Predicated region
      $region33: #{decoder.18} parent=31 // pred_check
        %p814 = pneg %p62
      $region34: #{decoder.18} parent=31 // pred_check_branch
        %816 = sbr.rel (%p814) target = $region36
      $region35: #{decoder.18} parent=31 // pred_region
        %p817 = scmp.lt.s32.totalorder %s13, 1
        %s818 = scalar_select %p817, %s13, 1
        %s819 = smul.addr %s818, 8
        %s820 = scalar_lea.vmem %s1, %s819
      $region36: #{decoder.18} parent=31 // pred_fallthru
        _
    $region32: #{decoder.18} parent=5 // pred_fallthru
      _
  $region6: #{decoder.18} parent=0 // loop_footer
    %s11 = sadd.s32 1, %s7
  $region7: #{decoder.18} parent=0 // loop_footer_branch
    %6 = sbr.rel target = $region3
  $region8: #{decoder.18} parent=0 // loop_exit
    _

// kernel: decoder.25
$region0: #{decoder.25}
  #allocation0 [shape = 'u32[]', space=smem, size = 0x4, offset = 0x4, fixed_abs, tag = 'smem constant byte address 0x4 - core index']
  #allocation1 [shape = 'u32[144,128]{1,0:T(1,128)}', space=vmem, size = 0x12000, scoped, tag = 'internal scratch']
  %s0 = inlined_call_operand.vmem [shape: f32[16,32], index: 0, kind: input, shape index: {}]
  %s1 = inlined_call_operand.vmem [shape: f32[32,96], index: 1, kind: input, shape index: {}]
  %s2 = inlined_call_operand.vmem [shape: f32[1,96], index: 2, kind: input, shape index: {}]
  %s3 = inlined_call_operand.vmem [shape: f32[16,96], index: 3, kind: output, shape index: {}]
  %s4 = sld [smem:[#allocation0]]
  $region22: #{decoder.25} parent=0
    _
  %s6 = ssub.s32 1, %s4
  %s7 = scalar_select 0, %s6, %s4
  // Predicated region
  $region2: #{decoder.25} parent=0 // pred_check
    _
  $region3: #{decoder.25} parent=0 // pred_check_branch
    %9 = sbr.rel (0) target = $region5
  $region4: #{decoder.25} parent=0 // pred_region
    _
  $region5: #{decoder.25} parent=0 // pred_fallthru
    _
  // Predicated region
  $region6: #{decoder.25} parent=0 // pred_check
    _
  $region7: #{decoder.25} parent=0 // pred_check_branch
    %11 = sbr.rel (0) target = $region9
  $region8: #{decoder.25} parent=0 // pred_region
    _
  $region9: #{decoder.25} parent=0 // pred_fallthru
    _
  // Predicated region
  $region10: #{decoder.25} parent=0 // pred_check
    _
  $region11: #{decoder.25} parent=0 // pred_check_branch
    %13 = sbr.rel (0) target = $region13
  $region12: #{decoder.25} parent=0 // pred_region
    _
  $region13: #{decoder.25} parent=0 // pred_fallthru
    _
  %v14 = vld [vmem:[%s0] sm:$0xff]
  %v15 = vld [vmem:[%s0 + $0x8] sm:$0xff]
  %v16 = vld [vmem:[%s1] sm:$0xff]
  %v17 = vld [vmem:[%s1 + $0x8] sm:$0xff]
  %v18 = vld [vmem:[%s1 + $0x10] sm:$0xff]
  %v19 = vld [vmem:[%s1 + $0x18] sm:$0xff]
  %v20 = vld [vmem:[%s2] sm:$0x1]
  %v22 = vlaneseq
  %v23 = vshrl.u32 %v22, 7
  %v24 = vsub.s32 0, %v23
  %v25 = vrot.slane %v20, %v24
  %vm27 = vcmask 261120
  %v29 = vsel %vm27, %v14, 0
  %v32 = vsel %vm27, %v15, 0
  %34 = vmatprep.subr.mxu0 0.0
  %35 = vmatpush1.msra.mxu0 %v16
  %36 = vmatprep.subr.mxu0 0.0
  %37 = vmatpush1.msra.mxu0 %v17
  %38 = vmatprep.subr.mxu0 0.0
  %39 = vmatpush1.msra.mxu0 %v18
  %40 = vmatprep.subr.mxu0 0.0
  %41 = vmatpush1.msra.mxu0 %v19
  %42 = vmatprep.subr.mxu0 0.0
  %43 = vmatpush1.msra.mxu0 0.0
  %44 = vmatprep.subr.mxu0 0.0
  %45 = vmatpush1.msra.mxu0 0.0
  %46 = vmatprep.subr.mxu0 0.0
  %47 = vmatpush1.msra.mxu0 0.0
  %48 = vmatprep.subr.mxu0 0.0
  %49 = vmatpush1.msra.mxu0 0.0
  %50 = vmatprep.subr.mxu0 0.0
  %51 = vmatpush1.msra.mxu0 0.0
  %52 = vmatprep.subr.mxu0 0.0
  %53 = vmatpush1.msra.mxu0 0.0
  %54 = vmatprep.subr.mxu0 0.0
  %55 = vmatpush1.msra.mxu0 0.0
  %56 = vmatprep.subr.mxu0 0.0
  %57 = vmatpush1.msra.mxu0 0.0
  %58 = vmatprep.subr.mxu0 0.0
  %59 = vmatpush1.msra.mxu0 0.0
  %60 = vmatprep.subr.mxu0 0.0
  %61 = vmatpush1.msra.mxu0 0.0
  %62 = vmatprep.subr.mxu0 0.0
  %63 = vmatpush1.msra.mxu0 0.0
  %64 = vmatprep.subr.mxu0 0.0
  %65 = vmatpush1.msra.mxu0 0.0
  %66 = vmatprep.subr.mxu0 0.0
  %67 = vmatpush1.msra.mxu0 0.0
  %68 = vmatprep.subr.mxu0 0.0
  %69 = vmatpush1.msra.mxu0 0.0
  %70 = vmatprep.subr.mxu0 0.0
  %71 = vmatpush1.msra.mxu0 0.0
  %72 = vmatprep.subr.mxu0 0.0
  %73 = vmatpush1.msra.mxu0 0.0
  %74 = vmatprep.subr.mxu0 0.0
  %75 = vmatpush1.msra.mxu0 0.0
  %76 = vmatprep.subr.mxu0 0.0
  %77 = vmatpush1.msra.mxu0 0.0
  %78 = vmatprep.subr.mxu0 0.0
  %79 = vmatpush1.msra.mxu0 0.0
  %80 = vmatprep.subr.mxu0 0.0
  %81 = vmatpush1.msra.mxu0 0.0
  %82 = vmatprep.subr.mxu0 0.0
  %83 = vmatpush1.msra.mxu0 0.0
  %84 = vmatprep.subr.mxu0 0.0
  %85 = vmatpush1.msra.mxu0 0.0
  %86 = vmatprep.subr.mxu0 0.0
  %87 = vmatpush1.msra.mxu0 0.0
  %88 = vmatprep.subr.mxu0 0.0
  %89 = vmatpush1.msra.mxu0 0.0
  %90 = vmatprep.subr.mxu0 0.0
  %91 = vmatpush1.msra.mxu0 0.0
  %92 = vmatprep.subr.mxu0 0.0
  %93 = vmatpush1.msra.mxu0 0.0
  %94 = vmatprep.subr.mxu0 0.0
  %95 = vmatpush1.msra.mxu0 0.0
  %96 = vmatprep.subr.mxu0 0.0
  %97 = vmatpush1.msra.mxu0 0.0
  %98 = vmatprep.mubr.f32.mxu0 0.0
  %99 = vmatmul.mubr.f32.gmra.mrb[0].mxu0 %v29
  %v100 = vpop.f32.mrb[0].mxu0
  %v101 = vadd.f32 %v25, %v100
  %v102 = vpop.f32.mrb[0].mxu0
  %103 = vmatprep.mubr.f32.mxu0 0.0
  %104 = vmatmul.mubr.f32.gmra.mrb[0].mxu0 %v32
  %v105 = vpop.f32.mrb[0].mxu0
  %v106 = vadd.f32 %v25, %v105
  %v107 = vpop.f32.mrb[0].mxu0
  %108 = vdwg.mxu0
  %vm109 = vcmask 785408
  %110 = vst.msk [vmem:[%s3] sm:$0xff] %vm109, %v101
  %111 = vst.msk [vmem:[%s3 + $0x8] sm:$0xff] %vm109, %v106
  // Predicated region
  $region14: #{decoder.25} parent=0 // pred_check
    _
  $region15: #{decoder.25} parent=0 // pred_check_branch
    %113 = sbr.rel (0) target = $region17
  $region16: #{decoder.25} parent=0 // pred_region
    _
  $region17: #{decoder.25} parent=0 // pred_fallthru
    _
  // Predicated region
  $region18: #{decoder.25} parent=0 // pred_check
    _
  $region19: #{decoder.25} parent=0 // pred_check_branch
    %115 = sbr.rel (0) target = $region21
  $region20: #{decoder.25} parent=0 // pred_region
    _
  $region21: #{decoder.25} parent=0 // pred_fallthru
    _

// kernel: decoder.23
$region0: #{decoder.23}
  #allocation0 [shape = 'u32[]', space=smem, size = 0x4, offset = 0x4, fixed_abs, tag = 'smem constant byte address 0x4 - core index']
  #allocation1 [shape = 'u32[144,128]{1,0:T(1,128)}', space=vmem, size = 0x12000, scoped, tag = 'internal scratch']
  %s0 = inlined_call_operand.vmem [shape: f32[16,32], index: 0, kind: input, shape index: {}]
  %s1 = inlined_call_operand.vmem [shape: f32[32,32], index: 1, kind: input, shape index: {}]
  %s2 = inlined_call_operand.vmem [shape: f32[1,32], index: 2, kind: input, shape index: {}]
  %s3 = inlined_call_operand.vmem [shape: f32[16,32], index: 3, kind: input, shape index: {}]
  %s4 = inlined_call_operand.vmem [shape: f32[16,32], index: 4, kind: output, shape index: {}]
  %s5 = sld [smem:[#allocation0]]
  $region26: #{decoder.23} parent=0
    _
  %s7 = ssub.s32 1, %s5
  %s8 = scalar_select 0, %s7, %s5
  // Predicated region
  $region2: #{decoder.23} parent=0 // pred_check
    _
  $region3: #{decoder.23} parent=0 // pred_check_branch
    %10 = sbr.rel (0) target = $region5
  $region4: #{decoder.23} parent=0 // pred_region
    _
  $region5: #{decoder.23} parent=0 // pred_fallthru
    _
  // Predicated region
  $region6: #{decoder.23} parent=0 // pred_check
    _
  $region7: #{decoder.23} parent=0 // pred_check_branch
    %12 = sbr.rel (0) target = $region9
  $region8: #{decoder.23} parent=0 // pred_region
    _
  $region9: #{decoder.23} parent=0 // pred_fallthru
    _
  // Predicated region
  $region10: #{decoder.23} parent=0 // pred_check
    _
  $region11: #{decoder.23} parent=0 // pred_check_branch
    %14 = sbr.rel (0) target = $region13
  $region12: #{decoder.23} parent=0 // pred_region
    _
  $region13: #{decoder.23} parent=0 // pred_fallthru
    _
  // Predicated region
  $region14: #{decoder.23} parent=0 // pred_check
    _
  $region15: #{decoder.23} parent=0 // pred_check_branch
    %16 = sbr.rel (0) target = $region17
  $region16: #{decoder.23} parent=0 // pred_region
    _
  $region17: #{decoder.23} parent=0 // pred_fallthru
    _
  %v17 = vld [vmem:[%s0] sm:$0xff]
  %v18 = vld [vmem:[%s0 + $0x8] sm:$0xff]
  %v19 = vld [vmem:[%s1] sm:$0xff]
  %v20 = vld [vmem:[%s1 + $0x8] sm:$0xff]
  %v21 = vld [vmem:[%s1 + $0x10] sm:$0xff]
  %v22 = vld [vmem:[%s1 + $0x18] sm:$0xff]
  %v23 = vld [vmem:[%s2] sm:$0x1]
  %v25 = vlaneseq
  %v26 = vshrl.u32 %v25, 7
  %v27 = vsub.s32 0, %v26
  %v28 = vrot.slane %v23, %v27
  %vm30 = vcmask 261120
  %v32 = vsel %vm30, %v17, 0
  %v35 = vsel %vm30, %v18, 0
  %37 = vmatprep.subr.mxu0 0.0
  %38 = vmatpush1.msra.mxu0 %v19
  %39 = vmatprep.subr.mxu0 0.0
  %40 = vmatpush1.msra.mxu0 %v20
  %41 = vmatprep.subr.mxu0 0.0
  %42 = vmatpush1.msra.mxu0 %v21
  %43 = vmatprep.subr.mxu0 0.0
  %44 = vmatpush1.msra.mxu0 %v22
  %45 = vmatprep.subr.mxu0 0.0
  %46 = vmatpush1.msra.mxu0 0.0
  %47 = vmatprep.subr.mxu0 0.0
  %48 = vmatpush1.msra.mxu0 0.0
  %49 = vmatprep.subr.mxu0 0.0
  %50 = vmatpush1.msra.mxu0 0.0
  %51 = vmatprep.subr.mxu0 0.0
  %52 = vmatpush1.msra.mxu0 0.0
  %53 = vmatprep.subr.mxu0 0.0
  %54 = vmatpush1.msra.mxu0 0.0
  %55 = vmatprep.subr.mxu0 0.0
  %56 = vmatpush1.msra.mxu0 0.0
  %57 = vmatprep.subr.mxu0 0.0
  %58 = vmatpush1.msra.mxu0 0.0
  %59 = vmatprep.subr.mxu0 0.0
  %60 = vmatpush1.msra.mxu0 0.0
  %61 = vmatprep.subr.mxu0 0.0
  %62 = vmatpush1.msra.mxu0 0.0
  %63 = vmatprep.subr.mxu0 0.0
  %64 = vmatpush1.msra.mxu0 0.0
  %65 = vmatprep.subr.mxu0 0.0
  %66 = vmatpush1.msra.mxu0 0.0
  %67 = vmatprep.subr.mxu0 0.0
  %68 = vmatpush1.msra.mxu0 0.0
  %69 = vmatprep.subr.mxu0 0.0
  %70 = vmatpush1.msra.mxu0 0.0
  %71 = vmatprep.subr.mxu0 0.0
  %72 = vmatpush1.msra.mxu0 0.0
  %73 = vmatprep.subr.mxu0 0.0
  %74 = vmatpush1.msra.mxu0 0.0
  %75 = vmatprep.subr.mxu0 0.0
  %76 = vmatpush1.msra.mxu0 0.0
  %77 = vmatprep.subr.mxu0 0.0
  %78 = vmatpush1.msra.mxu0 0.0
  %79 = vmatprep.subr.mxu0 0.0
  %80 = vmatpush1.msra.mxu0 0.0
  %81 = vmatprep.subr.mxu0 0.0
  %82 = vmatpush1.msra.mxu0 0.0
  %83 = vmatprep.subr.mxu0 0.0
  %84 = vmatpush1.msra.mxu0 0.0
  %85 = vmatprep.subr.mxu0 0.0
  %86 = vmatpush1.msra.mxu0 0.0
  %87 = vmatprep.subr.mxu0 0.0
  %88 = vmatpush1.msra.mxu0 0.0
  %89 = vmatprep.subr.mxu0 0.0
  %90 = vmatpush1.msra.mxu0 0.0
  %91 = vmatprep.subr.mxu0 0.0
  %92 = vmatpush1.msra.mxu0 0.0
  %93 = vmatprep.subr.mxu0 0.0
  %94 = vmatpush1.msra.mxu0 0.0
  %95 = vmatprep.subr.mxu0 0.0
  %96 = vmatpush1.msra.mxu0 0.0
  %97 = vmatprep.subr.mxu0 0.0
  %98 = vmatpush1.msra.mxu0 0.0
  %99 = vmatprep.subr.mxu0 0.0
  %100 = vmatpush1.msra.mxu0 0.0
  %101 = vmatprep.mubr.f32.mxu0 0.0
  %102 = vmatmul.mubr.f32.gmra.mrb[0].mxu0 %v32
  %v103 = vpop.f32.mrb[0].mxu0
  %v104 = vadd.f32 %v28, %v103
  %v105 = vpop.f32.mrb[0].mxu0
  %106 = vmatprep.mubr.f32.mxu0 0.0
  %107 = vmatmul.mubr.f32.gmra.mrb[0].mxu0 %v35
  %v108 = vpop.f32.mrb[0].mxu0
  %v109 = vadd.f32 %v28, %v108
  %v110 = vpop.f32.mrb[0].mxu0
  %111 = vdwg.mxu0
  %v112 = vld [vmem:[%s3] sm:$0xff]
  %v113 = vld [vmem:[%s3 + $0x8] sm:$0xff]
  %v114 = vadd.f32 %v104, %v112
  %v115 = vadd.f32 %v109, %v113
  %116 = vst.msk [vmem:[%s4] sm:$0xff] %vm30, %v114
  %117 = vst.msk [vmem:[%s4 + $0x8] sm:$0xff] %vm30, %v115
  // Predicated region
  $region18: #{decoder.23} parent=0 // pred_check
    _
  $region19: #{decoder.23} parent=0 // pred_check_branch
    %119 = sbr.rel (0) target = $region21
  $region20: #{decoder.23} parent=0 // pred_region
    _
  $region21: #{decoder.23} parent=0 // pred_fallthru
    _
  // Predicated region
  $region22: #{decoder.23} parent=0 // pred_check
    _
  $region23: #{decoder.23} parent=0 // pred_check_branch
    %121 = sbr.rel (0) target = $region25
  $region24: #{decoder.23} parent=0 // pred_region
    _
  $region25: #{decoder.23} parent=0 // pred_fallthru
    _

// kernel: decoder.24
$region0: #{decoder.24}
  #allocation0 [shape = 'u32[]', space=smem, size = 0x4, offset = 0x4, fixed_abs, tag = 'smem constant byte address 0x4 - core index']
  #allocation1 [shape = 'u32[144,128]{1,0:T(1,128)}', space=vmem, size = 0x12000, scoped, tag = 'internal scratch']
  %s0 = inlined_call_operand.vmem [shape: f32[16,32], index: 0, kind: input, shape index: {}]
  %s1 = inlined_call_operand.vmem [shape: f32[32,128], index: 1, kind: input, shape index: {}]
  %s2 = inlined_call_operand.vmem [shape: f32[1,128], index: 2, kind: input, shape index: {}]
  %s3 = inlined_call_operand.vmem [shape: f32[128,32], index: 3, kind: input, shape index: {}]
  %s4 = inlined_call_operand.vmem [shape: f32[1,32], index: 4, kind: input, shape index: {}]
  %s5 = inlined_call_operand.vmem [shape: f32[1,32], index: 5, kind: input, shape index: {}]
  %s6 = inlined_call_operand.vmem [shape: f32[1,32], index: 6, kind: input, shape index: {}]
  %s7 = inlined_call_operand.vmem [shape: f32[16,32], index: 7, kind: output, shape index: {}]
  %s8 = sld [smem:[#allocation0]]
  $region38: #{decoder.24} parent=0
    _
  %s10 = ssub.s32 1, %s8
  %s11 = scalar_select 0, %s10, %s8
  // Predicated region
  $region2: #{decoder.24} parent=0 // pred_check
    _
  $region3: #{decoder.24} parent=0 // pred_check_branch
    %13 = sbr.rel (0) target = $region5
  $region4: #{decoder.24} parent=0 // pred_region
    _
  $region5: #{decoder.24} parent=0 // pred_fallthru
    _
  // Predicated region
  $region6: #{decoder.24} parent=0 // pred_check
    _
  $region7: #{decoder.24} parent=0 // pred_check_branch
    %15 = sbr.rel (0) target = $region9
  $region8: #{decoder.24} parent=0 // pred_region
    _
  $region9: #{decoder.24} parent=0 // pred_fallthru
    _
  // Predicated region
  $region10: #{decoder.24} parent=0 // pred_check
    _
  $region11: #{decoder.24} parent=0 // pred_check_branch
    %17 = sbr.rel (0) target = $region13
  $region12: #{decoder.24} parent=0 // pred_region
    _
  $region13: #{decoder.24} parent=0 // pred_fallthru
    _
  // Predicated region
  $region14: #{decoder.24} parent=0 // pred_check
    _
  $region15: #{decoder.24} parent=0 // pred_check_branch
    %19 = sbr.rel (0) target = $region17
  $region16: #{decoder.24} parent=0 // pred_region
    _
  $region17: #{decoder.24} parent=0 // pred_fallthru
    _
  // Predicated region
  $region18: #{decoder.24} parent=0 // pred_check
    _
  $region19: #{decoder.24} parent=0 // pred_check_branch
    %21 = sbr.rel (0) target = $region21
  $region20: #{decoder.24} parent=0 // pred_region
    _
  $region21: #{decoder.24} parent=0 // pred_fallthru
    _
  // Predicated region
  $region22: #{decoder.24} parent=0 // pred_check
    _
  $region23: #{decoder.24} parent=0 // pred_check_branch
    %23 = sbr.rel (0) target = $region25
  $region24: #{decoder.24} parent=0 // pred_region
    _
  $region25: #{decoder.24} parent=0 // pred_fallthru
    _
  // Predicated region
  $region26: #{decoder.24} parent=0 // pred_check
    _
  $region27: #{decoder.24} parent=0 // pred_check_branch
    %25 = sbr.rel (0) target = $region29
  $region28: #{decoder.24} parent=0 // pred_region
    _
  $region29: #{decoder.24} parent=0 // pred_fallthru
    _
  %v26 = vld [vmem:[%s0] sm:$0xff]
  %v27 = vld [vmem:[%s0 + $0x8] sm:$0xff]
  %v28 = vld [vmem:[%s1] sm:$0xff]
  %v29 = vld [vmem:[%s1 + $0x8] sm:$0xff]
  %v30 = vld [vmem:[%s1 + $0x10] sm:$0xff]
  %v31 = vld [vmem:[%s1 + $0x18] sm:$0xff]
  %v32 = vld [vmem:[%s2] sm:$0x1]
  %v34 = vlaneseq
  %v35 = vshrl.u32 %v34, 7
  %v36 = vsub.s32 0, %v35
  %v37 = vrot.slane %v32, %v36
  %vm39 = vcmask 261120
  %v41 = vsel %vm39, %v26, 0
  %v44 = vsel %vm39, %v27, 0
  %46 = vmatprep.subr.mxu0 0.0
  %47 = vmatpush1.msra.mxu0 %v28
  %48 = vmatprep.subr.mxu0 0.0
  %49 = vmatpush1.msra.mxu0 %v29
  %50 = vmatprep.subr.mxu0 0.0
  %51 = vmatpush1.msra.mxu0 %v30
  %52 = vmatprep.subr.mxu0 0.0
  %53 = vmatpush1.msra.mxu0 %v31
  %54 = vmatprep.subr.mxu0 0.0
  %55 = vmatpush1.msra.mxu0 0.0
  %56 = vmatprep.subr.mxu0 0.0
  %57 = vmatpush1.msra.mxu0 0.0
  %58 = vmatprep.subr.mxu0 0.0
  %59 = vmatpush1.msra.mxu0 0.0
  %60 = vmatprep.subr.mxu0 0.0
  %61 = vmatpush1.msra.mxu0 0.0
  %62 = vmatprep.subr.mxu0 0.0
  %63 = vmatpush1.msra.mxu0 0.0
  %64 = vmatprep.subr.mxu0 0.0
  %65 = vmatpush1.msra.mxu0 0.0
  %66 = vmatprep.subr.mxu0 0.0
  %67 = vmatpush1.msra.mxu0 0.0
  %68 = vmatprep.subr.mxu0 0.0
  %69 = vmatpush1.msra.mxu0 0.0
  %70 = vmatprep.subr.mxu0 0.0
  %71 = vmatpush1.msra.mxu0 0.0
  %72 = vmatprep.subr.mxu0 0.0
  %73 = vmatpush1.msra.mxu0 0.0
  %74 = vmatprep.subr.mxu0 0.0
  %75 = vmatpush1.msra.mxu0 0.0
  %76 = vmatprep.subr.mxu0 0.0
  %77 = vmatpush1.msra.mxu0 0.0
  %78 = vmatprep.subr.mxu0 0.0
  %79 = vmatpush1.msra.mxu0 0.0
  %80 = vmatprep.subr.mxu0 0.0
  %81 = vmatpush1.msra.mxu0 0.0
  %82 = vmatprep.subr.mxu0 0.0
  %83 = vmatpush1.msra.mxu0 0.0
  %84 = vmatprep.subr.mxu0 0.0
  %85 = vmatpush1.msra.mxu0 0.0
  %86 = vmatprep.subr.mxu0 0.0
  %87 = vmatpush1.msra.mxu0 0.0
  %88 = vmatprep.subr.mxu0 0.0
  %89 = vmatpush1.msra.mxu0 0.0
  %90 = vmatprep.subr.mxu0 0.0
  %91 = vmatpush1.msra.mxu0 0.0
  %92 = vmatprep.subr.mxu0 0.0
  %93 = vmatpush1.msra.mxu0 0.0
  %94 = vmatprep.subr.mxu0 0.0
  %95 = vmatpush1.msra.mxu0 0.0
  %96 = vmatprep.subr.mxu0 0.0
  %97 = vmatpush1.msra.mxu0 0.0
  %98 = vmatprep.subr.mxu0 0.0
  %99 = vmatpush1.msra.mxu0 0.0
  %100 = vmatprep.subr.mxu0 0.0
  %101 = vmatpush1.msra.mxu0 0.0
  %102 = vmatprep.subr.mxu0 0.0
  %103 = vmatpush1.msra.mxu0 0.0
  %104 = vmatprep.subr.mxu0 0.0
  %105 = vmatpush1.msra.mxu0 0.0
  %106 = vmatprep.subr.mxu0 0.0
  %107 = vmatpush1.msra.mxu0 0.0
  %108 = vmatprep.subr.mxu0 0.0
  %109 = vmatpush1.msra.mxu0 0.0
  %110 = vmatprep.mubr.f32.mxu0 0.0
  %111 = vmatmul.mubr.f32.gmra.mrb[0].mxu0 %v41
  %v112 = vpop.f32.mrb[0].mxu0
  %v113 = vadd.f32 %v37, %v112
  %v114 = vpop.f32.mrb[0].mxu0
  %115 = vmatprep.mubr.f32.mxu0 0.0
  %116 = vmatmul.mubr.f32.gmra.mrb[0].mxu0 %v44
  %v117 = vpop.f32.mrb[0].mxu0
  %v118 = vadd.f32 %v37, %v117
  %v119 = vpop.f32.mrb[0].mxu0
  %120 = vdwg.mxu0
  %v121 = vmax.f32 %v113, 0.0
  %v122 = vmax.f32 %v118, 0.0
  %v123 = vld [vmem:[%s3] sm:$0xff]
  %v124 = vld [vmem:[%s3 + $0x8] sm:$0xff]
  %v125 = vld [vmem:[%s3 + $0x10] sm:$0xff]
  %v126 = vld [vmem:[%s3 + $0x18] sm:$0xff]
  %v127 = vld [vmem:[%s3 + $0x20] sm:$0xff]
  %v128 = vld [vmem:[%s3 + $0x28] sm:$0xff]
  %v129 = vld [vmem:[%s3 + $0x30] sm:$0xff]
  %v130 = vld [vmem:[%s3 + $0x38] sm:$0xff]
  %v131 = vld [vmem:[%s3 + $0x40] sm:$0xff]
  %v132 = vld [vmem:[%s3 + $0x48] sm:$0xff]
  %v133 = vld [vmem:[%s3 + $0x50] sm:$0xff]
  %v134 = vld [vmem:[%s3 + $0x58] sm:$0xff]
  %v135 = vld [vmem:[%s3 + $0x60] sm:$0xff]
  %v136 = vld [vmem:[%s3 + $0x68] sm:$0xff]
  %v137 = vld [vmem:[%s3 + $0x70] sm:$0xff]
  %v138 = vld [vmem:[%s3 + $0x78] sm:$0xff]
  %v139 = vld [vmem:[%s4] sm:$0x1]
  %v141 = vlaneseq
  %v142 = vshrl.u32 %v141, 7
  %v143 = vsub.s32 0, %v142
  %v144 = vrot.slane %v139, %v143
  %146 = vmatprep.subr.mxu0 0.0
  %147 = vmatpush1.msra.mxu0 %v123
  %148 = vmatprep.subr.mxu0 0.0
  %149 = vmatpush1.msra.mxu0 %v124
  %150 = vmatprep.subr.mxu0 0.0
  %151 = vmatpush1.msra.mxu0 %v125
  %152 = vmatprep.subr.mxu0 0.0
  %153 = vmatpush1.msra.mxu0 %v126
  %154 = vmatprep.subr.mxu0 0.0
  %155 = vmatpush1.msra.mxu0 %v127
  %156 = vmatprep.subr.mxu0 0.0
  %157 = vmatpush1.msra.mxu0 %v128
  %158 = vmatprep.subr.mxu0 0.0
  %159 = vmatpush1.msra.mxu0 %v129
  %160 = vmatprep.subr.mxu0 0.0
  %161 = vmatpush1.msra.mxu0 %v130
  %162 = vmatprep.subr.mxu0 0.0
  %163 = vmatpush1.msra.mxu0 %v131
  %164 = vmatprep.subr.mxu0 0.0
  %165 = vmatpush1.msra.mxu0 %v132
  %166 = vmatprep.subr.mxu0 0.0
  %167 = vmatpush1.msra.mxu0 %v133
  %168 = vmatprep.subr.mxu0 0.0
  %169 = vmatpush1.msra.mxu0 %v134
  %170 = vmatprep.subr.mxu0 0.0
  %171 = vmatpush1.msra.mxu0 %v135
  %172 = vmatprep.subr.mxu0 0.0
  %173 = vmatpush1.msra.mxu0 %v136
  %174 = vmatprep.subr.mxu0 0.0
  %175 = vmatpush1.msra.mxu0 %v137
  %176 = vmatprep.subr.mxu0 0.0
  %177 = vmatpush1.msra.mxu0 %v138
  %178 = vmatprep.subr.mxu0 0.0
  %179 = vmatpush1.msra.mxu0 0.0
  %180 = vmatprep.subr.mxu0 0.0
  %181 = vmatpush1.msra.mxu0 0.0
  %182 = vmatprep.subr.mxu0 0.0
  %183 = vmatpush1.msra.mxu0 0.0
  %184 = vmatprep.subr.mxu0 0.0
  %185 = vmatpush1.msra.mxu0 0.0
  %186 = vmatprep.subr.mxu0 0.0
  %187 = vmatpush1.msra.mxu0 0.0
  %188 = vmatprep.subr.mxu0 0.0
  %189 = vmatpush1.msra.mxu0 0.0
  %190 = vmatprep.subr.mxu0 0.0
  %191 = vmatpush1.msra.mxu0 0.0
  %192 = vmatprep.subr.mxu0 0.0
  %193 = vmatpush1.msra.mxu0 0.0
  %194 = vmatprep.subr.mxu0 0.0
  %195 = vmatpush1.msra.mxu0 0.0
  %196 = vmatprep.subr.mxu0 0.0
  %197 = vmatpush1.msra.mxu0 0.0
  %198 = vmatprep.subr.mxu0 0.0
  %199 = vmatpush1.msra.mxu0 0.0
  %200 = vmatprep.subr.mxu0 0.0
  %201 = vmatpush1.msra.mxu0 0.0
  %202 = vmatprep.subr.mxu0 0.0
  %203 = vmatpush1.msra.mxu0 0.0
  %204 = vmatprep.subr.mxu0 0.0
  %205 = vmatpush1.msra.mxu0 0.0
  %206 = vmatprep.subr.mxu0 0.0
  %207 = vmatpush1.msra.mxu0 0.0
  %208 = vmatprep.subr.mxu0 0.0
  %209 = vmatpush1.msra.mxu0 0.0
  %210 = vmatprep.mubr.f32.mxu0 0.0
  %211 = vmatmul.mubr.f32.gmra.mrb[0].mxu0 %v121
  %v212 = vpop.f32.mrb[0].mxu0
  %v213 = vadd.f32 %v144, %v212
  %v214 = vpop.f32.mrb[0].mxu0
  %215 = vmatprep.mubr.f32.mxu0 0.0
  %216 = vmatmul.mubr.f32.gmra.mrb[0].mxu0 %v122
  %v217 = vpop.f32.mrb[0].mxu0
  %v218 = vadd.f32 %v144, %v217
  %v219 = vpop.f32.mrb[0].mxu0
  %220 = vdwg.mxu0
  %v221 = vadd.f32 %v213, %v213
  %v222 = vadd.f32 %v218, %v218
  %v223 = vsel %vm39, %v221, 0.0
  %224 = vadd.xlane.f32.xlu0 %v223
  %v225 = vpop.xlane.xlu0 %224
  %v226 = vsel %vm39, %v222, 0.0
  %227 = vadd.xlane.f32.xlu0 %v226
  %v228 = vpop.xlane.xlu0 %227
  %v229 = vrcp.pop 32.0
  %v230 = vmul.f32 %v225, %v229
  %v231 = vmul.f32 %v228, %v229
  %v232 = vsub.f32 %v221, %v230
  %v233 = vsub.f32 %v222, %v231
  %v234 = vmul.f32 %v232, %v232
  %v235 = vmul.f32 %v233, %v233
  %v236 = vsel %vm39, %v234, 0.0
  %237 = vadd.xlane.f32.xlu0 %v236
  %v238 = vpop.xlane.xlu0 %237
  %v239 = vsel %vm39, %v235, 0.0
  %240 = vadd.xlane.f32.xlu0 %v239
  %v241 = vpop.xlane.xlu0 %240
  %v242 = vmul.f32 %v238, %v229
  %v243 = vmul.f32 %v241, %v229
  %v244 = vadd.f32 %v242, 1e-05
  %v245 = vadd.f32 %v243, 1e-05
  %v246 = vrsqrt.pop %v244
  %v247 = vrsqrt.pop %v245
  %v248 = vmul.f32 %v232, %v246
  %v249 = vmul.f32 %v233, %v247
  %v250 = vld [vmem:[%s5] sm:$0x1]
  %v252 = vlaneseq
  %v253 = vshrl.u32 %v252, 7
  %v254 = vsub.s32 0, %v253
  %v255 = vrot.slane %v250, %v254
  %v257 = vmul.f32 %v248, %v255
  %v258 = vmul.f32 %v249, %v255
  %v259 = vld [vmem:[%s6] sm:$0x1]
  %v261 = vlaneseq
  %v262 = vshrl.u32 %v261, 7
  %v263 = vsub.s32 0, %v262
  %v264 = vrot.slane %v259, %v263
  %v266 = vadd.f32 %v257, %v264
  %v267 = vadd.f32 %v258, %v264
  %268 = vst.msk [vmem:[%s7] sm:$0xff] %vm39, %v266
  %269 = vst.msk [vmem:[%s7 + $0x8] sm:$0xff] %vm39, %v267
  // Predicated region
  $region30: #{decoder.24} parent=0 // pred_check
    _
  $region31: #{decoder.24} parent=0 // pred_check_branch
    %271 = sbr.rel (0) target = $region33
  $region32: #{decoder.24} parent=0 // pred_region
    _
  $region33: #{decoder.24} parent=0 // pred_fallthru
    _
  // Predicated region
  $region34: #{decoder.24} parent=0 // pred_check
    _
  $region35: #{decoder.24} parent=0 // pred_check_branch
    %273 = sbr.rel (0) target = $region37
  $region36: #{decoder.24} parent=0 // pred_region
    _
  $region37: #{decoder.24} parent=0 // pred_fallthru
    _

// kernel: decoder.22
$region0: #{decoder.22}
  #allocation0 [shape = 'u32[]', space=smem, size = 0x4, offset = 0x4, fixed_abs, tag = 'smem constant byte address 0x4 - core index']
  #allocation1 [shape = 'u32[144,128]{1,0:T(1,128)}', space=vmem, size = 0x12000, scoped, tag = 'internal scratch']
  %s0 = inlined_call_operand.vmem [shape: f32[2,8,32], index: 0, kind: input, shape index: {}]
  %s1 = inlined_call_operand.vmem [shape: f32[2,8,64], index: 1, kind: input, shape index: {}]
  %s2 = inlined_call_operand.vmem [shape: f32[2,8,32], index: 2, kind: output, shape index: {}]
  %s3 = sld [smem:[#allocation0]]
  $region41: #{decoder.22} parent=0
    _
  %s5 = ssub.s32 1, %s3
  %s6 = scalar_select 0, %s5, %s3
  loop: start=0, step=1, limit=4
  $region2: #{decoder.22} parent=0 // loop_pre_header
    _
  $region3: #{decoder.22} parent=0 // loop_header
    %s8 = sphi 0, %s12
    %p9 = scmp.ge.s32.totalorder %s8, 4
    %s18 = sphi 0, %s20
    %s21 = sphi 0, %s18
    %s22 = sphi 0, %s21
    %s38 = sphi 0, %s22
    %s44 = sphi 0, %s46
    %s47 = sphi 0, %s44
    %s48 = sphi 0, %s47
    %s64 = sphi 0, %s48
    %s70 = sphi 0, %s72
    %s73 = sphi 0, %s70
    %s74 = sphi 0, %s73
    %s90 = sphi 0, %s74
  $region4: #{decoder.22} parent=0 // loop_header_branch
    %11 = sbr.rel (%p9) target = $region8
  $region5: #{decoder.22} parent=0 // loop_body
    %s13 = ssub.s32 %s8, 1
    %s14 = ssub.s32 %s8, 2
    %s15 = sadd.s32 %s8, 1
    %s16 = ssub.s32 %s8, %s15
    %p17 = scmp.eq.s32.totalorder %s16, 0
    %s19 = sadd.s32 %s18, 1
    %s20 = scalar_select %p17, %s18, %s19
    %p23 = pneg %p17
    %p24 = scmp.eq.s32.totalorder %s8, 1
    %p25 = por %p23, %p24
    %p26 = scmp.ne.s32.totalorder %s18, %s21
    %p27 = scmp.eq.s32.totalorder %s8, 0
    %p28 = por %p26, %p27
    %p29 = scmp.ne.s32.totalorder %s18, %s21
    %p30 = scmp.eq.s32.totalorder %s13, 1
    %p31 = por %p29, %p30
    %p32 = scmp.ne.s32.totalorder %s21, %s22
    %p33 = scmp.eq.s32.totalorder %s13, 0
    %p34 = por %p32, %p33
    %p35 = scmp.ne.s32.totalorder %s21, %s22
    %p36 = scmp.eq.s32.totalorder %s14, 1
    %p37 = por %p35, %p36
    %p39 = scmp.ne.s32.totalorder %s22, %s38
    %p40 = scmp.eq.s32.totalorder %s14, 0
    %p41 = por %p39, %p40
    %s42 = ssub.s32 %s8, %s15
    %p43 = scmp.eq.s32.totalorder %s42, 0
    %s45 = sadd.s32 %s44, 1
    %s46 = scalar_select %p43, %s44, %s45
    %p49 = pneg %p43
    %p50 = scmp.eq.s32.totalorder %s8, 1
    %p51 = por %p49, %p50
    %p52 = scmp.ne.s32.totalorder %s44, %s47
    %p53 = scmp.eq.s32.totalorder %s8, 0
    %p54 = por %p52, %p53
    %p55 = scmp.ne.s32.totalorder %s44, %s47
    %p56 = scmp.eq.s32.totalorder %s13, 1
    %p57 = por %p55, %p56
    %p58 = scmp.ne.s32.totalorder %s47, %s48
    %p59 = scmp.eq.s32.totalorder %s13, 0
    %p60 = por %p58, %p59
    %p61 = scmp.ne.s32.totalorder %s47, %s48
    %p62 = scmp.eq.s32.totalorder %s14, 1
    %p63 = por %p61, %p62
    %p65 = scmp.ne.s32.totalorder %s48, %s64
    %p66 = scmp.eq.s32.totalorder %s14, 0
    %p67 = por %p65, %p66
    %s68 = ssub.s32 %s8, %s15
    %p69 = scmp.eq.s32.totalorder %s68, 0
    %s71 = sadd.s32 %s70, 1
    %s72 = scalar_select %p69, %s70, %s71
    %p75 = pneg %p69
    %p76 = scmp.eq.s32.totalorder %s8, 1
    %p77 = por %p75, %p76
    %p78 = scmp.ne.s32.totalorder %s70, %s73
    %p79 = scmp.eq.s32.totalorder %s8, 0
    %p80 = por %p78, %p79
    %p81 = scmp.ne.s32.totalorder %s70, %s73
    %p82 = scmp.eq.s32.totalorder %s13, 1
    %p83 = por %p81, %p82
    %p84 = scmp.ne.s32.totalorder %s73, %s74
    %p85 = scmp.eq.s32.totalorder %s13, 0
    %p86 = por %p84, %p85
    %p87 = scmp.ne.s32.totalorder %s73, %s74
    %p88 = scmp.eq.s32.totalorder %s14, 1
    %p89 = por %p87, %p88
    %p91 = scmp.ne.s32.totalorder %s74, %s90
    %p92 = scmp.eq.s32.totalorder %s14, 0
    %p93 = por %p91, %p92
    %p94 = scmp.le.s32.totalorder 1, %s8
    %p95 = scmp.lt.s32.totalorder %s8, 3
    %p96 = pnand %p94, %p95
    %p97 = pneg %p96
    // Predicated region
    $region9: #{decoder.22} parent=5 // pred_check
      _
    $region10: #{decoder.22} parent=5 // pred_check_branch
      %99 = sbr.rel (%p96) target = $region12
    $region11: #{decoder.22} parent=5 // pred_region
      %s100 = ssub.s32 %s8, 1
    $region12: #{decoder.22} parent=5 // pred_fallthru
      _
    %p101 = scmp.lt.s32.totalorder %s8, 2
    // Predicated region
    $region13: #{decoder.22} parent=5 // pred_check
      %p102 = pneg %p101
    $region14: #{decoder.22} parent=5 // pred_check_branch
      %104 = sbr.rel (%p102) target = $region16
    $region15: #{decoder.22} parent=5 // pred_region
      // Predicated region
      $region17: #{decoder.22} parent=15 // pred_check
        %p105 = pneg %p28
      $region18: #{decoder.22} parent=15 // pred_check_branch
        %107 = sbr.rel (%p105) target = $region20
      $region19: #{decoder.22} parent=15 // pred_region
        %p108 = scmp.lt.s32.totalorder %s8, 1
        %s109 = scalar_select %p108, %s8, 1
        %s110 = smul.addr %s109, 8
        %s111 = scalar_lea.vmem %s0, %s110
      $region20: #{decoder.22} parent=15 // pred_fallthru
        _
      // Predicated region
      $region21: #{decoder.22} parent=15 // pred_check
        %p112 = pneg %p54
      $region22: #{decoder.22} parent=15 // pred_check_branch
        %114 = sbr.rel (%p112) target = $region24
      $region23: #{decoder.22} parent=15 // pred_region
        %p115 = scmp.lt.s32.totalorder %s8, 1
        %s116 = scalar_select %p115, %s8, 1
        %s117 = smul.addr %s116, 8
        %s118 = scalar_lea.vmem %s1, %s117
      $region24: #{decoder.22} parent=15 // pred_fallthru
        _
    $region16: #{decoder.22} parent=5 // pred_fallthru
      _
    %p119 = scmp.le.s32.totalorder 1, %s8
    %p120 = scmp.lt.s32.totalorder %s8, 3
    %p121 = pnand %p119, %p120
    %p122 = pneg %p121
    // Predicated region
    $region25: #{decoder.22} parent=5 // pred_check
      _
    $region26: #{decoder.22} parent=5 // pred_check_branch
      %124 = sbr.rel (%p121) target = $region28
    $region27: #{decoder.22} parent=5 // pred_region
      %s125 = ssub.s32 %s8, 1
      %p126 = scmp.lt.s32.totalorder %s13, 1
      %s127 = scalar_select %p126, %s13, 1
      %s128 = smul.addr %s127, 8
      %s129 = scalar_lea.vmem %s0, %s128
      %p130 = pneg %p34
      %p131 = pneg %p31
      %p132 = scmp.lt.s32.totalorder %s13, 1
      %s133 = scalar_select %p132, %s13, 1
      %s134 = smul.addr %s133, 8
      %s135 = scalar_lea.vmem %s1, %s134
      %p136 = pneg %p60
      %p137 = pneg %p57
      %p138 = pneg %p86
      %p139 = pneg %p83
      %p140 = scmp.lt.s32.totalorder %s13, 1
      %s141 = scalar_select %p140, %s13, 1
      %s142 = smul.addr %s141, 8
      %s143 = scalar_lea.vmem %s2, %s142
      %p144 = scmp.lt.s32.totalorder %s13, 1
      %s145 = scalar_select %p144, %s13, 1
      %s146 = smul.addr %s145, 8
      %s147 = scalar_lea.vmem %s0, %s146
      %p148 = scmp.lt.s32.totalorder %s13, 1
      %s149 = scalar_select %p148, %s13, 1
      %s150 = smul.addr %s149, 8
      %s151 = scalar_lea.vmem %s1, %s150
      %p152 = scmp.lt.s32.totalorder %s13, 1
      %s153 = scalar_select %p152, %s13, 1
      %s154 = smul.addr %s153, 8
      %s155 = scalar_lea.vmem %s2, %s154
      %v156 = vld [vmem:[%s147] sm:$0xff]
      %v157 = vld [vmem:[%s151] sm:$0xff]
      %vm158 = vcmask 64512
      %v160 = vsel %vm158, %v156, 0
      %v163 = vsel %vm158, %v157, 0
      %165 = vmatprep.subr.mxu0 0.0
      %166 = vmatpush1.xpose.msra.mxu0 %v163
      %167 = vmatprep.subr.mxu0 0.0
      %168 = vmatpush1.xpose.msra.mxu0 0.0
      %169 = vmatprep.subr.mxu0 0.0
      %170 = vmatpush1.xpose.msra.mxu0 0.0
      %171 = vmatprep.subr.mxu0 0.0
      %172 = vmatpush1.xpose.msra.mxu0 0.0
      %173 = vmatprep.subr.mxu0 0.0
      %174 = vmatpush1.xpose.msra.mxu0 0.0
      %175 = vmatprep.subr.mxu0 0.0
      %176 = vmatpush1.xpose.msra.mxu0 0.0
      %177 = vmatprep.subr.mxu0 0.0
      %178 = vmatpush1.xpose.msra.mxu0 0.0
      %179 = vmatprep.subr.mxu0 0.0
      %180 = vmatpush1.xpose.msra.mxu0 0.0
      %181 = vmatprep.subr.mxu0 0.0
      %182 = vmatpush1.xpose.msra.mxu0 0.0
      %183 = vmatprep.subr.mxu0 0.0
      %184 = vmatpush1.xpose.msra.mxu0 0.0
      %185 = vmatprep.subr.mxu0 0.0
      %186 = vmatpush1.xpose.msra.mxu0 0.0
      %187 = vmatprep.subr.mxu0 0.0
      %188 = vmatpush1.xpose.msra.mxu0 0.0
      %189 = vmatprep.subr.mxu0 0.0
      %190 = vmatpush1.xpose.msra.mxu0 0.0
      %191 = vmatprep.subr.mxu0 0.0
      %192 = vmatpush1.xpose.msra.mxu0 0.0
      %193 = vmatprep.subr.mxu0 0.0
      %194 = vmatpush1.xpose.msra.mxu0 0.0
      %195 = vmatprep.subr.mxu0 0.0
      %196 = vmatpush1.xpose.msra.mxu0 0.0
      %197 = vmatprep.subr.mxu0 0.0
      %198 = vmatpush1.xpose.msra.mxu0 0.0
      %199 = vmatprep.subr.mxu0 0.0
      %200 = vmatpush1.xpose.msra.mxu0 0.0
      %201 = vmatprep.subr.mxu0 0.0
      %202 = vmatpush1.xpose.msra.mxu0 0.0
      %203 = vmatprep.subr.mxu0 0.0
      %204 = vmatpush1.xpose.msra.mxu0 0.0
      %205 = vmatprep.subr.mxu0 0.0
      %206 = vmatpush1.xpose.msra.mxu0 0.0
      %207 = vmatprep.subr.mxu0 0.0
      %208 = vmatpush1.xpose.msra.mxu0 0.0
      %209 = vmatprep.subr.mxu0 0.0
      %210 = vmatpush1.xpose.msra.mxu0 0.0
      %211 = vmatprep.subr.mxu0 0.0
      %212 = vmatpush1.xpose.msra.mxu0 0.0
      %213 = vmatprep.subr.mxu0 0.0
      %214 = vmatpush1.xpose.msra.mxu0 0.0
      %215 = vmatprep.subr.mxu0 0.0
      %216 = vmatpush1.xpose.msra.mxu0 0.0
      %217 = vmatprep.subr.mxu0 0.0
      %218 = vmatpush1.xpose.msra.mxu0 0.0
      %219 = vmatprep.subr.mxu0 0.0
      %220 = vmatpush1.xpose.msra.mxu0 0.0
      %221 = vmatprep.subr.mxu0 0.0
      %222 = vmatpush1.xpose.msra.mxu0 0.0
      %223 = vmatprep.subr.mxu0 0.0
      %224 = vmatpush1.xpose.msra.mxu0 0.0
      %225 = vmatprep.subr.mxu0 0.0
      %226 = vmatpush1.xpose.msra.mxu0 0.0
      %227 = vmatprep.subr.mxu0 0.0
      %228 = vmatpush1.xpose.msra.mxu0 0.0
      %229 = vmatprep.mubr.f32.mxu0 0.0
      %230 = vmatmul.mubr.f32.gmra.mrb[0].mxu0 %v160
      %v231 = vpop.f32.mrb[0].mxu0
      %v232 = vadd.f32 0.0, %v231
      %v233 = vpop.f32.mrb[0].mxu0
      %234 = vdwg.mxu0
      %v235 = vmul.f32 %v232, 0.35355338
      %v236 = vsel %vm158, %v235, -inf
      %237 = vmax.xlane.f32.xlu0 %v236
      %v238 = vpop.xlane.xlu0 %237
      %v239 = vsub.f32 %v235, %v238
      %v240 = vmul.f32 %v239, 1.442695
      %v241 = vpow.pop %v240
      %v242 = vsel %vm158, %v241, 0.0
      %243 = vadd.xlane.f32.xlu0 %v242
      %v244 = vpop.xlane.xlu0 %243
      %245 = vrot.lane.b32.xlu0 %v157, 96
      %v246 = vpop.permute.xlu0 %245
      %v249 = vsel %vm158, %v241, 0
      %251 = vmatprep.subr.mxu0 0.0
      %252 = vmatpush1.msra.mxu0 %v246
      %253 = vmatprep.subr.mxu0 0.0
      %254 = vmatpush1.msra.mxu0 0.0
      %255 = vmatprep.subr.mxu0 0.0
      %256 = vmatpush1.msra.mxu0 0.0
      %257 = vmatprep.subr.mxu0 0.0
      %258 = vmatpush1.msra.mxu0 0.0
      %259 = vmatprep.subr.mxu0 0.0
      %260 = vmatpush1.msra.mxu0 0.0
      %261 = vmatprep.subr.mxu0 0.0
      %262 = vmatpush1.msra.mxu0 0.0
      %263 = vmatprep.subr.mxu0 0.0
      %264 = vmatpush1.msra.mxu0 0.0
      %265 = vmatprep.subr.mxu0 0.0
      %266 = vmatpush1.msra.mxu0 0.0
      %267 = vmatprep.subr.mxu0 0.0
      %268 = vmatpush1.msra.mxu0 0.0
      %269 = vmatprep.subr.mxu0 0.0
      %270 = vmatpush1.msra.mxu0 0.0
      %271 = vmatprep.subr.mxu0 0.0
      %272 = vmatpush1.msra.mxu0 0.0
      %273 = vmatprep.subr.mxu0 0.0
      %274 = vmatpush1.msra.mxu0 0.0
      %275 = vmatprep.subr.mxu0 0.0
      %276 = vmatpush1.msra.mxu0 0.0
      %277 = vmatprep.subr.mxu0 0.0
      %278 = vmatpush1.msra.mxu0 0.0
      %279 = vmatprep.subr.mxu0 0.0
      %280 = vmatpush1.msra.mxu0 0.0
      %281 = vmatprep.subr.mxu0 0.0
      %282 = vmatpush1.msra.mxu0 0.0
      %283 = vmatprep.subr.mxu0 0.0
      %284 = vmatpush1.msra.mxu0 0.0
      %285 = vmatprep.subr.mxu0 0.0
      %286 = vmatpush1.msra.mxu0 0.0
      %287 = vmatprep.subr.mxu0 0.0
      %288 = vmatpush1.msra.mxu0 0.0
      %289 = vmatprep.subr.mxu0 0.0
      %290 = vmatpush1.msra.mxu0 0.0
      %291 = vmatprep.subr.mxu0 0.0
      %292 = vmatpush1.msra.mxu0 0.0
      %293 = vmatprep.subr.mxu0 0.0
      %294 = vmatpush1.msra.mxu0 0.0
      %295 = vmatprep.subr.mxu0 0.0
      %296 = vmatpush1.msra.mxu0 0.0
      %297 = vmatprep.subr.mxu0 0.0
      %298 = vmatpush1.msra.mxu0 0.0
      %299 = vmatprep.subr.mxu0 0.0
      %300 = vmatpush1.msra.mxu0 0.0
      %301 = vmatprep.subr.mxu0 0.0
      %302 = vmatpush1.msra.mxu0 0.0
      %303 = vmatprep.subr.mxu0 0.0
      %304 = vmatpush1.msra.mxu0 0.0
      %305 = vmatprep.subr.mxu0 0.0
      %306 = vmatpush1.msra.mxu0 0.0
      %307 = vmatprep.subr.mxu0 0.0
      %308 = vmatpush1.msra.mxu0 0.0
      %309 = vmatprep.subr.mxu0 0.0
      %310 = vmatpush1.msra.mxu0 0.0
      %311 = vmatprep.subr.mxu0 0.0
      %312 = vmatpush1.msra.mxu0 0.0
      %313 = vmatprep.subr.mxu0 0.0
      %314 = vmatpush1.msra.mxu0 0.0
      %315 = vmatprep.mubr.f32.mxu0 0.0
      %316 = vmatmul.mubr.f32.gmra.mrb[0].mxu0 %v249
      %v317 = vpop.f32.mrb[0].mxu0
      %v318 = vadd.f32 0.0, %v317
      %v319 = vpop.f32.mrb[0].mxu0
      %320 = vdwg.mxu0
      %v321 = vrcp.pop %v244
      %v322 = vmul.f32 %v318, %v321
      %323 = vst.msk [vmem:[%s155] sm:$0xff] %vm158, %v322
      %v324 = vld [vmem:[%s147] sm:$0xff]
      %v325 = vld [vmem:[%s151] sm:$0xff]
      %327 = vrot.lane.b32.xlu0 %v324, 120
      %v328 = vpop.permute.xlu0 %327
      %330 = vrot.lane.b32.xlu0 %v325, 120
      %v331 = vpop.permute.xlu0 %330
      %v332 = vsel %vm158, %v328, 0
      %v334 = vsel %vm158, %v331, 0
      %336 = vmatprep.subr.mxu0 0.0
      %337 = vmatpush1.xpose.msra.mxu0 %v334
      %338 = vmatprep.subr.mxu0 0.0
      %339 = vmatpush1.xpose.msra.mxu0 0.0
      %340 = vmatprep.subr.mxu0 0.0
      %341 = vmatpush1.xpose.msra.mxu0 0.0
      %342 = vmatprep.subr.mxu0 0.0
      %343 = vmatpush1.xpose.msra.mxu0 0.0
      %344 = vmatprep.subr.mxu0 0.0
      %345 = vmatpush1.xpose.msra.mxu0 0.0
      %346 = vmatprep.subr.mxu0 0.0
      %347 = vmatpush1.xpose.msra.mxu0 0.0
      %348 = vmatprep.subr.mxu0 0.0
      %349 = vmatpush1.xpose.msra.mxu0 0.0
      %350 = vmatprep.subr.mxu0 0.0
      %351 = vmatpush1.xpose.msra.mxu0 0.0
      %352 = vmatprep.subr.mxu0 0.0
      %353 = vmatpush1.xpose.msra.mxu0 0.0
      %354 = vmatprep.subr.mxu0 0.0
      %355 = vmatpush1.xpose.msra.mxu0 0.0
      %356 = vmatprep.subr.mxu0 0.0
      %357 = vmatpush1.xpose.msra.mxu0 0.0
      %358 = vmatprep.subr.mxu0 0.0
      %359 = vmatpush1.xpose.msra.mxu0 0.0
      %360 = vmatprep.subr.mxu0 0.0
      %361 = vmatpush1.xpose.msra.mxu0 0.0
      %362 = vmatprep.subr.mxu0 0.0
      %363 = vmatpush1.xpose.msra.mxu0 0.0
      %364 = vmatprep.subr.mxu0 0.0
      %365 = vmatpush1.xpose.msra.mxu0 0.0
      %366 = vmatprep.subr.mxu0 0.0
      %367 = vmatpush1.xpose.msra.mxu0 0.0
      %368 = vmatprep.subr.mxu0 0.0
      %369 = vmatpush1.xpose.msra.mxu0 0.0
      %370 = vmatprep.subr.mxu0 0.0
      %371 = vmatpush1.xpose.msra.mxu0 0.0
      %372 = vmatprep.subr.mxu0 0.0
      %373 = vmatpush1.xpose.msra.mxu0 0.0
      %374 = vmatprep.subr.mxu0 0.0
      %375 = vmatpush1.xpose.msra.mxu0 0.0
      %376 = vmatprep.subr.mxu0 0.0
      %377 = vmatpush1.xpose.msra.mxu0 0.0
      %378 = vmatprep.subr.mxu0 0.0
      %379 = vmatpush1.xpose.msra.mxu0 0.0
      %380 = vmatprep.subr.mxu0 0.0
      %381 = vmatpush1.xpose.msra.mxu0 0.0
      %382 = vmatprep.subr.mxu0 0.0
      %383 = vmatpush1.xpose.msra.mxu0 0.0
      %384 = vmatprep.subr.mxu0 0.0
      %385 = vmatpush1.xpose.msra.mxu0 0.0
      %386 = vmatprep.subr.mxu0 0.0
      %387 = vmatpush1.xpose.msra.mxu0 0.0
      %388 = vmatprep.subr.mxu0 0.0
      %389 = vmatpush1.xpose.msra.mxu0 0.0
      %390 = vmatprep.subr.mxu0 0.0
      %391 = vmatpush1.xpose.msra.mxu0 0.0
      %392 = vmatprep.subr.mxu0 0.0
      %393 = vmatpush1.xpose.msra.mxu0 0.0
      %394 = vmatprep.subr.mxu0 0.0
      %395 = vmatpush1.xpose.msra.mxu0 0.0
      %396 = vmatprep.subr.mxu0 0.0
      %397 = vmatpush1.xpose.msra.mxu0 0.0
      %398 = vmatprep.subr.mxu0 0.0
      %399 = vmatpush1.xpose.msra.mxu0 0.0
      %400 = vmatprep.mubr.f32.mxu0 0.0
      %401 = vmatmul.mubr.f32.gmra.mrb[0].mxu0 %v332
      %v402 = vpop.f32.mrb[0].mxu0
      %v403 = vadd.f32 0.0, %v402
      %v404 = vpop.f32.mrb[0].mxu0
      %405 = vdwg.mxu0
      %v406 = vmul.f32 %v403, 0.35355338
      %v407 = vsel %vm158, %v406, -inf
      %408 = vmax.xlane.f32.xlu0 %v407
      %v409 = vpop.xlane.xlu0 %408
      %v410 = vsub.f32 %v406, %v409
      %v411 = vmul.f32 %v410, 1.442695
      %v412 = vpow.pop %v411
      %v413 = vsel %vm158, %v412, 0.0
      %414 = vadd.xlane.f32.xlu0 %v413
      %v415 = vpop.xlane.xlu0 %414
      %416 = vrot.lane.b32.xlu0 %v325, 88
      %v417 = vpop.permute.xlu0 %416
      %v420 = vsel %vm158, %v412, 0
      %422 = vmatprep.subr.mxu0 0.0
      %423 = vmatpush1.msra.mxu0 %v417
      %424 = vmatprep.subr.mxu0 0.0
      %425 = vmatpush1.msra.mxu0 0.0
      %426 = vmatprep.subr.mxu0 0.0
      %427 = vmatpush1.msra.mxu0 0.0
      %428 = vmatprep.subr.mxu0 0.0
      %429 = vmatpush1.msra.mxu0 0.0
      %430 = vmatprep.subr.mxu0 0.0
      %431 = vmatpush1.msra.mxu0 0.0
      %432 = vmatprep.subr.mxu0 0.0
      %433 = vmatpush1.msra.mxu0 0.0
      %434 = vmatprep.subr.mxu0 0.0
      %435 = vmatpush1.msra.mxu0 0.0
      %436 = vmatprep.subr.mxu0 0.0
      %437 = vmatpush1.msra.mxu0 0.0
      %438 = vmatprep.subr.mxu0 0.0
      %439 = vmatpush1.msra.mxu0 0.0
      %440 = vmatprep.subr.mxu0 0.0
      %441 = vmatpush1.msra.mxu0 0.0
      %442 = vmatprep.subr.mxu0 0.0
      %443 = vmatpush1.msra.mxu0 0.0
      %444 = vmatprep.subr.mxu0 0.0
      %445 = vmatpush1.msra.mxu0 0.0
      %446 = vmatprep.subr.mxu0 0.0
      %447 = vmatpush1.msra.mxu0 0.0
      %448 = vmatprep.subr.mxu0 0.0
      %449 = vmatpush1.msra.mxu0 0.0
      %450 = vmatprep.subr.mxu0 0.0
      %451 = vmatpush1.msra.mxu0 0.0
      %452 = vmatprep.subr.mxu0 0.0
      %453 = vmatpush1.msra.mxu0 0.0
      %454 = vmatprep.subr.mxu0 0.0
      %455 = vmatpush1.msra.mxu0 0.0
      %456 = vmatprep.subr.mxu0 0.0
      %457 = vmatpush1.msra.mxu0 0.0
      %458 = vmatprep.subr.mxu0 0.0
      %459 = vmatpush1.msra.mxu0 0.0
      %460 = vmatprep.subr.mxu0 0.0
      %461 = vmatpush1.msra.mxu0 0.0
      %462 = vmatprep.subr.mxu0 0.0
      %463 = vmatpush1.msra.mxu0 0.0
      %464 = vmatprep.subr.mxu0 0.0
      %465 = vmatpush1.msra.mxu0 0.0
      %466 = vmatprep.subr.mxu0 0.0
      %467 = vmatpush1.msra.mxu0 0.0
      %468 = vmatprep.subr.mxu0 0.0
      %469 = vmatpush1.msra.mxu0 0.0
      %470 = vmatprep.subr.mxu0 0.0
      %471 = vmatpush1.msra.mxu0 0.0
      %472 = vmatprep.subr.mxu0 0.0
      %473 = vmatpush1.msra.mxu0 0.0
      %474 = vmatprep.subr.mxu0 0.0
      %475 = vmatpush1.msra.mxu0 0.0
      %476 = vmatprep.subr.mxu0 0.0
      %477 = vmatpush1.msra.mxu0 0.0
      %478 = vmatprep.subr.mxu0 0.0
      %479 = vmatpush1.msra.mxu0 0.0
      %480 = vmatprep.subr.mxu0 0.0
      %481 = vmatpush1.msra.mxu0 0.0
      %482 = vmatprep.subr.mxu0 0.0
      %483 = vmatpush1.msra.mxu0 0.0
      %484 = vmatprep.subr.mxu0 0.0
      %485 = vmatpush1.msra.mxu0 0.0
      %486 = vmatprep.mubr.f32.mxu0 0.0
      %487 = vmatmul.mubr.f32.gmra.mrb[0].mxu0 %v420
      %v488 = vpop.f32.mrb[0].mxu0
      %v489 = vadd.f32 0.0, %v488
      %v490 = vpop.f32.mrb[0].mxu0
      %491 = vdwg.mxu0
      %v492 = vrcp.pop %v415
      %v493 = vmul.f32 %v489, %v492
      %495 = vrot.lane.b32.xlu0 %v493, 8
      %v496 = vpop.permute.xlu0 %495
      %vm498 = vcmask 130112
      %499 = vst.msk [vmem:[%s155] sm:$0xff] %vm498, %v496
      %v500 = vld [vmem:[%s147] sm:$0xff]
      %v501 = vld [vmem:[%s151] sm:$0xff]
      %503 = vrot.lane.b32.xlu0 %v500, 112
      %v504 = vpop.permute.xlu0 %503
      %506 = vrot.lane.b32.xlu0 %v501, 112
      %v507 = vpop.permute.xlu0 %506
      %v508 = vsel %vm158, %v504, 0
      %v510 = vsel %vm158, %v507, 0
      %512 = vmatprep.subr.mxu0 0.0
      %513 = vmatpush1.xpose.msra.mxu0 %v510
      %514 = vmatprep.subr.mxu0 0.0
      %515 = vmatpush1.xpose.msra.mxu0 0.0
      %516 = vmatprep.subr.mxu0 0.0
      %517 = vmatpush1.xpose.msra.mxu0 0.0
      %518 = vmatprep.subr.mxu0 0.0
      %519 = vmatpush1.xpose.msra.mxu0 0.0
      %520 = vmatprep.subr.mxu0 0.0
      %521 = vmatpush1.xpose.msra.mxu0 0.0
      %522 = vmatprep.subr.mxu0 0.0
      %523 = vmatpush1.xpose.msra.mxu0 0.0
      %524 = vmatprep.subr.mxu0 0.0
      %525 = vmatpush1.xpose.msra.mxu0 0.0
      %526 = vmatprep.subr.mxu0 0.0
      %527 = vmatpush1.xpose.msra.mxu0 0.0
      %528 = vmatprep.subr.mxu0 0.0
      %529 = vmatpush1.xpose.msra.mxu0 0.0
      %530 = vmatprep.subr.mxu0 0.0
      %531 = vmatpush1.xpose.msra.mxu0 0.0
      %532 = vmatprep.subr.mxu0 0.0
      %533 = vmatpush1.xpose.msra.mxu0 0.0
      %534 = vmatprep.subr.mxu0 0.0
      %535 = vmatpush1.xpose.msra.mxu0 0.0
      %536 = vmatprep.subr.mxu0 0.0
      %537 = vmatpush1.xpose.msra.mxu0 0.0
      %538 = vmatprep.subr.mxu0 0.0
      %539 = vmatpush1.xpose.msra.mxu0 0.0
      %540 = vmatprep.subr.mxu0 0.0
      %541 = vmatpush1.xpose.msra.mxu0 0.0
      %542 = vmatprep.subr.mxu0 0.0
      %543 = vmatpush1.xpose.msra.mxu0 0.0
      %544 = vmatprep.subr.mxu0 0.0
      %545 = vmatpush1.xpose.msra.mxu0 0.0
      %546 = vmatprep.subr.mxu0 0.0
      %547 = vmatpush1.xpose.msra.mxu0 0.0
      %548 = vmatprep.subr.mxu0 0.0
      %549 = vmatpush1.xpose.msra.mxu0 0.0
      %550 = vmatprep.subr.mxu0 0.0
      %551 = vmatpush1.xpose.msra.mxu0 0.0
      %552 = vmatprep.subr.mxu0 0.0
      %553 = vmatpush1.xpose.msra.mxu0 0.0
      %554 = vmatprep.subr.mxu0 0.0
      %555 = vmatpush1.xpose.msra.mxu0 0.0
      %556 = vmatprep.subr.mxu0 0.0
      %557 = vmatpush1.xpose.msra.mxu0 0.0
      %558 = vmatprep.subr.mxu0 0.0
      %559 = vmatpush1.xpose.msra.mxu0 0.0
      %560 = vmatprep.subr.mxu0 0.0
      %561 = vmatpush1.xpose.msra.mxu0 0.0
      %562 = vmatprep.subr.mxu0 0.0
      %563 = vmatpush1.xpose.msra.mxu0 0.0
      %564 = vmatprep.subr.mxu0 0.0
      %565 = vmatpush1.xpose.msra.mxu0 0.0
      %566 = vmatprep.subr.mxu0 0.0
      %567 = vmatpush1.xpose.msra.mxu0 0.0
      %568 = vmatprep.subr.mxu0 0.0
      %569 = vmatpush1.xpose.msra.mxu0 0.0
      %570 = vmatprep.subr.mxu0 0.0
      %571 = vmatpush1.xpose.msra.mxu0 0.0
      %572 = vmatprep.subr.mxu0 0.0
      %573 = vmatpush1.xpose.msra.mxu0 0.0
      %574 = vmatprep.subr.mxu0 0.0
      %575 = vmatpush1.xpose.msra.mxu0 0.0
      %576 = vmatprep.mubr.f32.mxu0 0.0
      %577 = vmatmul.mubr.f32.gmra.mrb[0].mxu0 %v508
      %v578 = vpop.f32.mrb[0].mxu0
      %v579 = vadd.f32 0.0, %v578
      %v580 = vpop.f32.mrb[0].mxu0
      %581 = vdwg.mxu0
      %v582 = vmul.f32 %v579, 0.35355338
      %v583 = vsel %vm158, %v582, -inf
      %584 = vmax.xlane.f32.xlu0 %v583
      %v585 = vpop.xlane.xlu0 %584
      %v586 = vsub.f32 %v582, %v585
      %v587 = vmul.f32 %v586, 1.442695
      %v588 = vpow.pop %v587
      %v589 = vsel %vm158, %v588, 0.0
      %590 = vadd.xlane.f32.xlu0 %v589
      %v591 = vpop.xlane.xlu0 %590
      %592 = vrot.lane.b32.xlu0 %v501, 80
      %v593 = vpop.permute.xlu0 %592
      %v596 = vsel %vm158, %v588, 0
      %598 = vmatprep.subr.mxu0 0.0
      %599 = vmatpush1.msra.mxu0 %v593
      %600 = vmatprep.subr.mxu0 0.0
      %601 = vmatpush1.msra.mxu0 0.0
      %602 = vmatprep.subr.mxu0 0.0
      %603 = vmatpush1.msra.mxu0 0.0
      %604 = vmatprep.subr.mxu0 0.0
      %605 = vmatpush1.msra.mxu0 0.0
      %606 = vmatprep.subr.mxu0 0.0
      %607 = vmatpush1.msra.mxu0 0.0
      %608 = vmatprep.subr.mxu0 0.0
      %609 = vmatpush1.msra.mxu0 0.0
      %610 = vmatprep.subr.mxu0 0.0
      %611 = vmatpush1.msra.mxu0 0.0
      %612 = vmatprep.subr.mxu0 0.0
      %613 = vmatpush1.msra.mxu0 0.0
      %614 = vmatprep.subr.mxu0 0.0
      %615 = vmatpush1.msra.mxu0 0.0
      %616 = vmatprep.subr.mxu0 0.0
      %617 = vmatpush1.msra.mxu0 0.0
      %618 = vmatprep.subr.mxu0 0.0
      %619 = vmatpush1.msra.mxu0 0.0
      %620 = vmatprep.subr.mxu0 0.0
      %621 = vmatpush1.msra.mxu0 0.0
      %622 = vmatprep.subr.mxu0 0.0
      %623 = vmatpush1.msra.mxu0 0.0
      %624 = vmatprep.subr.mxu0 0.0
      %625 = vmatpush1.msra.mxu0 0.0
      %626 = vmatprep.subr.mxu0 0.0
      %627 = vmatpush1.msra.mxu0 0.0
      %628 = vmatprep.subr.mxu0 0.0
      %629 = vmatpush1.msra.mxu0 0.0
      %630 = vmatprep.subr.mxu0 0.0
      %631 = vmatpush1.msra.mxu0 0.0
      %632 = vmatprep.subr.mxu0 0.0
      %633 = vmatpush1.msra.mxu0 0.0
      %634 = vmatprep.subr.mxu0 0.0
      %635 = vmatpush1.msra.mxu0 0.0
      %636 = vmatprep.subr.mxu0 0.0
      %637 = vmatpush1.msra.mxu0 0.0
      %638 = vmatprep.subr.mxu0 0.0
      %639 = vmatpush1.msra.mxu0 0.0
      %640 = vmatprep.subr.mxu0 0.0
      %641 = vmatpush1.msra.mxu0 0.0
      %642 = vmatprep.subr.mxu0 0.0
      %643 = vmatpush1.msra.mxu0 0.0
      %644 = vmatprep.subr.mxu0 0.0
      %645 = vmatpush1.msra.mxu0 0.0
      %646 = vmatprep.subr.mxu0 0.0
      %647 = vmatpush1.msra.mxu0 0.0
      %648 = vmatprep.subr.mxu0 0.0
      %649 = vmatpush1.msra.mxu0 0.0
      %650 = vmatprep.subr.mxu0 0.0
      %651 = vmatpush1.msra.mxu0 0.0
      %652 = vmatprep.subr.mxu0 0.0
      %653 = vmatpush1.msra.mxu0 0.0
      %654 = vmatprep.subr.mxu0 0.0
      %655 = vmatpush1.msra.mxu0 0.0
      %656 = vmatprep.subr.mxu0 0.0
      %657 = vmatpush1.msra.mxu0 0.0
      %658 = vmatprep.subr.mxu0 0.0
      %659 = vmatpush1.msra.mxu0 0.0
      %660 = vmatprep.subr.mxu0 0.0
      %661 = vmatpush1.msra.mxu0 0.0
      %662 = vmatprep.mubr.f32.mxu0 0.0
      %663 = vmatmul.mubr.f32.gmra.mrb[0].mxu0 %v596
      %v664 = vpop.f32.mrb[0].mxu0
      %v665 = vadd.f32 0.0, %v664
      %v666 = vpop.f32.mrb[0].mxu0
      %667 = vdwg.mxu0
      %v668 = vrcp.pop %v591
      %v669 = vmul.f32 %v665, %v668
      %671 = vrot.lane.b32.xlu0 %v669, 16
      %v672 = vpop.permute.xlu0 %671
      %vm674 = vcmask 195712
      %675 = vst.msk [vmem:[%s155] sm:$0xff] %vm674, %v672
      %v676 = vld [vmem:[%s147] sm:$0xff]
      %v677 = vld [vmem:[%s151] sm:$0xff]
      %679 = vrot.lane.b32.xlu0 %v676, 104
      %v680 = vpop.permute.xlu0 %679
      %682 = vrot.lane.b32.xlu0 %v677, 104
      %v683 = vpop.permute.xlu0 %682
      %v684 = vsel %vm158, %v680, 0
      %v686 = vsel %vm158, %v683, 0
      %688 = vmatprep.subr.mxu0 0.0
      %689 = vmatpush1.xpose.msra.mxu0 %v686
      %690 = vmatprep.subr.mxu0 0.0
      %691 = vmatpush1.xpose.msra.mxu0 0.0
      %692 = vmatprep.subr.mxu0 0.0
      %693 = vmatpush1.xpose.msra.mxu0 0.0
      %694 = vmatprep.subr.mxu0 0.0
      %695 = vmatpush1.xpose.msra.mxu0 0.0
      %696 = vmatprep.subr.mxu0 0.0
      %697 = vmatpush1.xpose.msra.mxu0 0.0
      %698 = vmatprep.subr.mxu0 0.0
      %699 = vmatpush1.xpose.msra.mxu0 0.0
      %700 = vmatprep.subr.mxu0 0.0
      %701 = vmatpush1.xpose.msra.mxu0 0.0
      %702 = vmatprep.subr.mxu0 0.0
      %703 = vmatpush1.xpose.msra.mxu0 0.0
      %704 = vmatprep.subr.mxu0 0.0
      %705 = vmatpush1.xpose.msra.mxu0 0.0
      %706 = vmatprep.subr.mxu0 0.0
      %707 = vmatpush1.xpose.msra.mxu0 0.0
      %708 = vmatprep.subr.mxu0 0.0
      %709 = vmatpush1.xpose.msra.mxu0 0.0
      %710 = vmatprep.subr.mxu0 0.0
      %711 = vmatpush1.xpose.msra.mxu0 0.0
      %712 = vmatprep.subr.mxu0 0.0
      %713 = vmatpush1.xpose.msra.mxu0 0.0
      %714 = vmatprep.subr.mxu0 0.0
      %715 = vmatpush1.xpose.msra.mxu0 0.0
      %716 = vmatprep.subr.mxu0 0.0
      %717 = vmatpush1.xpose.msra.mxu0 0.0
      %718 = vmatprep.subr.mxu0 0.0
      %719 = vmatpush1.xpose.msra.mxu0 0.0
      %720 = vmatprep.subr.mxu0 0.0
      %721 = vmatpush1.xpose.msra.mxu0 0.0
      %722 = vmatprep.subr.mxu0 0.0
      %723 = vmatpush1.xpose.msra.mxu0 0.0
      %724 = vmatprep.subr.mxu0 0.0
      %725 = vmatpush1.xpose.msra.mxu0 0.0
      %726 = vmatprep.subr.mxu0 0.0
      %727 = vmatpush1.xpose.msra.mxu0 0.0
      %728 = vmatprep.subr.mxu0 0.0
      %729 = vmatpush1.xpose.msra.mxu0 0.0
      %730 = vmatprep.subr.mxu0 0.0
      %731 = vmatpush1.xpose.msra.mxu0 0.0
      %732 = vmatprep.subr.mxu0 0.0
      %733 = vmatpush1.xpose.msra.mxu0 0.0
      %734 = vmatprep.subr.mxu0 0.0
      %735 = vmatpush1.xpose.msra.mxu0 0.0
      %736 = vmatprep.subr.mxu0 0.0
      %737 = vmatpush1.xpose.msra.mxu0 0.0
      %738 = vmatprep.subr.mxu0 0.0
      %739 = vmatpush1.xpose.msra.mxu0 0.0
      %740 = vmatprep.subr.mxu0 0.0
      %741 = vmatpush1.xpose.msra.mxu0 0.0
      %742 = vmatprep.subr.mxu0 0.0
      %743 = vmatpush1.xpose.msra.mxu0 0.0
      %744 = vmatprep.subr.mxu0 0.0
      %745 = vmatpush1.xpose.msra.mxu0 0.0
      %746 = vmatprep.subr.mxu0 0.0
      %747 = vmatpush1.xpose.msra.mxu0 0.0
      %748 = vmatprep.subr.mxu0 0.0
      %749 = vmatpush1.xpose.msra.mxu0 0.0
      %750 = vmatprep.subr.mxu0 0.0
      %751 = vmatpush1.xpose.msra.mxu0 0.0
      %752 = vmatprep.mubr.f32.mxu0 0.0
      %753 = vmatmul.mubr.f32.gmra.mrb[0].mxu0 %v684
      %v754 = vpop.f32.mrb[0].mxu0
      %v755 = vadd.f32 0.0, %v754
      %v756 = vpop.f32.mrb[0].mxu0
      %757 = vdwg.mxu0
      %v758 = vmul.f32 %v755, 0.35355338
      %v759 = vsel %vm158, %v758, -inf
      %760 = vmax.xlane.f32.xlu0 %v759
      %v761 = vpop.xlane.xlu0 %760
      %v762 = vsub.f32 %v758, %v761
      %v763 = vmul.f32 %v762, 1.442695
      %v764 = vpow.pop %v763
      %v765 = vsel %vm158, %v764, 0.0
      %766 = vadd.xlane.f32.xlu0 %v765
      %v767 = vpop.xlane.xlu0 %766
      %768 = vrot.lane.b32.xlu0 %v677, 72
      %v769 = vpop.permute.xlu0 %768
      %v772 = vsel %vm158, %v764, 0
      %774 = vmatprep.subr.mxu0 0.0
      %775 = vmatpush1.msra.mxu0 %v769
      %776 = vmatprep.subr.mxu0 0.0
      %777 = vmatpush1.msra.mxu0 0.0
      %778 = vmatprep.subr.mxu0 0.0
      %779 = vmatpush1.msra.mxu0 0.0
      %780 = vmatprep.subr.mxu0 0.0
      %781 = vmatpush1.msra.mxu0 0.0
      %782 = vmatprep.subr.mxu0 0.0
      %783 = vmatpush1.msra.mxu0 0.0
      %784 = vmatprep.subr.mxu0 0.0
      %785 = vmatpush1.msra.mxu0 0.0
      %786 = vmatprep.subr.mxu0 0.0
      %787 = vmatpush1.msra.mxu0 0.0
      %788 = vmatprep.subr.mxu0 0.0
      %789 = vmatpush1.msra.mxu0 0.0
      %790 = vmatprep.subr.mxu0 0.0
      %791 = vmatpush1.msra.mxu0 0.0
      %792 = vmatprep.subr.mxu0 0.0
      %793 = vmatpush1.msra.mxu0 0.0
      %794 = vmatprep.subr.mxu0 0.0
      %795 = vmatpush1.msra.mxu0 0.0
      %796 = vmatprep.subr.mxu0 0.0
      %797 = vmatpush1.msra.mxu0 0.0
      %798 = vmatprep.subr.mxu0 0.0
      %799 = vmatpush1.msra.mxu0 0.0
      %800 = vmatprep.subr.mxu0 0.0
      %801 = vmatpush1.msra.mxu0 0.0
      %802 = vmatprep.subr.mxu0 0.0
      %803 = vmatpush1.msra.mxu0 0.0
      %804 = vmatprep.subr.mxu0 0.0
      %805 = vmatpush1.msra.mxu0 0.0
      %806 = vmatprep.subr.mxu0 0.0
      %807 = vmatpush1.msra.mxu0 0.0
      %808 = vmatprep.subr.mxu0 0.0
      %809 = vmatpush1.msra.mxu0 0.0
      %810 = vmatprep.subr.mxu0 0.0
      %811 = vmatpush1.msra.mxu0 0.0
      %812 = vmatprep.subr.mxu0 0.0
      %813 = vmatpush1.msra.mxu0 0.0
      %814 = vmatprep.subr.mxu0 0.0
      %815 = vmatpush1.msra.mxu0 0.0
      %816 = vmatprep.subr.mxu0 0.0
      %817 = vmatpush1.msra.mxu0 0.0
      %818 = vmatprep.subr.mxu0 0.0
      %819 = vmatpush1.msra.mxu0 0.0
      %820 = vmatprep.subr.mxu0 0.0
      %821 = vmatpush1.msra.mxu0 0.0
      %822 = vmatprep.subr.mxu0 0.0
      %823 = vmatpush1.msra.mxu0 0.0
      %824 = vmatprep.subr.mxu0 0.0
      %825 = vmatpush1.msra.mxu0 0.0
      %826 = vmatprep.subr.mxu0 0.0
      %827 = vmatpush1.msra.mxu0 0.0
      %828 = vmatprep.subr.mxu0 0.0
      %829 = vmatpush1.msra.mxu0 0.0
      %830 = vmatprep.subr.mxu0 0.0
      %831 = vmatpush1.msra.mxu0 0.0
      %832 = vmatprep.subr.mxu0 0.0
      %833 = vmatpush1.msra.mxu0 0.0
      %834 = vmatprep.subr.mxu0 0.0
      %835 = vmatpush1.msra.mxu0 0.0
      %836 = vmatprep.subr.mxu0 0.0
      %837 = vmatpush1.msra.mxu0 0.0
      %838 = vmatprep.mubr.f32.mxu0 0.0
      %839 = vmatmul.mubr.f32.gmra.mrb[0].mxu0 %v772
      %v840 = vpop.f32.mrb[0].mxu0
      %v841 = vadd.f32 0.0, %v840
      %v842 = vpop.f32.mrb[0].mxu0
      %843 = vdwg.mxu0
      %v844 = vrcp.pop %v767
      %v845 = vmul.f32 %v841, %v844
      %847 = vrot.lane.b32.xlu0 %v845, 24
      %v848 = vpop.permute.xlu0 %847
      %vm850 = vcmask 261312
      %851 = vst.msk [vmem:[%s155] sm:$0xff] %vm850, %v848
      %p852 = scmp.lt.s32.totalorder %s13, 1
      %s853 = scalar_select %p852, %s13, 1
      %s854 = smul.addr %s853, 8
      %s855 = scalar_lea.vmem %s2, %s854
      // Predicated region
      $region29: #{decoder.22} parent=27 // pred_check
        %p856 = pneg %p83
      $region30: #{decoder.22} parent=27 // pred_check_branch
        %858 = sbr.rel (%p856) target = $region32
      $region31: #{decoder.22} parent=27 // pred_region
        _
      $region32: #{decoder.22} parent=27 // pred_fallthru
        _
    $region28: #{decoder.22} parent=5 // pred_fallthru
      _
    %p859 = scmp.le.s32.totalorder 2, %s8
    // Predicated region
    $region33: #{decoder.22} parent=5 // pred_check
      %p860 = pneg %p859
    $region34: #{decoder.22} parent=5 // pred_check_branch
      %862 = sbr.rel (%p860) target = $region36
    $region35: #{decoder.22} parent=5 // pred_region
      %s863 = ssub.s32 %s8, 2
      // Predicated region
      $region37: #{decoder.22} parent=35 // pred_check
        %p864 = pneg %p89
      $region38: #{decoder.22} parent=35 // pred_check_branch
        %866 = sbr.rel (%p864) target = $region40
      $region39: #{decoder.22} parent=35 // pred_region
        %p867 = scmp.lt.s32.totalorder %s14, 1
        %s868 = scalar_select %p867, %s14, 1
        %s869 = smul.addr %s868, 8
        %s870 = scalar_lea.vmem %s2, %s869
      $region40: #{decoder.22} parent=35 // pred_fallthru
        _
    $region36: #{decoder.22} parent=5 // pred_fallthru
      _
  $region6: #{decoder.22} parent=0 // loop_footer
    %s12 = sadd.s32 1, %s8
  $region7: #{decoder.22} parent=0 // loop_footer_branch
    %7 = sbr.rel target = $region3
  $region8: #{decoder.22} parent=0 // loop_exit
    _

// kernel: decoder.33
$region0: #{decoder.33}
  #allocation0 [shape = 'u32[]', space=smem, size = 0x4, offset = 0x4, fixed_abs, tag = 'smem constant byte address 0x4 - core index']
  #allocation1 [shape = 'u32[144,128]{1,0:T(1,128)}', space=vmem, size = 0x12000, scoped, tag = 'internal scratch']
  %s0 = inlined_call_operand.vmem [shape: f32[16,32], index: 0, kind: input, shape index: {}]
  %s1 = inlined_call_operand.vmem [shape: f32[32,128], index: 1, kind: input, shape index: {}]
  %s2 = inlined_call_operand.vmem [shape: f32[1,128], index: 2, kind: input, shape index: {}]
  %s3 = inlined_call_operand.vmem [shape: f32[16,128], index: 3, kind: output, shape index: {}]
  %s4 = sld [smem:[#allocation0]]
  $region22: #{decoder.33} parent=0
    _
  %s6 = ssub.s32 1, %s4
  %s7 = scalar_select 0, %s6, %s4
  // Predicated region
  $region2: #{decoder.33} parent=0 // pred_check
    _
  $region3: #{decoder.33} parent=0 // pred_check_branch
    %9 = sbr.rel (0) target = $region5
  $region4: #{decoder.33} parent=0 // pred_region
    _
  $region5: #{decoder.33} parent=0 // pred_fallthru
    _
  // Predicated region
  $region6: #{decoder.33} parent=0 // pred_check
    _
  $region7: #{decoder.33} parent=0 // pred_check_branch
    %11 = sbr.rel (0) target = $region9
  $region8: #{decoder.33} parent=0 // pred_region
    _
  $region9: #{decoder.33} parent=0 // pred_fallthru
    _
  // Predicated region
  $region10: #{decoder.33} parent=0 // pred_check
    _
  $region11: #{decoder.33} parent=0 // pred_check_branch
    %13 = sbr.rel (0) target = $region13
  $region12: #{decoder.33} parent=0 // pred_region
    _
  $region13: #{decoder.33} parent=0 // pred_fallthru
    _
  %v14 = vld [vmem:[%s0] sm:$0xff]
  %v15 = vld [vmem:[%s0 + $0x8] sm:$0xff]
  %v16 = vld [vmem:[%s1] sm:$0xff]
  %v17 = vld [vmem:[%s1 + $0x8] sm:$0xff]
  %v18 = vld [vmem:[%s1 + $0x10] sm:$0xff]
  %v19 = vld [vmem:[%s1 + $0x18] sm:$0xff]
  %v20 = vld [vmem:[%s2] sm:$0x1]
  %v22 = vlaneseq
  %v23 = vshrl.u32 %v22, 7
  %v24 = vsub.s32 0, %v23
  %v25 = vrot.slane %v20, %v24
  %vm27 = vcmask 261120
  %v29 = vsel %vm27, %v14, 0
  %v32 = vsel %vm27, %v15, 0
  %34 = vmatprep.subr.mxu0 0.0
  %35 = vmatpush1.msra.mxu0 %v16
  %36 = vmatprep.subr.mxu0 0.0
  %37 = vmatpush1.msra.mxu0 %v17
  %38 = vmatprep.subr.mxu0 0.0
  %39 = vmatpush1.msra.mxu0 %v18
  %40 = vmatprep.subr.mxu0 0.0
  %41 = vmatpush1.msra.mxu0 %v19
  %42 = vmatprep.subr.mxu0 0.0
  %43 = vmatpush1.msra.mxu0 0.0
  %44 = vmatprep.subr.mxu0 0.0
  %45 = vmatpush1.msra.mxu0 0.0
  %46 = vmatprep.subr.mxu0 0.0
  %47 = vmatpush1.msra.mxu0 0.0
  %48 = vmatprep.subr.mxu0 0.0
  %49 = vmatpush1.msra.mxu0 0.0
  %50 = vmatprep.subr.mxu0 0.0
  %51 = vmatpush1.msra.mxu0 0.0
  %52 = vmatprep.subr.mxu0 0.0
  %53 = vmatpush1.msra.mxu0 0.0
  %54 = vmatprep.subr.mxu0 0.0
  %55 = vmatpush1.msra.mxu0 0.0
  %56 = vmatprep.subr.mxu0 0.0
  %57 = vmatpush1.msra.mxu0 0.0
  %58 = vmatprep.subr.mxu0 0.0
  %59 = vmatpush1.msra.mxu0 0.0
  %60 = vmatprep.subr.mxu0 0.0
  %61 = vmatpush1.msra.mxu0 0.0
  %62 = vmatprep.subr.mxu0 0.0
  %63 = vmatpush1.msra.mxu0 0.0
  %64 = vmatprep.subr.mxu0 0.0
  %65 = vmatpush1.msra.mxu0 0.0
  %66 = vmatprep.subr.mxu0 0.0
  %67 = vmatpush1.msra.mxu0 0.0
  %68 = vmatprep.subr.mxu0 0.0
  %69 = vmatpush1.msra.mxu0 0.0
  %70 = vmatprep.subr.mxu0 0.0
  %71 = vmatpush1.msra.mxu0 0.0
  %72 = vmatprep.subr.mxu0 0.0
  %73 = vmatpush1.msra.mxu0 0.0
  %74 = vmatprep.subr.mxu0 0.0
  %75 = vmatpush1.msra.mxu0 0.0
  %76 = vmatprep.subr.mxu0 0.0
  %77 = vmatpush1.msra.mxu0 0.0
  %78 = vmatprep.subr.mxu0 0.0
  %79 = vmatpush1.msra.mxu0 0.0
  %80 = vmatprep.subr.mxu0 0.0
  %81 = vmatpush1.msra.mxu0 0.0
  %82 = vmatprep.subr.mxu0 0.0
  %83 = vmatpush1.msra.mxu0 0.0
  %84 = vmatprep.subr.mxu0 0.0
  %85 = vmatpush1.msra.mxu0 0.0
  %86 = vmatprep.subr.mxu0 0.0
  %87 = vmatpush1.msra.mxu0 0.0
  %88 = vmatprep.subr.mxu0 0.0
  %89 = vmatpush1.msra.mxu0 0.0
  %90 = vmatprep.subr.mxu0 0.0
  %91 = vmatpush1.msra.mxu0 0.0
  %92 = vmatprep.subr.mxu0 0.0
  %93 = vmatpush1.msra.mxu0 0.0
  %94 = vmatprep.subr.mxu0 0.0
  %95 = vmatpush1.msra.mxu0 0.0
  %96 = vmatprep.subr.mxu0 0.0
  %97 = vmatpush1.msra.mxu0 0.0
  %98 = vmatprep.mubr.f32.mxu0 0.0
  %99 = vmatmul.mubr.f32.gmra.mrb[0].mxu0 %v29
  %v100 = vpop.f32.mrb[0].mxu0
  %v101 = vadd.f32 %v25, %v100
  %v102 = vpop.f32.mrb[0].mxu0
  %103 = vmatprep.mubr.f32.mxu0 0.0
  %104 = vmatmul.mubr.f32.gmra.mrb[0].mxu0 %v32
  %v105 = vpop.f32.mrb[0].mxu0
  %v106 = vadd.f32 %v25, %v105
  %v107 = vpop.f32.mrb[0].mxu0
  %108 = vdwg.mxu0
  %109 = vst [vmem:[%s3] sm:$0xff] %v101
  %110 = vst [vmem:[%s3 + $0x8] sm:$0xff] %v106
  // Predicated region
  $region14: #{decoder.33} parent=0 // pred_check
    _
  $region15: #{decoder.33} parent=0 // pred_check_branch
    %112 = sbr.rel (0) target = $region17
  $region16: #{decoder.33} parent=0 // pred_region
    _
  $region17: #{decoder.33} parent=0 // pred_fallthru
    _
  // Predicated region
  $region18: #{decoder.33} parent=0 // pred_check
    _
  $region19: #{decoder.33} parent=0 // pred_check_branch
    %114 = sbr.rel (0) target = $region21
  $region20: #{decoder.33} parent=0 // pred_region
    _
  $region21: #{decoder.33} parent=0 // pred_fallthru
    _

</llo_original>
